<compile_context>
chip_gen: v6e
topology: v6e:2x2x1
jax: 0.10.0
libtpu: 0.0.40
codegen_flags: <defaults>
</compile_context>

<pallas_src>
import numpy as np
import jax
import jax.numpy as jnp
from jax.experimental import pallas as pl
from jax.experimental.pallas import tpu as pltpu


LEAKY_SLOPE = 0.01   # nn.LeakyReLU(0.01) in the torch module
OUT_LANES = 128      # lane-dense output block width


def _round_up(x, m):
    return (x + m - 1) // m * m


# ----------------------- parameters (faithful to torch) -----------------------

def build_critic_params(key, scales, depth, latent, colors, init="torch"):
    """Re-implementation of Autoencoder._make_network(part='encoder', bn=False).

    init='torch' reproduces the torch init exactly:
        std = (1 / ((1 + 0.2**2) * prod(weight.shape[:-1]))) ** 2, bias = 0
    init='he' uses a healthier magnitude (for a tight numerical check only).
    Weights are stored in torch OIHW layout.
    """
    slope = 0.2
    layer_defs = [(colors, depth, 1, False, False)]      # (cin, cout, k, leaky, pool)
    cin = depth
    for s in range(scales):
        cout = depth * (2 ** s)
        layer_defs.append((cin, cout, 3, True, True))
        cin = cout
    cout = depth << scales
    layer_defs.append((cin, cout, 3, True, False))
    layer_defs.append((cout, latent, 3, False, False))

    params = []
    for (ci, co, k, leaky, pool) in layer_defs:
        key, wk = jax.random.split(key)
        w_shape = (co, ci, k, k)
        if init == "torch":
            std = (1.0 / ((1.0 + slope ** 2) * np.prod(w_shape[:-1]))) ** 2
        else:
            std = (1.0 / (ci * k * k)) ** 0.5
        w = (std * jax.random.normal(wk, w_shape)).astype(jnp.float32)
        b = jnp.zeros((co,), dtype=jnp.float32)
        params.append(dict(w=w, b=b, k=k, leaky=leaky, pool=pool))
    return params


# --------------- one-time preprocessing into fused-kernel operands ------------
#
# Activation representation inside the kernel (batched "frame" layout):
#   an activation with valid size (vh, vw) for image b of the block is stored
#   inside a (C_pad, B*fext) array, fext = fh*fw + 2*slack, fh = vh+2,
#   fw = vw+2, slack = fw+1.  Image b's fh*fw frame sits at lanes
#   [b*fext + slack, b*fext + slack + fh*fw); the 1-pixel ring and the slack
#   lanes are exact zeros.  With this slack every 3x3 tap of the WHOLE batched
#   frame is one static in-bounds lane slice of width Wn = B*fext - 2*slack;
#   tap garbage near segment boundaries only lands in ring/slack output lanes
#   which the per-image pool/mask/mean matrices never read.

def prepare_critic(params, H, W, images_per_block):
    B = int(images_per_block)
    assert B >= 1 and B <= OUT_LANES
    colors = int(params[0]["w"].shape[1])
    depth = int(params[0]["w"].shape[0])
    assert params[0]["k"] == 1, "first Critic layer must be the 1x1 conv"
    colors_pad = _round_up(colors, 8)
    c0_pad = _round_up(depth, 8)

    operands = []

    def add(a, dtype):
        operands.append(jnp.asarray(a, dtype=dtype))
        return len(operands) - 1

    # ---- layer 0: Conv2d(colors, depth, k=1, padding=1).
    # The wrapper pre-embeds the image into the frame layout, so layer 0 is just
    # (w0 @ x_frame) + bias_frame (review item: no dense E matmul).
    vh, vw = H + 2, W + 2                 # valid spatial size after layer 0
    fh, fw = vh + 2, vw + 2               # frame adds the ring for the next conv
    slack = fw + 1
    fext = fh * fw + 2 * slack
    frame0 = dict(fh=fh, fw=fw, slack=slack, fext=fext)
    L0 = B * fext

    w0 = np.zeros((c0_pad, colors_pad), np.float32)
    w0[:depth, :colors] = np.asarray(params[0]["w"]).reshape(depth, colors)

    m = np.zeros((fext,), np.float32)     # bias applies on the (H+2)x(W+2) valid region
    for u in range(1, vh + 1):
        for v in range(1, vw + 1):
            m[slack + u * fw + v] = 1.0
    mvec = np.tile(m, B)
    b0p = np.zeros((c0_pad,), np.float32)
    b0p[:depth] = np.asarray(params[0]["b"])
    bias_f0 = b0p[:, None] * mvec[None, :]          # (c0_pad, B*fext)

    i_w0 = add(w0, jnp.float32)
    i_bf0 = add(bias_f0, jnp.float32)

    # ---- the 3x3 conv layers
    layers = []
    cin_real, cin_pad = depth, c0_pad
    n_layers = len(params)
    for li in range(1, n_layers):
        p = params[li]
        assert p["k"] == 3
        cout_real = int(p["w"].shape[0])
        cout_pad = _round_up(cout_real, 8)          # final layer padded too

        # weight OIHW -> (cout_pad, 9*cin_pad), column order (dy, dx, cin);
        # bias packed as the last column (one operand / DMA per layer).
        w_ohwi = np.transpose(np.asarray(p["w"]), (0, 2, 3, 1))       # (O,3,3,I)
        w_ohwi = np.pad(w_ohwi, ((0, cout_pad - cout_real), (0, 0), (0, 0),
                                 (0, cin_pad - cin_real)))
        w2d = w_ohwi.reshape(cout_pad, 9 * cin_pad)
        b_col = np.zeros((cout_pad, 1), np.float32)
        b_col[:cout_real, 0] = np.asarray(p["b"])
        wb = np.concatenate([w2d, b_col], axis=1).astype(np.float32)

        Lin = B * fext
        Wn = Lin - 2 * slack
        entry = dict(fh=fh, fw=fw, fext=fext, wn=Wn, cin_pad=cin_pad,
                     kcols=9 * cin_pad, leaky=bool(p["leaky"]),
                     i_wb=add(wb, jnp.float32))

        is_final = (li == n_layers - 1)
        if is_final:
            # per-image segment selector (0/1, exact in bf16): picks the valid
            # vh x vw positions of image b into output lane b.
            seg = np.zeros((Wn, OUT_LANES), np.float32)
            for b in range(B):
                for u in range(1, vh + 1):
                    for v in range(1, vw + 1):
                        seg[b * fext + u * fw + v, b] = 1.0
            entry.update(kind="final", i_aux=add(seg, jnp.bfloat16),
                         inv_denom=1.0 / float(cout_real * vh * vw))
        elif p["pool"]:
            # AvgPool2d(2) (floor) + re-embed into the next zero-ringed frame,
            # per image, as one precomputed sparse matmul (0.25 exact in bf16).
            pvh, pvw = vh // 2, vw // 2
            nfh, nfw = pvh + 2, pvw + 2
            nslack = nfw + 1
            nfext = nfh * nfw + 2 * nslack
            P = np.zeros((fh * fw, nfext), np.float32)
            for i in range(pvh):
                for j in range(pvw):
                    for di in range(2):
                        for dj in range(2):
                            P[(1 + 2 * i + di) * fw + (1 + 2 * j + dj),
                              (1 + i) * nfw + (1 + j) + nslack] = 0.25
            entry.update(kind="pool", i_aux=add(P, jnp.bfloat16))
            vh, vw, fh, fw, slack, fext = pvh, pvw, nfh, nfw, nslack, nfext
        else:
            # same-size layer: zero the garbage ring and re-insert lane slack
            M = np.zeros((fh * fw, fext), np.float32)
            for u in range(1, vh + 1):
                for v in range(1, vw + 1):
                    M[u * fw + v, u * fw + v + slack] = 1.0
            entry.update(kind="same", i_aux=add(M, jnp.bfloat16))

        layers.append(entry)
        cin_real, cin_pad = cout_real, cout_pad

    plan = dict(H=H, W=W, colors=colors, colors_pad=colors_pad,
                images_per_block=B, frame0=frame0,
                i_w0=i_w0, i_bf0=i_bf0, layers=layers)
    return plan, operands


# -------------------------------- fused kernel --------------------------------

def _make_critic_kernel(plan):
    layers = plan["layers"]
    B = plan["images_per_block"]

    def kernel(*refs):
        x_ref = refs[0]
        op = refs[1:-1]
        o_ref = refs[-1]

        x = x_ref[0]                                            # (colors_pad, B*fext0)
        w0 = op[plan["i_w0"]][...]
        # layer 0: 1x1 conv directly on the (pre-embedded) frame + bias-frame
        f = jnp.dot(w0, x, preferred_element_type=jnp.float32) + op[plan["i_bf0"]][...]

        for L in layers:
            wb = op[L["i_wb"]][...]                              # weights + bias column
            K = L["kcols"]
            cinp = L["cin_pad"]
            fw = L["fw"]
            fhfw = L["fh"] * L["fw"]
            slack = fw + 1
            Wn = L["wn"]
            fext_in = L["fext"]
            bias = wb[:, K:K + 1]

            # 3x3 conv as 3 accumulated dots over dy (bounded im2col live size)
            c = None
            for dy in range(3):
                base = slack + (dy - 1) * fw - 1
                taps = [f[:, base + dx: base + dx + Wn] for dx in range(3)]
                pdy = jnp.concatenate(taps, axis=0)              # (3*cin_pad, Wn)
                wdy = wb[:, dy * 3 * cinp:(dy + 1) * 3 * cinp]   # (cout_pad, 3*cin_pad)
                d = jnp.dot(wdy, pdy, preferred_element_type=jnp.float32)
                c = d if c is None else c + d
            c = c + bias
            if L["leaky"]:
                c = jnp.maximum(c, LEAKY_SLOPE * c)

            aux = op[L["i_aux"]][...].astype(jnp.float32)        # exact 0/1/0.25 consts
            if L["kind"] == "final":
                # fused flatten + mean: per-image masked sum via SEG, then
                # sublane reduce (padded out-channels are exact zeros).
                s = jnp.dot(c, aux, preferred_element_type=jnp.float32)   # (cout_pad, 128)
                res = jnp.sum(s, axis=0, keepdims=True) * L["inv_denom"]  # (1, 128)
                o_ref[...] = res.reshape(1, 1, OUT_LANES)
            else:
                # pool+repad ("pool") or ring-mask+repad ("same"): one small
                # matmul per image of the block, concatenated along lanes.
                pieces = [jnp.dot(c[:, b * fext_in: b * fext_in + fhfw], aux,
                                  preferred_element_type=jnp.float32)
                          for b in range(B)]
                f = pieces[0] if B == 1 else jnp.concatenate(pieces, axis=1)

    return kernel


def _const_index(ndim):
    zeros = (0,) * ndim
    return lambda g: zeros


def critic_forward_pallas(x_nchw, plan, operands):
    """Critic.forward: flatten(critic(x)).mean(dim=1) -> shape (N,)."""
    N, C, H, W = x_nchw.shape
    assert (C, H, W) == (plan["colors"], plan["H"], plan["W"])
    B = plan["images_per_block"]
    G = -(-N // B)
    Npad = G * B
    f0 = plan["frame0"]
    fh, fw, slack, fext = f0["fh"], f0["fw"], f0["slack"], f0["fext"]
    cpad = plan["colors_pad"]

    # Wrapper-side layout plumbing only (no compute): pad batch, pad channels to
    # a sublane tile, embed the HxW image at frame coords (2..H+1, 2..W+1) of the
    # zero frame, add the lane slack, and lay B images along the lane axis.
    x = x_nchw.astype(jnp.float32)
    if Npad != N:
        x = jnp.pad(x, ((0, Npad - N), (0, 0), (0, 0), (0, 0)))
    xf = jnp.pad(x, ((0, 0), (0, cpad - C), (2, fh - H - 2), (2, fw - W - 2)))
    xf = xf.reshape(Npad, cpad, fh * fw)
    xf = jnp.pad(xf, ((0, 0), (0, 0), (slack, slack)))            # (Npad, cpad, fext)
    xf = xf.reshape(G, B, cpad, fext).transpose(0, 2, 1, 3).reshape(G, cpad, B * fext)

    in_specs = [pl.BlockSpec((1, cpad, B * fext), lambda g: (g, 0, 0))]
    for opnd in operands:
        shp = tuple(int(d) for d in opnd.shape)
        in_specs.append(pl.BlockSpec(shp, _const_index(len(shp))))

    out = pl.pallas_call(
        _make_critic_kernel(plan),
        out_shape=jax.ShapeDtypeStruct((G, 1, OUT_LANES), jnp.float32),
        grid=(G,),
        in_specs=in_specs,
        out_specs=pl.BlockSpec((1, 1, OUT_LANES), lambda g: (g, 0, 0)),
        compiler_params=pltpu.CompilerParams(
            dimension_semantics=("parallel",),        # 1 block / TensorCore on v7x
            vmem_limit_bytes=32 * 1024 * 1024),
    )(xf, *operands)
    return out[:, 0, :B].reshape(-1)[:N]


def _default_num_blocks(n_images):
    """2 blocks on v7x (2 TensorCores / chip), else 1 (v5e / v6e have 1 TC)."""
    try:
        kind = jax.devices()[0].device_kind.lower()
    except Exception:
        kind = ""
    cores = 2 if ("v7" in kind or "7x" in kind) else 1
    return max(1, min(cores, n_images))


# ----------------------------- pure-JAX reference ------------------------------

def critic_forward_reference(x_nchw, params):
    x = jnp.transpose(x_nchw, (0, 2, 3, 1)).astype(jnp.float32)
    for p in params:
        w_hwio = jnp.transpose(p["w"], (2, 3, 1, 0))
        x = jax.lax.conv_general_dilated(
            x, w_hwio, window_strides=(1, 1),
            padding=((1, 1), (1, 1)),
            dimension_numbers=("NHWC", "HWIO", "NHWC"))
        x = x + p["b"]
        if p["leaky"]:
            x = jnp.where(x >= 0, x, LEAKY_SLOPE * x)
        if p["pool"]:
            s = jax.lax.reduce_window(x, 0.0, jax.lax.add,
                                      (1, 2, 2, 1), (1, 2, 2, 1), "VALID")
            x = s / 4.0
    return jnp.mean(x.reshape(x.shape[0], -1), axis=1)


# ------------------------------------ main -------------------------------------

if __name__ == "__main__":
    scales, depth, latent, colors = 2, 4, 2, 3
    N, H, W = 2, 16, 16
    key = jax.random.PRNGKey(0)
    kx, kp = jax.random.split(key)
    x = jax.random.normal(kx, (N, colors, H, W), dtype=jnp.float32)   # NCHW like torch

    num_blocks = _default_num_blocks(N)
    images_per_block = -(-N // num_blocks)

    # 1) faithful torch init (torch's `**2` init makes outputs ~1e-17; loose check)
    params = build_critic_params(kp, scales, depth, latent, colors, init="torch")
    plan, operands = prepare_critic(params, H, W, images_per_block)
    fwd = jax.jit(lambda xx: critic_forward_pallas(xx, plan, operands))
    out = jax.block_until_ready(fwd(x))
    assert out.shape == (N,), out.shape
    ref = jax.block_until_ready(critic_forward_reference(x, params))
    np.testing.assert_allclose(np.asarray(out), np.asarray(ref), rtol=5e-2, atol=1e-12)

    # 2) healthier-magnitude init for a tight numerical check of the kernel
    params2 = build_critic_params(kp, scales, depth, latent, colors, init="he")
    plan2, operands2 = prepare_critic(params2, H, W, images_per_block)
    out2 = jax.block_until_ready(critic_forward_pallas(x, plan2, operands2))
    ref2 = jax.block_until_ready(critic_forward_reference(x, params2))
    np.testing.assert_allclose(np.asarray(out2), np.asarray(ref2), rtol=1e-3, atol=1e-5)

    print("KERNEL_OK")
</pallas_src>

<mosaic_0001>
module attributes {stable_mosaic.version = 11 : i64} {
  func.func @kernel(%arg0: i32, %arg1: memref<1x8x884xf32, #tpu.memory_space<vmem>>, %arg2: memref<8x8xf32, #tpu.memory_space<vmem>>, %arg3: memref<8x884xf32, #tpu.memory_space<vmem>>, %arg4: memref<8x73xf32, #tpu.memory_space<vmem>>, %arg5: memref<400x145xbf16, #tpu.memory_space<vmem>>, %arg6: memref<8x73xf32, #tpu.memory_space<vmem>>, %arg7: memref<121x50xbf16, #tpu.memory_space<vmem>>, %arg8: memref<16x73xf32, #tpu.memory_space<vmem>>, %arg9: memref<36x50xbf16, #tpu.memory_space<vmem>>, %arg10: memref<8x145xf32, #tpu.memory_space<vmem>>, %arg11: memref<86x128xbf16, #tpu.memory_space<vmem>>, %arg12: memref<1x1x128xf32, #tpu.memory_space<vmem>>) attributes {dimension_semantics = [#tpu.dimension_semantics<parallel>], iteration_bounds = array<i64: 1>, scalar_prefetch = 0 : i64, scratch_operands = 0 : i64, tpu.core_type = #tpu.core_type<tc>, window_params = [{transform_indices = @transform_0, window_bounds = array<i64: 1, 8, 884>}, {pipeline_mode = #tpu.pipeline_mode<synchronous>, transform_indices = @transform_1, window_bounds = array<i64: 8, 8>}, {pipeline_mode = #tpu.pipeline_mode<synchronous>, transform_indices = @transform_2, window_bounds = array<i64: 8, 884>}, {pipeline_mode = #tpu.pipeline_mode<synchronous>, transform_indices = @transform_3, window_bounds = array<i64: 8, 73>}, {pipeline_mode = #tpu.pipeline_mode<synchronous>, transform_indices = @transform_4, window_bounds = array<i64: 400, 145>}, {pipeline_mode = #tpu.pipeline_mode<synchronous>, transform_indices = @transform_5, window_bounds = array<i64: 8, 73>}, {pipeline_mode = #tpu.pipeline_mode<synchronous>, transform_indices = @transform_6, window_bounds = array<i64: 121, 50>}, {pipeline_mode = #tpu.pipeline_mode<synchronous>, transform_indices = @transform_7, window_bounds = array<i64: 16, 73>}, {pipeline_mode = #tpu.pipeline_mode<synchronous>, transform_indices = @transform_8, window_bounds = array<i64: 36, 50>}, {pipeline_mode = #tpu.pipeline_mode<synchronous>, transform_indices = @transform_9, window_bounds = array<i64: 8, 145>}, {pipeline_mode = #tpu.pipeline_mode<synchronous>, transform_indices = @transform_10, window_bounds = array<i64: 86, 128>}, {transform_indices = @transform_11, window_bounds = array<i64: 1, 1, 128>}]} {
    %c0 = arith.constant 0 : index
    %c0_0 = arith.constant 0 : index
    %c0_1 = arith.constant 0 : index
    %0 = vector.load %arg1[%c0, %c0_0, %c0_1] : memref<1x8x884xf32, #tpu.memory_space<vmem>>, vector<1x8x884xf32>
    %1 = vector.shape_cast %0 : vector<1x8x884xf32> to vector<8x884xf32>
    %c0_2 = arith.constant 0 : index
    %c0_3 = arith.constant 0 : index
    %2 = vector.load %arg2[%c0_2, %c0_3] : memref<8x8xf32, #tpu.memory_space<vmem>>, vector<8x8xf32>
    %cst = arith.constant dense<0.000000e+00> : vector<8x884xf32>
    %3 = tpu.matmul %2, %1, %cst {dimension_numbers = #tpu.dot_dimension_numbers<[1], [0], [0], [1], [0, 0, 1, 1], [], []>} : vector<8x8xf32>, vector<8x884xf32>, vector<8x884xf32> -> vector<8x884xf32>
    %c0_4 = arith.constant 0 : index
    %c0_5 = arith.constant 0 : index
    %4 = vector.load %arg3[%c0_4, %c0_5] : memref<8x884xf32, #tpu.memory_space<vmem>>, vector<8x884xf32>
    %5 = arith.addf %3, %4 : vector<8x884xf32>
    %c0_6 = arith.constant 0 : index
    %c0_7 = arith.constant 0 : index
    %6 = vector.load %arg4[%c0_6, %c0_7] : memref<8x73xf32, #tpu.memory_space<vmem>>, vector<8x73xf32>
    %7 = vector.extract_strided_slice %6 {offsets = [0, 72], sizes = [8, 1], strides = [1, 1]} : vector<8x73xf32> to vector<8x1xf32>
    %8 = vector.extract_strided_slice %5 {offsets = [0, 0], sizes = [8, 842], strides = [1, 1]} : vector<8x884xf32> to vector<8x842xf32>
    %9 = vector.extract_strided_slice %5 {offsets = [0, 1], sizes = [8, 842], strides = [1, 1]} : vector<8x884xf32> to vector<8x842xf32>
    %10 = vector.extract_strided_slice %5 {offsets = [0, 2], sizes = [8, 842], strides = [1, 1]} : vector<8x884xf32> to vector<8x842xf32>
    %11 = tpu.concatenate %8, %9, %10 in 0 : vector<8x842xf32>, vector<8x842xf32>, vector<8x842xf32> -> vector<24x842xf32>
    %12 = vector.extract_strided_slice %6 {offsets = [0, 0], sizes = [8, 24], strides = [1, 1]} : vector<8x73xf32> to vector<8x24xf32>
    %cst_8 = arith.constant dense<0.000000e+00> : vector<8x842xf32>
    %13 = tpu.matmul %12, %11, %cst_8 {dimension_numbers = #tpu.dot_dimension_numbers<[1], [0], [0], [1], [0, 0, 1, 1], [], []>} : vector<8x24xf32>, vector<24x842xf32>, vector<8x842xf32> -> vector<8x842xf32>
    %14 = vector.extract_strided_slice %5 {offsets = [0, 20], sizes = [8, 842], strides = [1, 1]} : vector<8x884xf32> to vector<8x842xf32>
    %15 = vector.extract_strided_slice %5 {offsets = [0, 21], sizes = [8, 842], strides = [1, 1]} : vector<8x884xf32> to vector<8x842xf32>
    %16 = vector.extract_strided_slice %5 {offsets = [0, 22], sizes = [8, 842], strides = [1, 1]} : vector<8x884xf32> to vector<8x842xf32>
    %17 = tpu.concatenate %14, %15, %16 in 0 : vector<8x842xf32>, vector<8x842xf32>, vector<8x842xf32> -> vector<24x842xf32>
    %18 = vector.extract_strided_slice %6 {offsets = [0, 24], sizes = [8, 24], strides = [1, 1]} : vector<8x73xf32> to vector<8x24xf32>
    %cst_9 = arith.constant dense<0.000000e+00> : vector<8x842xf32>
    %19 = tpu.matmul %18, %17, %cst_9 {dimension_numbers = #tpu.dot_dimension_numbers<[1], [0], [0], [1], [0, 0, 1, 1], [], []>} : vector<8x24xf32>, vector<24x842xf32>, vector<8x842xf32> -> vector<8x842xf32>
    %20 = arith.addf %13, %19 : vector<8x842xf32>
    %21 = vector.extract_strided_slice %5 {offsets = [0, 40], sizes = [8, 842], strides = [1, 1]} : vector<8x884xf32> to vector<8x842xf32>
    %22 = vector.extract_strided_slice %5 {offsets = [0, 41], sizes = [8, 842], strides = [1, 1]} : vector<8x884xf32> to vector<8x842xf32>
    %23 = vector.extract_strided_slice %5 {offsets = [0, 42], sizes = [8, 842], strides = [1, 1]} : vector<8x884xf32> to vector<8x842xf32>
    %24 = tpu.concatenate %21, %22, %23 in 0 : vector<8x842xf32>, vector<8x842xf32>, vector<8x842xf32> -> vector<24x842xf32>
    %25 = vector.extract_strided_slice %6 {offsets = [0, 48], sizes = [8, 24], strides = [1, 1]} : vector<8x73xf32> to vector<8x24xf32>
    %cst_10 = arith.constant dense<0.000000e+00> : vector<8x842xf32>
    %26 = tpu.matmul %25, %24, %cst_10 {dimension_numbers = #tpu.dot_dimension_numbers<[1], [0], [0], [1], [0, 0, 1, 1], [], []>} : vector<8x24xf32>, vector<24x842xf32>, vector<8x842xf32> -> vector<8x842xf32>
    %27 = arith.addf %20, %26 : vector<8x842xf32>
    %28 = vector.broadcast %7 : vector<8x1xf32> to vector<8x842xf32>
    %29 = arith.addf %27, %28 : vector<8x842xf32>
    %cst_11 = arith.constant 0.00999999977 : f32
    %30 = vector.broadcast %cst_11 : f32 to vector<8x842xf32>
    %31 = arith.mulf %30, %29 : vector<8x842xf32>
    %32 = arith.maximumf %29, %31 : vector<8x842xf32>
    %c0_12 = arith.constant 0 : index
    %c0_13 = arith.constant 0 : index
    %33 = vector.load %arg5[%c0_12, %c0_13] : memref<400x145xbf16, #tpu.memory_space<vmem>>, vector<400x145xbf16>
    %34 = arith.extf %33 : vector<400x145xbf16> to vector<400x145xf32>
    %35 = vector.extract_strided_slice %32 {offsets = [0, 0], sizes = [8, 400], strides = [1, 1]} : vector<8x842xf32> to vector<8x400xf32>
    %cst_14 = arith.constant dense<0.000000e+00> : vector<8x145xf32>
    %36 = tpu.matmul %35, %34, %cst_14 {dimension_numbers = #tpu.dot_dimension_numbers<[1], [0], [0], [1], [0, 0, 1, 1], [], []>} : vector<8x400xf32>, vector<400x145xf32>, vector<8x145xf32> -> vector<8x145xf32>
    %37 = vector.extract_strided_slice %32 {offsets = [0, 442], sizes = [8, 400], strides = [1, 1]} : vector<8x842xf32> to vector<8x400xf32>
    %cst_15 = arith.constant dense<0.000000e+00> : vector<8x145xf32>
    %38 = tpu.matmul %37, %34, %cst_15 {dimension_numbers = #tpu.dot_dimension_numbers<[1], [0], [0], [1], [0, 0, 1, 1], [], []>} : vector<8x400xf32>, vector<400x145xf32>, vector<8x145xf32> -> vector<8x145xf32>
    %39 = tpu.concatenate %36, %38 in 1 : vector<8x145xf32>, vector<8x145xf32> -> vector<8x290xf32>
    %c0_16 = arith.constant 0 : index
    %c0_17 = arith.constant 0 : index
    %40 = vector.load %arg6[%c0_16, %c0_17] : memref<8x73xf32, #tpu.memory_space<vmem>>, vector<8x73xf32>
    %41 = vector.extract_strided_slice %40 {offsets = [0, 72], sizes = [8, 1], strides = [1, 1]} : vector<8x73xf32> to vector<8x1xf32>
    %42 = vector.extract_strided_slice %39 {offsets = [0, 0], sizes = [8, 266], strides = [1, 1]} : vector<8x290xf32> to vector<8x266xf32>
    %43 = vector.extract_strided_slice %39 {offsets = [0, 1], sizes = [8, 266], strides = [1, 1]} : vector<8x290xf32> to vector<8x266xf32>
    %44 = vector.extract_strided_slice %39 {offsets = [0, 2], sizes = [8, 266], strides = [1, 1]} : vector<8x290xf32> to vector<8x266xf32>
    %45 = tpu.concatenate %42, %43, %44 in 0 : vector<8x266xf32>, vector<8x266xf32>, vector<8x266xf32> -> vector<24x266xf32>
    %46 = vector.extract_strided_slice %40 {offsets = [0, 0], sizes = [8, 24], strides = [1, 1]} : vector<8x73xf32> to vector<8x24xf32>
    %cst_18 = arith.constant dense<0.000000e+00> : vector<8x266xf32>
    %47 = tpu.matmul %46, %45, %cst_18 {dimension_numbers = #tpu.dot_dimension_numbers<[1], [0], [0], [1], [0, 0, 1, 1], [], []>} : vector<8x24xf32>, vector<24x266xf32>, vector<8x266xf32> -> vector<8x266xf32>
    %48 = vector.extract_strided_slice %39 {offsets = [0, 11], sizes = [8, 266], strides = [1, 1]} : vector<8x290xf32> to vector<8x266xf32>
    %49 = vector.extract_strided_slice %39 {offsets = [0, 12], sizes = [8, 266], strides = [1, 1]} : vector<8x290xf32> to vector<8x266xf32>
    %50 = vector.extract_strided_slice %39 {offsets = [0, 13], sizes = [8, 266], strides = [1, 1]} : vector<8x290xf32> to vector<8x266xf32>
    %51 = tpu.concatenate %48, %49, %50 in 0 : vector<8x266xf32>, vector<8x266xf32>, vector<8x266xf32> -> vector<24x266xf32>
    %52 = vector.extract_strided_slice %40 {offsets = [0, 24], sizes = [8, 24], strides = [1, 1]} : vector<8x73xf32> to vector<8x24xf32>
    %cst_19 = arith.constant dense<0.000000e+00> : vector<8x266xf32>
    %53 = tpu.matmul %52, %51, %cst_19 {dimension_numbers = #tpu.dot_dimension_numbers<[1], [0], [0], [1], [0, 0, 1, 1], [], []>} : vector<8x24xf32>, vector<24x266xf32>, vector<8x266xf32> -> vector<8x266xf32>
    %54 = arith.addf %47, %53 : vector<8x266xf32>
    %55 = vector.extract_strided_slice %39 {offsets = [0, 22], sizes = [8, 266], strides = [1, 1]} : vector<8x290xf32> to vector<8x266xf32>
    %56 = vector.extract_strided_slice %39 {offsets = [0, 23], sizes = [8, 266], strides = [1, 1]} : vector<8x290xf32> to vector<8x266xf32>
    %57 = vector.extract_strided_slice %39 {offsets = [0, 24], sizes = [8, 266], strides = [1, 1]} : vector<8x290xf32> to vector<8x266xf32>
    %58 = tpu.concatenate %55, %56, %57 in 0 : vector<8x266xf32>, vector<8x266xf32>, vector<8x266xf32> -> vector<24x266xf32>
    %59 = vector.extract_strided_slice %40 {offsets = [0, 48], sizes = [8, 24], strides = [1, 1]} : vector<8x73xf32> to vector<8x24xf32>
    %cst_20 = arith.constant dense<0.000000e+00> : vector<8x266xf32>
    %60 = tpu.matmul %59, %58, %cst_20 {dimension_numbers = #tpu.dot_dimension_numbers<[1], [0], [0], [1], [0, 0, 1, 1], [], []>} : vector<8x24xf32>, vector<24x266xf32>, vector<8x266xf32> -> vector<8x266xf32>
    %61 = arith.addf %54, %60 : vector<8x266xf32>
    %62 = vector.broadcast %41 : vector<8x1xf32> to vector<8x266xf32>
    %63 = arith.addf %61, %62 : vector<8x266xf32>
    %cst_21 = arith.constant 0.00999999977 : f32
    %64 = vector.broadcast %cst_21 : f32 to vector<8x266xf32>
    %65 = arith.mulf %64, %63 : vector<8x266xf32>
    %66 = arith.maximumf %63, %65 : vector<8x266xf32>
    %c0_22 = arith.constant 0 : index
    %c0_23 = arith.constant 0 : index
    %67 = vector.load %arg7[%c0_22, %c0_23] : memref<121x50xbf16, #tpu.memory_space<vmem>>, vector<121x50xbf16>
    %68 = arith.extf %67 : vector<121x50xbf16> to vector<121x50xf32>
    %69 = vector.extract_strided_slice %66 {offsets = [0, 0], sizes = [8, 121], strides = [1, 1]} : vector<8x266xf32> to vector<8x121xf32>
    %cst_24 = arith.constant dense<0.000000e+00> : vector<8x50xf32>
    %70 = tpu.matmul %69, %68, %cst_24 {dimension_numbers = #tpu.dot_dimension_numbers<[1], [0], [0], [1], [0, 0, 1, 1], [], []>} : vector<8x121xf32>, vector<121x50xf32>, vector<8x50xf32> -> vector<8x50xf32>
    %71 = vector.extract_strided_slice %66 {offsets = [0, 145], sizes = [8, 121], strides = [1, 1]} : vector<8x266xf32> to vector<8x121xf32>
    %cst_25 = arith.constant dense<0.000000e+00> : vector<8x50xf32>
    %72 = tpu.matmul %71, %68, %cst_25 {dimension_numbers = #tpu.dot_dimension_numbers<[1], [0], [0], [1], [0, 0, 1, 1], [], []>} : vector<8x121xf32>, vector<121x50xf32>, vector<8x50xf32> -> vector<8x50xf32>
    %73 = tpu.concatenate %70, %72 in 1 : vector<8x50xf32>, vector<8x50xf32> -> vector<8x100xf32>
    %c0_26 = arith.constant 0 : index
    %c0_27 = arith.constant 0 : index
    %74 = vector.load %arg8[%c0_26, %c0_27] : memref<16x73xf32, #tpu.memory_space<vmem>>, vector<16x73xf32>
    %75 = vector.extract_strided_slice %74 {offsets = [0, 72], sizes = [16, 1], strides = [1, 1]} : vector<16x73xf32> to vector<16x1xf32>
    %76 = vector.extract_strided_slice %73 {offsets = [0, 0], sizes = [8, 86], strides = [1, 1]} : vector<8x100xf32> to vector<8x86xf32>
    %77 = vector.extract_strided_slice %73 {offsets = [0, 1], sizes = [8, 86], strides = [1, 1]} : vector<8x100xf32> to vector<8x86xf32>
    %78 = vector.extract_strided_slice %73 {offsets = [0, 2], sizes = [8, 86], strides = [1, 1]} : vector<8x100xf32> to vector<8x86xf32>
    %79 = tpu.concatenate %76, %77, %78 in 0 : vector<8x86xf32>, vector<8x86xf32>, vector<8x86xf32> -> vector<24x86xf32>
    %80 = vector.extract_strided_slice %74 {offsets = [0, 0], sizes = [16, 24], strides = [1, 1]} : vector<16x73xf32> to vector<16x24xf32>
    %cst_28 = arith.constant dense<0.000000e+00> : vector<16x86xf32>
    %81 = tpu.matmul %80, %79, %cst_28 {dimension_numbers = #tpu.dot_dimension_numbers<[1], [0], [0], [1], [0, 0, 1, 1], [], []>} : vector<16x24xf32>, vector<24x86xf32>, vector<16x86xf32> -> vector<16x86xf32>
    %82 = vector.extract_strided_slice %73 {offsets = [0, 6], sizes = [8, 86], strides = [1, 1]} : vector<8x100xf32> to vector<8x86xf32>
    %83 = vector.extract_strided_slice %73 {offsets = [0, 7], sizes = [8, 86], strides = [1, 1]} : vector<8x100xf32> to vector<8x86xf32>
    %84 = vector.extract_strided_slice %73 {offsets = [0, 8], sizes = [8, 86], strides = [1, 1]} : vector<8x100xf32> to vector<8x86xf32>
    %85 = tpu.concatenate %82, %83, %84 in 0 : vector<8x86xf32>, vector<8x86xf32>, vector<8x86xf32> -> vector<24x86xf32>
    %86 = vector.extract_strided_slice %74 {offsets = [0, 24], sizes = [16, 24], strides = [1, 1]} : vector<16x73xf32> to vector<16x24xf32>
    %cst_29 = arith.constant dense<0.000000e+00> : vector<16x86xf32>
    %87 = tpu.matmul %86, %85, %cst_29 {dimension_numbers = #tpu.dot_dimension_numbers<[1], [0], [0], [1], [0, 0, 1, 1], [], []>} : vector<16x24xf32>, vector<24x86xf32>, vector<16x86xf32> -> vector<16x86xf32>
    %88 = arith.addf %81, %87 : vector<16x86xf32>
    %89 = vector.extract_strided_slice %73 {offsets = [0, 12], sizes = [8, 86], strides = [1, 1]} : vector<8x100xf32> to vector<8x86xf32>
    %90 = vector.extract_strided_slice %73 {offsets = [0, 13], sizes = [8, 86], strides = [1, 1]} : vector<8x100xf32> to vector<8x86xf32>
    %91 = vector.extract_strided_slice %73 {offsets = [0, 14], sizes = [8, 86], strides = [1, 1]} : vector<8x100xf32> to vector<8x86xf32>
    %92 = tpu.concatenate %89, %90, %91 in 0 : vector<8x86xf32>, vector<8x86xf32>, vector<8x86xf32> -> vector<24x86xf32>
    %93 = vector.extract_strided_slice %74 {offsets = [0, 48], sizes = [16, 24], strides = [1, 1]} : vector<16x73xf32> to vector<16x24xf32>
    %cst_30 = arith.constant dense<0.000000e+00> : vector<16x86xf32>
    %94 = tpu.matmul %93, %92, %cst_30 {dimension_numbers = #tpu.dot_dimension_numbers<[1], [0], [0], [1], [0, 0, 1, 1], [], []>} : vector<16x24xf32>, vector<24x86xf32>, vector<16x86xf32> -> vector<16x86xf32>
    %95 = arith.addf %88, %94 : vector<16x86xf32>
    %96 = vector.broadcast %75 : vector<16x1xf32> to vector<16x86xf32>
    %97 = arith.addf %95, %96 : vector<16x86xf32>
    %cst_31 = arith.constant 0.00999999977 : f32
    %98 = vector.broadcast %cst_31 : f32 to vector<16x86xf32>
    %99 = arith.mulf %98, %97 : vector<16x86xf32>
    %100 = arith.maximumf %97, %99 : vector<16x86xf32>
    %c0_32 = arith.constant 0 : index
    %c0_33 = arith.constant 0 : index
    %101 = vector.load %arg9[%c0_32, %c0_33] : memref<36x50xbf16, #tpu.memory_space<vmem>>, vector<36x50xbf16>
    %102 = arith.extf %101 : vector<36x50xbf16> to vector<36x50xf32>
    %103 = vector.extract_strided_slice %100 {offsets = [0, 0], sizes = [16, 36], strides = [1, 1]} : vector<16x86xf32> to vector<16x36xf32>
    %cst_34 = arith.constant dense<0.000000e+00> : vector<16x50xf32>
    %104 = tpu.matmul %103, %102, %cst_34 {dimension_numbers = #tpu.dot_dimension_numbers<[1], [0], [0], [1], [0, 0, 1, 1], [], []>} : vector<16x36xf32>, vector<36x50xf32>, vector<16x50xf32> -> vector<16x50xf32>
    %105 = vector.extract_strided_slice %100 {offsets = [0, 50], sizes = [16, 36], strides = [1, 1]} : vector<16x86xf32> to vector<16x36xf32>
    %cst_35 = arith.constant dense<0.000000e+00> : vector<16x50xf32>
    %106 = tpu.matmul %105, %102, %cst_35 {dimension_numbers = #tpu.dot_dimension_numbers<[1], [0], [0], [1], [0, 0, 1, 1], [], []>} : vector<16x36xf32>, vector<36x50xf32>, vector<16x50xf32> -> vector<16x50xf32>
    %107 = tpu.concatenate %104, %106 in 1 : vector<16x50xf32>, vector<16x50xf32> -> vector<16x100xf32>
    %c0_36 = arith.constant 0 : index
    %c0_37 = arith.constant 0 : index
    %108 = vector.load %arg10[%c0_36, %c0_37] : memref<8x145xf32, #tpu.memory_space<vmem>>, vector<8x145xf32>
    %109 = vector.extract_strided_slice %108 {offsets = [0, 144], sizes = [8, 1], strides = [1, 1]} : vector<8x145xf32> to vector<8x1xf32>
    %110 = vector.extract_strided_slice %107 {offsets = [0, 0], sizes = [16, 86], strides = [1, 1]} : vector<16x100xf32> to vector<16x86xf32>
    %111 = vector.extract_strided_slice %107 {offsets = [0, 1], sizes = [16, 86], strides = [1, 1]} : vector<16x100xf32> to vector<16x86xf32>
    %112 = vector.extract_strided_slice %107 {offsets = [0, 2], sizes = [16, 86], strides = [1, 1]} : vector<16x100xf32> to vector<16x86xf32>
    %113 = tpu.concatenate %110, %111, %112 in 0 : vector<16x86xf32>, vector<16x86xf32>, vector<16x86xf32> -> vector<48x86xf32>
    %114 = vector.extract_strided_slice %108 {offsets = [0, 0], sizes = [8, 48], strides = [1, 1]} : vector<8x145xf32> to vector<8x48xf32>
    %cst_38 = arith.constant dense<0.000000e+00> : vector<8x86xf32>
    %115 = tpu.matmul %114, %113, %cst_38 {dimension_numbers = #tpu.dot_dimension_numbers<[1], [0], [0], [1], [0, 0, 1, 1], [], []>} : vector<8x48xf32>, vector<48x86xf32>, vector<8x86xf32> -> vector<8x86xf32>
    %116 = vector.extract_strided_slice %107 {offsets = [0, 6], sizes = [16, 86], strides = [1, 1]} : vector<16x100xf32> to vector<16x86xf32>
    %117 = vector.extract_strided_slice %107 {offsets = [0, 7], sizes = [16, 86], strides = [1, 1]} : vector<16x100xf32> to vector<16x86xf32>
    %118 = vector.extract_strided_slice %107 {offsets = [0, 8], sizes = [16, 86], strides = [1, 1]} : vector<16x100xf32> to vector<16x86xf32>
    %119 = tpu.concatenate %116, %117, %118 in 0 : vector<16x86xf32>, vector<16x86xf32>, vector<16x86xf32> -> vector<48x86xf32>
    %120 = vector.extract_strided_slice %108 {offsets = [0, 48], sizes = [8, 48], strides = [1, 1]} : vector<8x145xf32> to vector<8x48xf32>
    %cst_39 = arith.constant dense<0.000000e+00> : vector<8x86xf32>
    %121 = tpu.matmul %120, %119, %cst_39 {dimension_numbers = #tpu.dot_dimension_numbers<[1], [0], [0], [1], [0, 0, 1, 1], [], []>} : vector<8x48xf32>, vector<48x86xf32>, vector<8x86xf32> -> vector<8x86xf32>
    %122 = arith.addf %115, %121 : vector<8x86xf32>
    %123 = vector.extract_strided_slice %107 {offsets = [0, 12], sizes = [16, 86], strides = [1, 1]} : vector<16x100xf32> to vector<16x86xf32>
    %124 = vector.extract_strided_slice %107 {offsets = [0, 13], sizes = [16, 86], strides = [1, 1]} : vector<16x100xf32> to vector<16x86xf32>
    %125 = vector.extract_strided_slice %107 {offsets = [0, 14], sizes = [16, 86], strides = [1, 1]} : vector<16x100xf32> to vector<16x86xf32>
    %126 = tpu.concatenate %123, %124, %125 in 0 : vector<16x86xf32>, vector<16x86xf32>, vector<16x86xf32> -> vector<48x86xf32>
    %127 = vector.extract_strided_slice %108 {offsets = [0, 96], sizes = [8, 48], strides = [1, 1]} : vector<8x145xf32> to vector<8x48xf32>
    %cst_40 = arith.constant dense<0.000000e+00> : vector<8x86xf32>
    %128 = tpu.matmul %127, %126, %cst_40 {dimension_numbers = #tpu.dot_dimension_numbers<[1], [0], [0], [1], [0, 0, 1, 1], [], []>} : vector<8x48xf32>, vector<48x86xf32>, vector<8x86xf32> -> vector<8x86xf32>
    %129 = arith.addf %122, %128 : vector<8x86xf32>
    %130 = vector.broadcast %109 : vector<8x1xf32> to vector<8x86xf32>
    %131 = arith.addf %129, %130 : vector<8x86xf32>
    %c0_41 = arith.constant 0 : index
    %c0_42 = arith.constant 0 : index
    %132 = vector.load %arg11[%c0_41, %c0_42] : memref<86x128xbf16, #tpu.memory_space<vmem>>, vector<86x128xbf16>
    %133 = arith.extf %132 : vector<86x128xbf16> to vector<86x128xf32>
    %cst_43 = arith.constant dense<0.000000e+00> : vector<8x128xf32>
    %134 = tpu.matmul %131, %133, %cst_43 {dimension_numbers = #tpu.dot_dimension_numbers<[1], [0], [0], [1], [0, 0, 1, 1], [], []>} : vector<8x86xf32>, vector<86x128xf32>, vector<8x128xf32> -> vector<8x128xf32>
    %cst_44 = arith.constant dense<0.000000e+00> : vector<128xf32>
    %135 = vector.multi_reduction <add>, %134, %cst_44 [0] : vector<8x128xf32> to vector<128xf32>
    %136 = vector.shape_cast %135 : vector<128xf32> to vector<1x128xf32>
    %cst_45 = arith.constant 3.125000e-02 : f32
    %137 = vector.broadcast %cst_45 : f32 to vector<1x128xf32>
    %138 = arith.mulf %136, %137 : vector<1x128xf32>
    %139 = vector.shape_cast %138 : vector<1x128xf32> to vector<1x1x128xf32>
    %c0_46 = arith.constant 0 : index
    %c0_47 = arith.constant 0 : index
    %c0_48 = arith.constant 0 : index
    %140 = vector.load %arg12[%c0_46, %c0_47, %c0_48] : memref<1x1x128xf32, #tpu.memory_space<vmem>>, vector<1x1x128xf32>
    tpu.vector_store %arg12[%c0_46, %c0_47, %c0_48], %139 {strides = array<i32>} : memref<1x1x128xf32, #tpu.memory_space<vmem>>, vector<1x1x128xf32>,
    return
  }
  func.func @transform_0(%arg0: i32) -> (i32, i32, i32) {
    %c0_i32 = arith.constant 0 : i32
    %c0_i32_0 = arith.constant 0 : i32
    %c0_i32_1 = arith.constant 0 : i32
    return %arg0, %c0_i32, %c0_i32_0 : i32, i32, i32
  }
  func.func @transform_1(%arg0: i32) -> (i32, i32) {
    %c0_i32 = arith.constant 0 : i32
    %c0_i32_0 = arith.constant 0 : i32
    %c0_i32_1 = arith.constant 0 : i32
    return %c0_i32, %c0_i32_0 : i32, i32
  }
  func.func @transform_2(%arg0: i32) -> (i32, i32) {
    %c0_i32 = arith.constant 0 : i32
    %c0_i32_0 = arith.constant 0 : i32
    %c0_i32_1 = arith.constant 0 : i32
    return %c0_i32, %c0_i32_0 : i32, i32
  }
  func.func @transform_3(%arg0: i32) -> (i32, i32) {
    %c0_i32 = arith.constant 0 : i32
    %c0_i32_0 = arith.constant 0 : i32
    %c0_i32_1 = arith.constant 0 : i32
    return %c0_i32, %c0_i32_0 : i32, i32
  }
  func.func @transform_4(%arg0: i32) -> (i32, i32) {
    %c0_i32 = arith.constant 0 : i32
    %c0_i32_0 = arith.constant 0 : i32
    %c0_i32_1 = arith.constant 0 : i32
    return %c0_i32, %c0_i32_0 : i32, i32
  }
  func.func @transform_5(%arg0: i32) -> (i32, i32) {
    %c0_i32 = arith.constant 0 : i32
    %c0_i32_0 = arith.constant 0 : i32
    %c0_i32_1 = arith.constant 0 : i32
    return %c0_i32, %c0_i32_0 : i32, i32
  }
  func.func @transform_6(%arg0: i32) -> (i32, i32) {
    %c0_i32 = arith.constant 0 : i32
    %c0_i32_0 = arith.constant 0 : i32
    %c0_i32_1 = arith.constant 0 : i32
    return %c0_i32, %c0_i32_0 : i32, i32
  }
  func.func @transform_7(%arg0: i32) -> (i32, i32) {
    %c0_i32 = arith.constant 0 : i32
    %c0_i32_0 = arith.constant 0 : i32
    %c0_i32_1 = arith.constant 0 : i32
    return %c0_i32, %c0_i32_0 : i32, i32
  }
  func.func @transform_8(%arg0: i32) -> (i32, i32) {
    %c0_i32 = arith.constant 0 : i32
    %c0_i32_0 = arith.constant 0 : i32
    %c0_i32_1 = arith.constant 0 : i32
    return %c0_i32, %c0_i32_0 : i32, i32
  }
  func.func @transform_9(%arg0: i32) -> (i32, i32) {
    %c0_i32 = arith.constant 0 : i32
    %c0_i32_0 = arith.constant 0 : i32
    %c0_i32_1 = arith.constant 0 : i32
    return %c0_i32, %c0_i32_0 : i32, i32
  }
  func.func @transform_10(%arg0: i32) -> (i32, i32) {
    %c0_i32 = arith.constant 0 : i32
    %c0_i32_0 = arith.constant 0 : i32
    %c0_i32_1 = arith.constant 0 : i32
    return %c0_i32, %c0_i32_0 : i32, i32
  }
  func.func @transform_11(%arg0: i32) -> (i32, i32, i32) {
    %c0_i32 = arith.constant 0 : i32
    %c0_i32_0 = arith.constant 0 : i32
    %c0_i32_1 = arith.constant 0 : i32
    return %arg0, %c0_i32, %c0_i32_0 : i32, i32, i32
  }
}

</mosaic_0001>

<llo_original>
// kernel: _lambda_.1
$region0: #{_lambda_.1}
  #allocation0 [shape = 'u32[]', space=smem, size = 0x4, offset = 0x4, fixed_abs, tag = 'smem constant byte address 0x4 - core index']
  #allocation1 [shape = 'u32[144,128]{1,0:T(1,128)}', space=vmem, size = 0x12000, scoped, tag = 'internal scratch']
  %s0 = inlined_call_operand.vmem [shape: f32[1,8,884], index: 0, kind: input, shape index: {}]
  %s1 = inlined_call_operand.vmem [shape: f32[8,8], index: 1, kind: input, shape index: {}]
  %s2 = inlined_call_operand.vmem [shape: f32[8,884], index: 2, kind: input, shape index: {}]
  %s3 = inlined_call_operand.vmem [shape: f32[8,73], index: 3, kind: input, shape index: {}]
  %s4 = inlined_call_operand.vmem [shape: bf16[400,145], index: 4, kind: input, shape index: {}]
  %s5 = inlined_call_operand.vmem [shape: f32[8,73], index: 5, kind: input, shape index: {}]
  %s6 = inlined_call_operand.vmem [shape: bf16[121,50], index: 6, kind: input, shape index: {}]
  %s7 = inlined_call_operand.vmem [shape: f32[16,73], index: 7, kind: input, shape index: {}]
  %s8 = inlined_call_operand.vmem [shape: bf16[36,50], index: 8, kind: input, shape index: {}]
  %s9 = inlined_call_operand.vmem [shape: f32[8,145], index: 9, kind: input, shape index: {}]
  %s10 = inlined_call_operand.vmem [shape: bf16[86,128], index: 10, kind: input, shape index: {}]
  %s11 = inlined_call_operand.vmem [shape: f32[1,1,128], index: 11, kind: output, shape index: {}]
  %s12 = sld [smem:[#allocation0]]
  $region54: #{_lambda_.1} parent=0
    _
  %s14 = ssub.s32 1, %s12
  %s15 = scalar_select 0, %s14, %s12
  // Predicated region
  $region2: #{_lambda_.1} parent=0 // pred_check
    _
  $region3: #{_lambda_.1} parent=0 // pred_check_branch
    %17 = sbr.rel (0) target = $region5
  $region4: #{_lambda_.1} parent=0 // pred_region
    _
  $region5: #{_lambda_.1} parent=0 // pred_fallthru
    _
  // Predicated region
  $region6: #{_lambda_.1} parent=0 // pred_check
    _
  $region7: #{_lambda_.1} parent=0 // pred_check_branch
    %19 = sbr.rel (0) target = $region9
  $region8: #{_lambda_.1} parent=0 // pred_region
    _
  $region9: #{_lambda_.1} parent=0 // pred_fallthru
    _
  // Predicated region
  $region10: #{_lambda_.1} parent=0 // pred_check
    _
  $region11: #{_lambda_.1} parent=0 // pred_check_branch
    %21 = sbr.rel (0) target = $region13
  $region12: #{_lambda_.1} parent=0 // pred_region
    _
  $region13: #{_lambda_.1} parent=0 // pred_fallthru
    _
  // Predicated region
  $region14: #{_lambda_.1} parent=0 // pred_check
    _
  $region15: #{_lambda_.1} parent=0 // pred_check_branch
    %23 = sbr.rel (0) target = $region17
  $region16: #{_lambda_.1} parent=0 // pred_region
    _
  $region17: #{_lambda_.1} parent=0 // pred_fallthru
    _
  // Predicated region
  $region18: #{_lambda_.1} parent=0 // pred_check
    _
  $region19: #{_lambda_.1} parent=0 // pred_check_branch
    %25 = sbr.rel (0) target = $region21
  $region20: #{_lambda_.1} parent=0 // pred_region
    _
  $region21: #{_lambda_.1} parent=0 // pred_fallthru
    _
  // Predicated region
  $region22: #{_lambda_.1} parent=0 // pred_check
    _
  $region23: #{_lambda_.1} parent=0 // pred_check_branch
    %27 = sbr.rel (0) target = $region25
  $region24: #{_lambda_.1} parent=0 // pred_region
    _
  $region25: #{_lambda_.1} parent=0 // pred_fallthru
    _
  // Predicated region
  $region26: #{_lambda_.1} parent=0 // pred_check
    _
  $region27: #{_lambda_.1} parent=0 // pred_check_branch
    %29 = sbr.rel (0) target = $region29
  $region28: #{_lambda_.1} parent=0 // pred_region
    _
  $region29: #{_lambda_.1} parent=0 // pred_fallthru
    _
  // Predicated region
  $region30: #{_lambda_.1} parent=0 // pred_check
    _
  $region31: #{_lambda_.1} parent=0 // pred_check_branch
    %31 = sbr.rel (0) target = $region33
  $region32: #{_lambda_.1} parent=0 // pred_region
    _
  $region33: #{_lambda_.1} parent=0 // pred_fallthru
    _
  // Predicated region
  $region34: #{_lambda_.1} parent=0 // pred_check
    _
  $region35: #{_lambda_.1} parent=0 // pred_check_branch
    %33 = sbr.rel (0) target = $region37
  $region36: #{_lambda_.1} parent=0 // pred_region
    _
  $region37: #{_lambda_.1} parent=0 // pred_fallthru
    _
  // Predicated region
  $region38: #{_lambda_.1} parent=0 // pred_check
    _
  $region39: #{_lambda_.1} parent=0 // pred_check_branch
    %35 = sbr.rel (0) target = $region41
  $region40: #{_lambda_.1} parent=0 // pred_region
    _
  $region41: #{_lambda_.1} parent=0 // pred_fallthru
    _
  // Predicated region
  $region42: #{_lambda_.1} parent=0 // pred_check
    _
  $region43: #{_lambda_.1} parent=0 // pred_check_branch
    %37 = sbr.rel (0) target = $region45
  $region44: #{_lambda_.1} parent=0 // pred_region
    _
  $region45: #{_lambda_.1} parent=0 // pred_fallthru
    _
  %v38 = vld [vmem:[%s0] sm:$0xff]
  %v39 = vld [vmem:[%s0 + $0x8] sm:$0xff]
  %v40 = vld [vmem:[%s0 + $0x10] sm:$0xff]
  %v41 = vld [vmem:[%s0 + $0x18] sm:$0xff]
  %v42 = vld [vmem:[%s0 + $0x20] sm:$0xff]
  %v43 = vld [vmem:[%s0 + $0x28] sm:$0xff]
  %v44 = vld [vmem:[%s0 + $0x30] sm:$0xff]
  %v45 = vld [vmem:[%s1] sm:$0xff]
  %v46 = vld [vmem:[%s2] sm:$0xff]
  %v47 = vld [vmem:[%s2 + $0x8] sm:$0xff]
  %v48 = vld [vmem:[%s2 + $0x10] sm:$0xff]
  %v49 = vld [vmem:[%s2 + $0x18] sm:$0xff]
  %v50 = vld [vmem:[%s2 + $0x20] sm:$0xff]
  %v51 = vld [vmem:[%s2 + $0x28] sm:$0xff]
  %v52 = vld [vmem:[%s2 + $0x30] sm:$0xff]
  %vm53 = vcmask 64512
  %v55 = vsel %vm53, %v45, 0
  %57 = vmatprep.subr.mxu0 0.0
  %58 = vmatpush1.msra.mxu0 0.0
  %59 = vmatprep.subr.mxu0 0.0
  %60 = vmatpush1.msra.mxu0 0.0
  %61 = vmatprep.subr.mxu0 0.0
  %62 = vmatpush1.msra.mxu0 0.0
  %63 = vmatprep.subr.mxu0 0.0
  %64 = vmatpush1.msra.mxu0 0.0
  %65 = vmatprep.subr.mxu0 0.0
  %66 = vmatpush1.msra.mxu0 0.0
  %67 = vmatprep.subr.mxu0 0.0
  %68 = vmatpush1.msra.mxu0 0.0
  %69 = vmatprep.subr.mxu0 0.0
  %70 = vmatpush1.msra.mxu0 0.0
  %71 = vmatprep.subr.mxu0 0.0
  %72 = vmatpush1.msra.mxu0 0.0
  %73 = vmatprep.subr.mxu0 0.0
  %74 = vmatpush1.msra.mxu0 0.0
  %75 = vmatprep.subr.mxu0 0.0
  %76 = vmatpush1.msra.mxu0 0.0
  %77 = vmatprep.subr.mxu0 0.0
  %78 = vmatpush1.msra.mxu0 0.0
  %79 = vmatprep.subr.mxu0 0.0
  %80 = vmatpush1.msra.mxu0 0.0
  %81 = vmatprep.subr.mxu0 0.0
  %82 = vmatpush1.msra.mxu0 0.0
  %83 = vmatprep.subr.mxu0 0.0
  %84 = vmatpush1.msra.mxu0 0.0
  %85 = vmatprep.subr.mxu0 0.0
  %86 = vmatpush1.msra.mxu0 0.0
  %87 = vmatprep.subr.mxu0 %v39
  %88 = vmatpush1.msra.mxu0 %v38
  %89 = vmatprep.subr.mxu0 0.0
  %90 = vmatpush2.msra.mxu0 0.0
  %91 = vmatprep.subr.mxu0 0.0
  %92 = vmatpush2.msra.mxu0 0.0
  %93 = vmatprep.subr.mxu0 0.0
  %94 = vmatpush2.msra.mxu0 0.0
  %95 = vmatprep.subr.mxu0 0.0
  %96 = vmatpush2.msra.mxu0 0.0
  %97 = vmatprep.subr.mxu0 0.0
  %98 = vmatpush2.msra.mxu0 0.0
  %99 = vmatprep.subr.mxu0 0.0
  %100 = vmatpush2.msra.mxu0 0.0
  %101 = vmatprep.subr.mxu0 0.0
  %102 = vmatpush2.msra.mxu0 0.0
  %103 = vmatprep.subr.mxu0 0.0
  %104 = vmatpush2.msra.mxu0 0.0
  %105 = vmatprep.subr.mxu0 0.0
  %106 = vmatpush2.msra.mxu0 0.0
  %107 = vmatprep.subr.mxu0 0.0
  %108 = vmatpush2.msra.mxu0 0.0
  %109 = vmatprep.subr.mxu0 0.0
  %110 = vmatpush2.msra.mxu0 0.0
  %111 = vmatprep.subr.mxu0 0.0
  %112 = vmatpush2.msra.mxu0 0.0
  %113 = vmatprep.subr.mxu0 0.0
  %114 = vmatpush2.msra.mxu0 0.0
  %115 = vmatprep.subr.mxu0 0.0
  %116 = vmatpush2.msra.mxu0 0.0
  %117 = vmatprep.subr.mxu0 0.0
  %118 = vmatpush2.msra.mxu0 0.0
  %119 = vmatprep.subr.mxu0 0.0
  %120 = vmatpush2.msra.mxu0 0.0
  %121 = vmatprep.mubr.f32.mxu0 0.0
  %122 = vmatmul.mubr.f32.gmra.mxu0 %v55
  %v123 = vpop.f32.mrf.mxu0
  %v124 = vadd.f32 %v46, %v123
  %v125 = vpop.f32.mrf.mxu0
  %v126 = vadd.f32 %v47, %v125
  %127 = vdwg.mxu0
  %128 = vmatprep.subr.mxu0 0.0
  %129 = vmatpush1.msra.mxu0 0.0
  %130 = vmatprep.subr.mxu0 0.0
  %131 = vmatpush1.msra.mxu0 0.0
  %132 = vmatprep.subr.mxu0 0.0
  %133 = vmatpush1.msra.mxu0 0.0
  %134 = vmatprep.subr.mxu0 0.0
  %135 = vmatpush1.msra.mxu0 0.0
  %136 = vmatprep.subr.mxu0 0.0
  %137 = vmatpush1.msra.mxu0 0.0
  %138 = vmatprep.subr.mxu0 0.0
  %139 = vmatpush1.msra.mxu0 0.0
  %140 = vmatprep.subr.mxu0 0.0
  %141 = vmatpush1.msra.mxu0 0.0
  %142 = vmatprep.subr.mxu0 0.0
  %143 = vmatpush1.msra.mxu0 0.0
  %144 = vmatprep.subr.mxu0 0.0
  %145 = vmatpush1.msra.mxu0 0.0
  %146 = vmatprep.subr.mxu0 0.0
  %147 = vmatpush1.msra.mxu0 0.0
  %148 = vmatprep.subr.mxu0 0.0
  %149 = vmatpush1.msra.mxu0 0.0
  %150 = vmatprep.subr.mxu0 0.0
  %151 = vmatpush1.msra.mxu0 0.0
  %152 = vmatprep.subr.mxu0 0.0
  %153 = vmatpush1.msra.mxu0 0.0
  %154 = vmatprep.subr.mxu0 0.0
  %155 = vmatpush1.msra.mxu0 0.0
  %156 = vmatprep.subr.mxu0 0.0
  %157 = vmatpush1.msra.mxu0 0.0
  %158 = vmatprep.subr.mxu0 %v41
  %159 = vmatpush1.msra.mxu0 %v40
  %160 = vmatprep.subr.mxu0 0.0
  %161 = vmatpush2.msra.mxu0 0.0
  %162 = vmatprep.subr.mxu0 0.0
  %163 = vmatpush2.msra.mxu0 0.0
  %164 = vmatprep.subr.mxu0 0.0
  %165 = vmatpush2.msra.mxu0 0.0
  %166 = vmatprep.subr.mxu0 0.0
  %167 = vmatpush2.msra.mxu0 0.0
  %168 = vmatprep.subr.mxu0 0.0
  %169 = vmatpush2.msra.mxu0 0.0
  %170 = vmatprep.subr.mxu0 0.0
  %171 = vmatpush2.msra.mxu0 0.0
  %172 = vmatprep.subr.mxu0 0.0
  %173 = vmatpush2.msra.mxu0 0.0
  %174 = vmatprep.subr.mxu0 0.0
  %175 = vmatpush2.msra.mxu0 0.0
  %176 = vmatprep.subr.mxu0 0.0
  %177 = vmatpush2.msra.mxu0 0.0
  %178 = vmatprep.subr.mxu0 0.0
  %179 = vmatpush2.msra.mxu0 0.0
  %180 = vmatprep.subr.mxu0 0.0
  %181 = vmatpush2.msra.mxu0 0.0
  %182 = vmatprep.subr.mxu0 0.0
  %183 = vmatpush2.msra.mxu0 0.0
  %184 = vmatprep.subr.mxu0 0.0
  %185 = vmatpush2.msra.mxu0 0.0
  %186 = vmatprep.subr.mxu0 0.0
  %187 = vmatpush2.msra.mxu0 0.0
  %188 = vmatprep.subr.mxu0 0.0
  %189 = vmatpush2.msra.mxu0 0.0
  %190 = vmatprep.subr.mxu0 0.0
  %191 = vmatpush2.msra.mxu0 0.0
  %192 = vmatprep.mubr.f32.mxu0 0.0
  %193 = vmatmul.mubr.f32.gmra.mxu0 %v55
  %v194 = vpop.f32.mrf.mxu0
  %v195 = vadd.f32 %v48, %v194
  %v196 = vpop.f32.mrf.mxu0
  %v197 = vadd.f32 %v49, %v196
  %198 = vdwg.mxu0
  %199 = vmatprep.subr.mxu0 0.0
  %200 = vmatpush1.msra.mxu0 0.0
  %201 = vmatprep.subr.mxu0 0.0
  %202 = vmatpush1.msra.mxu0 0.0
  %203 = vmatprep.subr.mxu0 0.0
  %204 = vmatpush1.msra.mxu0 0.0
  %205 = vmatprep.subr.mxu0 0.0
  %206 = vmatpush1.msra.mxu0 0.0
  %207 = vmatprep.subr.mxu0 0.0
  %208 = vmatpush1.msra.mxu0 0.0
  %209 = vmatprep.subr.mxu0 0.0
  %210 = vmatpush1.msra.mxu0 0.0
  %211 = vmatprep.subr.mxu0 0.0
  %212 = vmatpush1.msra.mxu0 0.0
  %213 = vmatprep.subr.mxu0 0.0
  %214 = vmatpush1.msra.mxu0 0.0
  %215 = vmatprep.subr.mxu0 0.0
  %216 = vmatpush1.msra.mxu0 0.0
  %217 = vmatprep.subr.mxu0 0.0
  %218 = vmatpush1.msra.mxu0 0.0
  %219 = vmatprep.subr.mxu0 0.0
  %220 = vmatpush1.msra.mxu0 0.0
  %221 = vmatprep.subr.mxu0 0.0
  %222 = vmatpush1.msra.mxu0 0.0
  %223 = vmatprep.subr.mxu0 0.0
  %224 = vmatpush1.msra.mxu0 0.0
  %225 = vmatprep.subr.mxu0 0.0
  %226 = vmatpush1.msra.mxu0 0.0
  %227 = vmatprep.subr.mxu0 0.0
  %228 = vmatpush1.msra.mxu0 0.0
  %229 = vmatprep.subr.mxu0 %v43
  %230 = vmatpush1.msra.mxu0 %v42
  %231 = vmatprep.subr.mxu0 0.0
  %232 = vmatpush2.msra.mxu0 0.0
  %233 = vmatprep.subr.mxu0 0.0
  %234 = vmatpush2.msra.mxu0 0.0
  %235 = vmatprep.subr.mxu0 0.0
  %236 = vmatpush2.msra.mxu0 0.0
  %237 = vmatprep.subr.mxu0 0.0
  %238 = vmatpush2.msra.mxu0 0.0
  %239 = vmatprep.subr.mxu0 0.0
  %240 = vmatpush2.msra.mxu0 0.0
  %241 = vmatprep.subr.mxu0 0.0
  %242 = vmatpush2.msra.mxu0 0.0
  %243 = vmatprep.subr.mxu0 0.0
  %244 = vmatpush2.msra.mxu0 0.0
  %245 = vmatprep.subr.mxu0 0.0
  %246 = vmatpush2.msra.mxu0 0.0
  %247 = vmatprep.subr.mxu0 0.0
  %248 = vmatpush2.msra.mxu0 0.0
  %249 = vmatprep.subr.mxu0 0.0
  %250 = vmatpush2.msra.mxu0 0.0
  %251 = vmatprep.subr.mxu0 0.0
  %252 = vmatpush2.msra.mxu0 0.0
  %253 = vmatprep.subr.mxu0 0.0
  %254 = vmatpush2.msra.mxu0 0.0
  %255 = vmatprep.subr.mxu0 0.0
  %256 = vmatpush2.msra.mxu0 0.0
  %257 = vmatprep.subr.mxu0 0.0
  %258 = vmatpush2.msra.mxu0 0.0
  %259 = vmatprep.subr.mxu0 0.0
  %260 = vmatpush2.msra.mxu0 0.0
  %261 = vmatprep.subr.mxu0 0.0
  %262 = vmatpush2.msra.mxu0 0.0
  %263 = vmatprep.mubr.f32.mxu0 0.0
  %264 = vmatmul.mubr.f32.gmra.mxu0 %v55
  %v265 = vpop.f32.mrf.mxu0
  %v266 = vadd.f32 %v50, %v265
  %v267 = vpop.f32.mrf.mxu0
  %v268 = vadd.f32 %v51, %v267
  %269 = vdwg.mxu0
  %270 = vmatprep.subr.mxu0 0.0
  %271 = vmatpush1.msra.mxu0 0.0
  %272 = vmatprep.subr.mxu0 0.0
  %273 = vmatpush1.msra.mxu0 0.0
  %274 = vmatprep.subr.mxu0 0.0
  %275 = vmatpush1.msra.mxu0 0.0
  %276 = vmatprep.subr.mxu0 0.0
  %277 = vmatpush1.msra.mxu0 0.0
  %278 = vmatprep.subr.mxu0 0.0
  %279 = vmatpush1.msra.mxu0 0.0
  %280 = vmatprep.subr.mxu0 0.0
  %281 = vmatpush1.msra.mxu0 0.0
  %282 = vmatprep.subr.mxu0 0.0
  %283 = vmatpush1.msra.mxu0 0.0
  %284 = vmatprep.subr.mxu0 0.0
  %285 = vmatpush1.msra.mxu0 0.0
  %286 = vmatprep.subr.mxu0 0.0
  %287 = vmatpush1.msra.mxu0 0.0
  %288 = vmatprep.subr.mxu0 0.0
  %289 = vmatpush1.msra.mxu0 0.0
  %290 = vmatprep.subr.mxu0 0.0
  %291 = vmatpush1.msra.mxu0 0.0
  %292 = vmatprep.subr.mxu0 0.0
  %293 = vmatpush1.msra.mxu0 0.0
  %294 = vmatprep.subr.mxu0 0.0
  %295 = vmatpush1.msra.mxu0 0.0
  %296 = vmatprep.subr.mxu0 0.0
  %297 = vmatpush1.msra.mxu0 0.0
  %298 = vmatprep.subr.mxu0 0.0
  %299 = vmatpush1.msra.mxu0 0.0
  %300 = vmatprep.subr.mxu0 0.0
  %301 = vmatpush1.msra.mxu0 %v44
  %302 = vmatprep.subr.mxu0 0.0
  %303 = vmatpush2.msra.mxu0 0.0
  %304 = vmatprep.subr.mxu0 0.0
  %305 = vmatpush2.msra.mxu0 0.0
  %306 = vmatprep.subr.mxu0 0.0
  %307 = vmatpush2.msra.mxu0 0.0
  %308 = vmatprep.subr.mxu0 0.0
  %309 = vmatpush2.msra.mxu0 0.0
  %310 = vmatprep.subr.mxu0 0.0
  %311 = vmatpush2.msra.mxu0 0.0
  %312 = vmatprep.subr.mxu0 0.0
  %313 = vmatpush2.msra.mxu0 0.0
  %314 = vmatprep.subr.mxu0 0.0
  %315 = vmatpush2.msra.mxu0 0.0
  %316 = vmatprep.subr.mxu0 0.0
  %317 = vmatpush2.msra.mxu0 0.0
  %318 = vmatprep.subr.mxu0 0.0
  %319 = vmatpush2.msra.mxu0 0.0
  %320 = vmatprep.subr.mxu0 0.0
  %321 = vmatpush2.msra.mxu0 0.0
  %322 = vmatprep.subr.mxu0 0.0
  %323 = vmatpush2.msra.mxu0 0.0
  %324 = vmatprep.subr.mxu0 0.0
  %325 = vmatpush2.msra.mxu0 0.0
  %326 = vmatprep.subr.mxu0 0.0
  %327 = vmatpush2.msra.mxu0 0.0
  %328 = vmatprep.subr.mxu0 0.0
  %329 = vmatpush2.msra.mxu0 0.0
  %330 = vmatprep.subr.mxu0 0.0
  %331 = vmatpush2.msra.mxu0 0.0
  %332 = vmatprep.subr.mxu0 0.0
  %333 = vmatpush2.msra.mxu0 0.0
  %334 = vmatprep.mubr.f32.mxu0 0.0
  %335 = vmatmul.mubr.f32.gmra.mxu0 %v55
  %v336 = vpop.f32.mrf.mxu0
  %v337 = vadd.f32 %v52, %v336
  %v338 = vpop.f32.mrf.mxu0
  %339 = vdwg.mxu0
  %v340 = vld [vmem:[%s3] sm:$0xff]
  %348 = vrot.lane.b32.xlu0 %v124, 127
  %v349 = vpop.permute.xlu0 %348
  %350 = vrot.lane.b32.xlu0 %v126, 127
  %v351 = vpop.permute.xlu0 %350
  %352 = vrot.lane.b32.xlu0 %v195, 127
  %v353 = vpop.permute.xlu0 %352
  %354 = vrot.lane.b32.xlu0 %v197, 127
  %v355 = vpop.permute.xlu0 %354
  %356 = vrot.lane.b32.xlu0 %v266, 127
  %v357 = vpop.permute.xlu0 %356
  %358 = vrot.lane.b32.xlu0 %v268, 127
  %v359 = vpop.permute.xlu0 %358
  %360 = vrot.lane.b32.xlu0 %v337, 127
  %v361 = vpop.permute.xlu0 %360
  %vm362 = vcmask 1039360
  %v363 = vsel %vm362, %v349, %v351
  %v364 = vsel %vm362, %v351, %v353
  %v365 = vsel %vm362, %v353, %v355
  %v366 = vsel %vm362, %v355, %v357
  %v367 = vsel %vm362, %v357, %v359
  %v368 = vsel %vm362, %v359, %v361
  %376 = vrot.lane.b32.xlu0 %v124, 126
  %v377 = vpop.permute.xlu0 %376
  %378 = vrot.lane.b32.xlu0 %v126, 126
  %v379 = vpop.permute.xlu0 %378
  %380 = vrot.lane.b32.xlu0 %v195, 126
  %v381 = vpop.permute.xlu0 %380
  %382 = vrot.lane.b32.xlu0 %v197, 126
  %v383 = vpop.permute.xlu0 %382
  %384 = vrot.lane.b32.xlu0 %v266, 126
  %v385 = vpop.permute.xlu0 %384
  %386 = vrot.lane.b32.xlu0 %v268, 126
  %v387 = vpop.permute.xlu0 %386
  %388 = vrot.lane.b32.xlu0 %v337, 126
  %v389 = vpop.permute.xlu0 %388
  %vm390 = vcmask 1031168
  %v391 = vsel %vm390, %v377, %v379
  %v392 = vsel %vm390, %v379, %v381
  %v393 = vsel %vm390, %v381, %v383
  %v394 = vsel %vm390, %v383, %v385
  %v395 = vsel %vm390, %v385, %v387
  %v396 = vsel %vm390, %v387, %v389
  %405 = vrot.lane.b32.xlu0 %v340, 104
  %v406 = vpop.permute.xlu0 %405
  %407 = vrot.lane.b32.xlu0 %v124, 108
  %v408 = vpop.permute.xlu0 %407
  %409 = vrot.lane.b32.xlu0 %v126, 108
  %v410 = vpop.permute.xlu0 %409
  %411 = vrot.lane.b32.xlu0 %v195, 108
  %v412 = vpop.permute.xlu0 %411
  %413 = vrot.lane.b32.xlu0 %v197, 108
  %v414 = vpop.permute.xlu0 %413
  %415 = vrot.lane.b32.xlu0 %v266, 108
  %v416 = vpop.permute.xlu0 %415
  %417 = vrot.lane.b32.xlu0 %v268, 108
  %v418 = vpop.permute.xlu0 %417
  %419 = vrot.lane.b32.xlu0 %v337, 108
  %v420 = vpop.permute.xlu0 %419
  %421 = vrot.lane.b32.xlu0 %v363, 108
  %v422 = vpop.permute.xlu0 %421
  %423 = vrot.lane.b32.xlu0 %v364, 108
  %v424 = vpop.permute.xlu0 %423
  %425 = vrot.lane.b32.xlu0 %v365, 108
  %v426 = vpop.permute.xlu0 %425
  %427 = vrot.lane.b32.xlu0 %v366, 108
  %v428 = vpop.permute.xlu0 %427
  %429 = vrot.lane.b32.xlu0 %v367, 108
  %v430 = vpop.permute.xlu0 %429
  %431 = vrot.lane.b32.xlu0 %v368, 108
  %v432 = vpop.permute.xlu0 %431
  %433 = vrot.lane.b32.xlu0 %v361, 108
  %v434 = vpop.permute.xlu0 %433
  %435 = vrot.lane.b32.xlu0 %v391, 108
  %v436 = vpop.permute.xlu0 %435
  %437 = vrot.lane.b32.xlu0 %v392, 108
  %v438 = vpop.permute.xlu0 %437
  %439 = vrot.lane.b32.xlu0 %v393, 108
  %v440 = vpop.permute.xlu0 %439
  %441 = vrot.lane.b32.xlu0 %v394, 108
  %v442 = vpop.permute.xlu0 %441
  %443 = vrot.lane.b32.xlu0 %v395, 108
  %v444 = vpop.permute.xlu0 %443
  %445 = vrot.lane.b32.xlu0 %v396, 108
  %v446 = vpop.permute.xlu0 %445
  %447 = vrot.lane.b32.xlu0 %v389, 108
  %v448 = vpop.permute.xlu0 %447
  %vm449 = vcmask 883712
  %v450 = vsel %vm449, %v408, %v410
  %v451 = vsel %vm449, %v410, %v412
  %v452 = vsel %vm449, %v412, %v414
  %v453 = vsel %vm449, %v414, %v416
  %v454 = vsel %vm449, %v416, %v418
  %v455 = vsel %vm449, %v418, %v420
  %v456 = vsel %vm449, %v422, %v424
  %v457 = vsel %vm449, %v424, %v426
  %v458 = vsel %vm449, %v426, %v428
  %v459 = vsel %vm449, %v428, %v430
  %v460 = vsel %vm449, %v430, %v432
  %v461 = vsel %vm449, %v432, %v434
  %v462 = vsel %vm449, %v436, %v438
  %v463 = vsel %vm449, %v438, %v440
  %v464 = vsel %vm449, %v440, %v442
  %v465 = vsel %vm449, %v442, %v444
  %v466 = vsel %vm449, %v444, %v446
  %v467 = vsel %vm449, %v446, %v448
  %vm489 = vcmask 195584
  %v490 = vsel %vm489, %v406, 0
  %492 = vmatprep.subr.mxu0 0.0
  %493 = vmatpush1.msra.mxu0 0.0
  %494 = vmatprep.subr.mxu0 0.0
  %495 = vmatpush1.msra.mxu0 0.0
  %496 = vmatprep.subr.mxu0 0.0
  %497 = vmatpush1.msra.mxu0 0.0
  %498 = vmatprep.subr.mxu0 0.0
  %499 = vmatpush1.msra.mxu0 0.0
  %500 = vmatprep.subr.mxu0 0.0
  %501 = vmatpush1.msra.mxu0 0.0
  %502 = vmatprep.subr.mxu0 0.0
  %503 = vmatpush1.msra.mxu0 0.0
  %504 = vmatprep.subr.mxu0 0.0
  %505 = vmatpush1.msra.mxu0 0.0
  %506 = vmatprep.subr.mxu0 0.0
  %507 = vmatpush1.msra.mxu0 0.0
  %508 = vmatprep.subr.mxu0 0.0
  %509 = vmatpush1.msra.mxu0 0.0
  %510 = vmatprep.subr.mxu0 0.0
  %511 = vmatpush1.msra.mxu0 0.0
  %512 = vmatprep.subr.mxu0 0.0
  %513 = vmatpush1.msra.mxu0 0.0
  %514 = vmatprep.subr.mxu0 0.0
  %515 = vmatpush1.msra.mxu0 0.0
  %516 = vmatprep.subr.mxu0 0.0
  %517 = vmatpush1.msra.mxu0 0.0
  %518 = vmatprep.subr.mxu0 %v463
  %519 = vmatpush1.msra.mxu0 %v462
  %520 = vmatprep.subr.mxu0 %v457
  %521 = vmatpush1.msra.mxu0 %v456
  %522 = vmatprep.subr.mxu0 %v451
  %523 = vmatpush1.msra.mxu0 %v450
  %524 = vmatprep.subr.mxu0 0.0
  %525 = vmatpush2.msra.mxu0 0.0
  %526 = vmatprep.subr.mxu0 0.0
  %527 = vmatpush2.msra.mxu0 0.0
  %528 = vmatprep.subr.mxu0 0.0
  %529 = vmatpush2.msra.mxu0 0.0
  %530 = vmatprep.subr.mxu0 0.0
  %531 = vmatpush2.msra.mxu0 0.0
  %532 = vmatprep.subr.mxu0 0.0
  %533 = vmatpush2.msra.mxu0 0.0
  %534 = vmatprep.subr.mxu0 0.0
  %535 = vmatpush2.msra.mxu0 0.0
  %536 = vmatprep.subr.mxu0 0.0
  %537 = vmatpush2.msra.mxu0 0.0
  %538 = vmatprep.subr.mxu0 0.0
  %539 = vmatpush2.msra.mxu0 0.0
  %540 = vmatprep.subr.mxu0 0.0
  %541 = vmatpush2.msra.mxu0 0.0
  %542 = vmatprep.subr.mxu0 0.0
  %543 = vmatpush2.msra.mxu0 0.0
  %544 = vmatprep.subr.mxu0 0.0
  %545 = vmatpush2.msra.mxu0 0.0
  %546 = vmatprep.subr.mxu0 0.0
  %547 = vmatpush2.msra.mxu0 0.0
  %548 = vmatprep.subr.mxu0 0.0
  %549 = vmatpush2.msra.mxu0 0.0
  %550 = vmatprep.subr.mxu0 0.0
  %551 = vmatpush2.msra.mxu0 0.0
  %552 = vmatprep.subr.mxu0 0.0
  %553 = vmatpush2.msra.mxu0 0.0
  %554 = vmatprep.subr.mxu0 0.0
  %555 = vmatpush2.msra.mxu0 0.0
  %556 = vmatprep.mubr.f32.mxu0 0.0
  %557 = vmatmul.mubr.f32.gmra.mxu0 %v490
  %v558 = vpop.f32.mrf.mxu0
  %v559 = vadd.f32 0.0, %v558
  %v560 = vpop.f32.mrf.mxu0
  %v561 = vadd.f32 0.0, %v560
  %562 = vdwg.mxu0
  %563 = vmatprep.subr.mxu0 0.0
  %564 = vmatpush1.msra.mxu0 0.0
  %565 = vmatprep.subr.mxu0 0.0
  %566 = vmatpush1.msra.mxu0 0.0
  %567 = vmatprep.subr.mxu0 0.0
  %568 = vmatpush1.msra.mxu0 0.0
  %569 = vmatprep.subr.mxu0 0.0
  %570 = vmatpush1.msra.mxu0 0.0
  %571 = vmatprep.subr.mxu0 0.0
  %572 = vmatpush1.msra.mxu0 0.0
  %573 = vmatprep.subr.mxu0 0.0
  %574 = vmatpush1.msra.mxu0 0.0
  %575 = vmatprep.subr.mxu0 0.0
  %576 = vmatpush1.msra.mxu0 0.0
  %577 = vmatprep.subr.mxu0 0.0
  %578 = vmatpush1.msra.mxu0 0.0
  %579 = vmatprep.subr.mxu0 0.0
  %580 = vmatpush1.msra.mxu0 0.0
  %581 = vmatprep.subr.mxu0 0.0
  %582 = vmatpush1.msra.mxu0 0.0
  %583 = vmatprep.subr.mxu0 0.0
  %584 = vmatpush1.msra.mxu0 0.0
  %585 = vmatprep.subr.mxu0 0.0
  %586 = vmatpush1.msra.mxu0 0.0
  %587 = vmatprep.subr.mxu0 0.0
  %588 = vmatpush1.msra.mxu0 0.0
  %589 = vmatprep.subr.mxu0 %v465
  %590 = vmatpush1.msra.mxu0 %v464
  %591 = vmatprep.subr.mxu0 %v459
  %592 = vmatpush1.msra.mxu0 %v458
  %593 = vmatprep.subr.mxu0 %v453
  %594 = vmatpush1.msra.mxu0 %v452
  %595 = vmatprep.subr.mxu0 0.0
  %596 = vmatpush2.msra.mxu0 0.0
  %597 = vmatprep.subr.mxu0 0.0
  %598 = vmatpush2.msra.mxu0 0.0
  %599 = vmatprep.subr.mxu0 0.0
  %600 = vmatpush2.msra.mxu0 0.0
  %601 = vmatprep.subr.mxu0 0.0
  %602 = vmatpush2.msra.mxu0 0.0
  %603 = vmatprep.subr.mxu0 0.0
  %604 = vmatpush2.msra.mxu0 0.0
  %605 = vmatprep.subr.mxu0 0.0
  %606 = vmatpush2.msra.mxu0 0.0
  %607 = vmatprep.subr.mxu0 0.0
  %608 = vmatpush2.msra.mxu0 0.0
  %609 = vmatprep.subr.mxu0 0.0
  %610 = vmatpush2.msra.mxu0 0.0
  %611 = vmatprep.subr.mxu0 0.0
  %612 = vmatpush2.msra.mxu0 0.0
  %613 = vmatprep.subr.mxu0 0.0
  %614 = vmatpush2.msra.mxu0 0.0
  %615 = vmatprep.subr.mxu0 0.0
  %616 = vmatpush2.msra.mxu0 0.0
  %617 = vmatprep.subr.mxu0 0.0
  %618 = vmatpush2.msra.mxu0 0.0
  %619 = vmatprep.subr.mxu0 0.0
  %620 = vmatpush2.msra.mxu0 0.0
  %621 = vmatprep.subr.mxu0 0.0
  %622 = vmatpush2.msra.mxu0 0.0
  %623 = vmatprep.subr.mxu0 0.0
  %624 = vmatpush2.msra.mxu0 0.0
  %625 = vmatprep.subr.mxu0 0.0
  %626 = vmatpush2.msra.mxu0 0.0
  %627 = vmatprep.mubr.f32.mxu0 0.0
  %628 = vmatmul.mubr.f32.gmra.mxu0 %v490
  %v629 = vpop.f32.mrf.mxu0
  %v630 = vadd.f32 0.0, %v629
  %v631 = vpop.f32.mrf.mxu0
  %v632 = vadd.f32 0.0, %v631
  %633 = vdwg.mxu0
  %634 = vmatprep.subr.mxu0 0.0
  %635 = vmatpush1.msra.mxu0 0.0
  %636 = vmatprep.subr.mxu0 0.0
  %637 = vmatpush1.msra.mxu0 0.0
  %638 = vmatprep.subr.mxu0 0.0
  %639 = vmatpush1.msra.mxu0 0.0
  %640 = vmatprep.subr.mxu0 0.0
  %641 = vmatpush1.msra.mxu0 0.0
  %642 = vmatprep.subr.mxu0 0.0
  %643 = vmatpush1.msra.mxu0 0.0
  %644 = vmatprep.subr.mxu0 0.0
  %645 = vmatpush1.msra.mxu0 0.0
  %646 = vmatprep.subr.mxu0 0.0
  %647 = vmatpush1.msra.mxu0 0.0
  %648 = vmatprep.subr.mxu0 0.0
  %649 = vmatpush1.msra.mxu0 0.0
  %650 = vmatprep.subr.mxu0 0.0
  %651 = vmatpush1.msra.mxu0 0.0
  %652 = vmatprep.subr.mxu0 0.0
  %653 = vmatpush1.msra.mxu0 0.0
  %654 = vmatprep.subr.mxu0 0.0
  %655 = vmatpush1.msra.mxu0 0.0
  %656 = vmatprep.subr.mxu0 0.0
  %657 = vmatpush1.msra.mxu0 0.0
  %658 = vmatprep.subr.mxu0 0.0
  %659 = vmatpush1.msra.mxu0 0.0
  %660 = vmatprep.subr.mxu0 %v467
  %661 = vmatpush1.msra.mxu0 %v466
  %662 = vmatprep.subr.mxu0 %v461
  %663 = vmatpush1.msra.mxu0 %v460
  %664 = vmatprep.subr.mxu0 %v455
  %665 = vmatpush1.msra.mxu0 %v454
  %666 = vmatprep.subr.mxu0 0.0
  %667 = vmatpush2.msra.mxu0 0.0
  %668 = vmatprep.subr.mxu0 0.0
  %669 = vmatpush2.msra.mxu0 0.0
  %670 = vmatprep.subr.mxu0 0.0
  %671 = vmatpush2.msra.mxu0 0.0
  %672 = vmatprep.subr.mxu0 0.0
  %673 = vmatpush2.msra.mxu0 0.0
  %674 = vmatprep.subr.mxu0 0.0
  %675 = vmatpush2.msra.mxu0 0.0
  %676 = vmatprep.subr.mxu0 0.0
  %677 = vmatpush2.msra.mxu0 0.0
  %678 = vmatprep.subr.mxu0 0.0
  %679 = vmatpush2.msra.mxu0 0.0
  %680 = vmatprep.subr.mxu0 0.0
  %681 = vmatpush2.msra.mxu0 0.0
  %682 = vmatprep.subr.mxu0 0.0
  %683 = vmatpush2.msra.mxu0 0.0
  %684 = vmatprep.subr.mxu0 0.0
  %685 = vmatpush2.msra.mxu0 0.0
  %686 = vmatprep.subr.mxu0 0.0
  %687 = vmatpush2.msra.mxu0 0.0
  %688 = vmatprep.subr.mxu0 0.0
  %689 = vmatpush2.msra.mxu0 0.0
  %690 = vmatprep.subr.mxu0 0.0
  %691 = vmatpush2.msra.mxu0 0.0
  %692 = vmatprep.subr.mxu0 0.0
  %693 = vmatpush2.msra.mxu0 0.0
  %694 = vmatprep.subr.mxu0 0.0
  %695 = vmatpush2.msra.mxu0 0.0
  %696 = vmatprep.subr.mxu0 0.0
  %697 = vmatpush2.msra.mxu0 0.0
  %698 = vmatprep.mubr.f32.mxu0 0.0
  %699 = vmatmul.mubr.f32.gmra.mxu0 %v490
  %v700 = vpop.f32.mrf.mxu0
  %v701 = vadd.f32 0.0, %v700
  %v702 = vpop.f32.mrf.mxu0
  %v703 = vadd.f32 0.0, %v702
  %704 = vdwg.mxu0
  %705 = vmatprep.subr.mxu0 0.0
  %706 = vmatpush1.msra.mxu0 0.0
  %707 = vmatprep.subr.mxu0 0.0
  %708 = vmatpush1.msra.mxu0 0.0
  %709 = vmatprep.subr.mxu0 0.0
  %710 = vmatpush1.msra.mxu0 0.0
  %711 = vmatprep.subr.mxu0 0.0
  %712 = vmatpush1.msra.mxu0 0.0
  %713 = vmatprep.subr.mxu0 0.0
  %714 = vmatpush1.msra.mxu0 0.0
  %715 = vmatprep.subr.mxu0 0.0
  %716 = vmatpush1.msra.mxu0 0.0
  %717 = vmatprep.subr.mxu0 0.0
  %718 = vmatpush1.msra.mxu0 0.0
  %719 = vmatprep.subr.mxu0 0.0
  %720 = vmatpush1.msra.mxu0 0.0
  %721 = vmatprep.subr.mxu0 0.0
  %722 = vmatpush1.msra.mxu0 0.0
  %723 = vmatprep.subr.mxu0 0.0
  %724 = vmatpush1.msra.mxu0 0.0
  %725 = vmatprep.subr.mxu0 0.0
  %726 = vmatpush1.msra.mxu0 0.0
  %727 = vmatprep.subr.mxu0 0.0
  %728 = vmatpush1.msra.mxu0 0.0
  %729 = vmatprep.subr.mxu0 0.0
  %730 = vmatpush1.msra.mxu0 0.0
  %731 = vmatprep.subr.mxu0 0.0
  %732 = vmatpush1.msra.mxu0 %v448
  %733 = vmatprep.subr.mxu0 0.0
  %734 = vmatpush1.msra.mxu0 %v434
  %735 = vmatprep.subr.mxu0 0.0
  %736 = vmatpush1.msra.mxu0 %v420
  %737 = vmatprep.subr.mxu0 0.0
  %738 = vmatpush2.msra.mxu0 0.0
  %739 = vmatprep.subr.mxu0 0.0
  %740 = vmatpush2.msra.mxu0 0.0
  %741 = vmatprep.subr.mxu0 0.0
  %742 = vmatpush2.msra.mxu0 0.0
  %743 = vmatprep.subr.mxu0 0.0
  %744 = vmatpush2.msra.mxu0 0.0
  %745 = vmatprep.subr.mxu0 0.0
  %746 = vmatpush2.msra.mxu0 0.0
  %747 = vmatprep.subr.mxu0 0.0
  %748 = vmatpush2.msra.mxu0 0.0
  %749 = vmatprep.subr.mxu0 0.0
  %750 = vmatpush2.msra.mxu0 0.0
  %751 = vmatprep.subr.mxu0 0.0
  %752 = vmatpush2.msra.mxu0 0.0
  %753 = vmatprep.subr.mxu0 0.0
  %754 = vmatpush2.msra.mxu0 0.0
  %755 = vmatprep.subr.mxu0 0.0
  %756 = vmatpush2.msra.mxu0 0.0
  %757 = vmatprep.subr.mxu0 0.0
  %758 = vmatpush2.msra.mxu0 0.0
  %759 = vmatprep.subr.mxu0 0.0
  %760 = vmatpush2.msra.mxu0 0.0
  %761 = vmatprep.subr.mxu0 0.0
  %762 = vmatpush2.msra.mxu0 0.0
  %763 = vmatprep.subr.mxu0 0.0
  %764 = vmatpush2.msra.mxu0 0.0
  %765 = vmatprep.subr.mxu0 0.0
  %766 = vmatpush2.msra.mxu0 0.0
  %767 = vmatprep.subr.mxu0 0.0
  %768 = vmatpush2.msra.mxu0 0.0
  %769 = vmatprep.mubr.f32.mxu0 0.0
  %770 = vmatmul.mubr.f32.gmra.mxu0 %v490
  %v771 = vpop.f32.mrf.mxu0
  %v772 = vadd.f32 0.0, %v771
  %v773 = vpop.f32.mrf.mxu0
  %774 = vdwg.mxu0
  %v775 = vsel %vm489, %v340, 0
  %777 = vmatprep.subr.mxu0 0.0
  %778 = vmatpush1.msra.mxu0 0.0
  %779 = vmatprep.subr.mxu0 0.0
  %780 = vmatpush1.msra.mxu0 0.0
  %781 = vmatprep.subr.mxu0 0.0
  %782 = vmatpush1.msra.mxu0 0.0
  %783 = vmatprep.subr.mxu0 0.0
  %784 = vmatpush1.msra.mxu0 0.0
  %785 = vmatprep.subr.mxu0 0.0
  %786 = vmatpush1.msra.mxu0 0.0
  %787 = vmatprep.subr.mxu0 0.0
  %788 = vmatpush1.msra.mxu0 0.0
  %789 = vmatprep.subr.mxu0 0.0
  %790 = vmatpush1.msra.mxu0 0.0
  %791 = vmatprep.subr.mxu0 0.0
  %792 = vmatpush1.msra.mxu0 0.0
  %793 = vmatprep.subr.mxu0 0.0
  %794 = vmatpush1.msra.mxu0 0.0
  %795 = vmatprep.subr.mxu0 0.0
  %796 = vmatpush1.msra.mxu0 0.0
  %797 = vmatprep.subr.mxu0 0.0
  %798 = vmatpush1.msra.mxu0 0.0
  %799 = vmatprep.subr.mxu0 0.0
  %800 = vmatpush1.msra.mxu0 0.0
  %801 = vmatprep.subr.mxu0 0.0
  %802 = vmatpush1.msra.mxu0 0.0
  %803 = vmatprep.subr.mxu0 %v392
  %804 = vmatpush1.msra.mxu0 %v391
  %805 = vmatprep.subr.mxu0 %v364
  %806 = vmatpush1.msra.mxu0 %v363
  %807 = vmatprep.subr.mxu0 %v126
  %808 = vmatpush1.msra.mxu0 %v124
  %809 = vmatprep.subr.mxu0 0.0
  %810 = vmatpush2.msra.mxu0 0.0
  %811 = vmatprep.subr.mxu0 0.0
  %812 = vmatpush2.msra.mxu0 0.0
  %813 = vmatprep.subr.mxu0 0.0
  %814 = vmatpush2.msra.mxu0 0.0
  %815 = vmatprep.subr.mxu0 0.0
  %816 = vmatpush2.msra.mxu0 0.0
  %817 = vmatprep.subr.mxu0 0.0
  %818 = vmatpush2.msra.mxu0 0.0
  %819 = vmatprep.subr.mxu0 0.0
  %820 = vmatpush2.msra.mxu0 0.0
  %821 = vmatprep.subr.mxu0 0.0
  %822 = vmatpush2.msra.mxu0 0.0
  %823 = vmatprep.subr.mxu0 0.0
  %824 = vmatpush2.msra.mxu0 0.0
  %825 = vmatprep.subr.mxu0 0.0
  %826 = vmatpush2.msra.mxu0 0.0
  %827 = vmatprep.subr.mxu0 0.0
  %828 = vmatpush2.msra.mxu0 0.0
  %829 = vmatprep.subr.mxu0 0.0
  %830 = vmatpush2.msra.mxu0 0.0
  %831 = vmatprep.subr.mxu0 0.0
  %832 = vmatpush2.msra.mxu0 0.0
  %833 = vmatprep.subr.mxu0 0.0
  %834 = vmatpush2.msra.mxu0 0.0
  %835 = vmatprep.subr.mxu0 0.0
  %836 = vmatpush2.msra.mxu0 0.0
  %837 = vmatprep.subr.mxu0 0.0
  %838 = vmatpush2.msra.mxu0 0.0
  %839 = vmatprep.subr.mxu0 0.0
  %840 = vmatpush2.msra.mxu0 0.0
  %841 = vmatprep.mubr.f32.mxu0 0.0
  %842 = vmatmul.mubr.f32.gmra.mxu0 %v775
  %v843 = vpop.f32.mrf.mxu0
  %v844 = vadd.f32 %v559, %v843
  %v845 = vpop.f32.mrf.mxu0
  %v846 = vadd.f32 %v561, %v845
  %847 = vdwg.mxu0
  %848 = vmatprep.subr.mxu0 0.0
  %849 = vmatpush1.msra.mxu0 0.0
  %850 = vmatprep.subr.mxu0 0.0
  %851 = vmatpush1.msra.mxu0 0.0
  %852 = vmatprep.subr.mxu0 0.0
  %853 = vmatpush1.msra.mxu0 0.0
  %854 = vmatprep.subr.mxu0 0.0
  %855 = vmatpush1.msra.mxu0 0.0
  %856 = vmatprep.subr.mxu0 0.0
  %857 = vmatpush1.msra.mxu0 0.0
  %858 = vmatprep.subr.mxu0 0.0
  %859 = vmatpush1.msra.mxu0 0.0
  %860 = vmatprep.subr.mxu0 0.0
  %861 = vmatpush1.msra.mxu0 0.0
  %862 = vmatprep.subr.mxu0 0.0
  %863 = vmatpush1.msra.mxu0 0.0
  %864 = vmatprep.subr.mxu0 0.0
  %865 = vmatpush1.msra.mxu0 0.0
  %866 = vmatprep.subr.mxu0 0.0
  %867 = vmatpush1.msra.mxu0 0.0
  %868 = vmatprep.subr.mxu0 0.0
  %869 = vmatpush1.msra.mxu0 0.0
  %870 = vmatprep.subr.mxu0 0.0
  %871 = vmatpush1.msra.mxu0 0.0
  %872 = vmatprep.subr.mxu0 0.0
  %873 = vmatpush1.msra.mxu0 0.0
  %874 = vmatprep.subr.mxu0 %v394
  %875 = vmatpush1.msra.mxu0 %v393
  %876 = vmatprep.subr.mxu0 %v366
  %877 = vmatpush1.msra.mxu0 %v365
  %878 = vmatprep.subr.mxu0 %v197
  %879 = vmatpush1.msra.mxu0 %v195
  %880 = vmatprep.subr.mxu0 0.0
  %881 = vmatpush2.msra.mxu0 0.0
  %882 = vmatprep.subr.mxu0 0.0
  %883 = vmatpush2.msra.mxu0 0.0
  %884 = vmatprep.subr.mxu0 0.0
  %885 = vmatpush2.msra.mxu0 0.0
  %886 = vmatprep.subr.mxu0 0.0
  %887 = vmatpush2.msra.mxu0 0.0
  %888 = vmatprep.subr.mxu0 0.0
  %889 = vmatpush2.msra.mxu0 0.0
  %890 = vmatprep.subr.mxu0 0.0
  %891 = vmatpush2.msra.mxu0 0.0
  %892 = vmatprep.subr.mxu0 0.0
  %893 = vmatpush2.msra.mxu0 0.0
  %894 = vmatprep.subr.mxu0 0.0
  %895 = vmatpush2.msra.mxu0 0.0
  %896 = vmatprep.subr.mxu0 0.0
  %897 = vmatpush2.msra.mxu0 0.0
  %898 = vmatprep.subr.mxu0 0.0
  %899 = vmatpush2.msra.mxu0 0.0
  %900 = vmatprep.subr.mxu0 0.0
  %901 = vmatpush2.msra.mxu0 0.0
  %902 = vmatprep.subr.mxu0 0.0
  %903 = vmatpush2.msra.mxu0 0.0
  %904 = vmatprep.subr.mxu0 0.0
  %905 = vmatpush2.msra.mxu0 0.0
  %906 = vmatprep.subr.mxu0 0.0
  %907 = vmatpush2.msra.mxu0 0.0
  %908 = vmatprep.subr.mxu0 0.0
  %909 = vmatpush2.msra.mxu0 0.0
  %910 = vmatprep.subr.mxu0 0.0
  %911 = vmatpush2.msra.mxu0 0.0
  %912 = vmatprep.mubr.f32.mxu0 0.0
  %913 = vmatmul.mubr.f32.gmra.mxu0 %v775
  %v914 = vpop.f32.mrf.mxu0
  %v915 = vadd.f32 %v630, %v914
  %v916 = vpop.f32.mrf.mxu0
  %v917 = vadd.f32 %v632, %v916
  %918 = vdwg.mxu0
  %919 = vmatprep.subr.mxu0 0.0
  %920 = vmatpush1.msra.mxu0 0.0
  %921 = vmatprep.subr.mxu0 0.0
  %922 = vmatpush1.msra.mxu0 0.0
  %923 = vmatprep.subr.mxu0 0.0
  %924 = vmatpush1.msra.mxu0 0.0
  %925 = vmatprep.subr.mxu0 0.0
  %926 = vmatpush1.msra.mxu0 0.0
  %927 = vmatprep.subr.mxu0 0.0
  %928 = vmatpush1.msra.mxu0 0.0
  %929 = vmatprep.subr.mxu0 0.0
  %930 = vmatpush1.msra.mxu0 0.0
  %931 = vmatprep.subr.mxu0 0.0
  %932 = vmatpush1.msra.mxu0 0.0
  %933 = vmatprep.subr.mxu0 0.0
  %934 = vmatpush1.msra.mxu0 0.0
  %935 = vmatprep.subr.mxu0 0.0
  %936 = vmatpush1.msra.mxu0 0.0
  %937 = vmatprep.subr.mxu0 0.0
  %938 = vmatpush1.msra.mxu0 0.0
  %939 = vmatprep.subr.mxu0 0.0
  %940 = vmatpush1.msra.mxu0 0.0
  %941 = vmatprep.subr.mxu0 0.0
  %942 = vmatpush1.msra.mxu0 0.0
  %943 = vmatprep.subr.mxu0 0.0
  %944 = vmatpush1.msra.mxu0 0.0
  %945 = vmatprep.subr.mxu0 %v396
  %946 = vmatpush1.msra.mxu0 %v395
  %947 = vmatprep.subr.mxu0 %v368
  %948 = vmatpush1.msra.mxu0 %v367
  %949 = vmatprep.subr.mxu0 %v268
  %950 = vmatpush1.msra.mxu0 %v266
  %951 = vmatprep.subr.mxu0 0.0
  %952 = vmatpush2.msra.mxu0 0.0
  %953 = vmatprep.subr.mxu0 0.0
  %954 = vmatpush2.msra.mxu0 0.0
  %955 = vmatprep.subr.mxu0 0.0
  %956 = vmatpush2.msra.mxu0 0.0
  %957 = vmatprep.subr.mxu0 0.0
  %958 = vmatpush2.msra.mxu0 0.0
  %959 = vmatprep.subr.mxu0 0.0
  %960 = vmatpush2.msra.mxu0 0.0
  %961 = vmatprep.subr.mxu0 0.0
  %962 = vmatpush2.msra.mxu0 0.0
  %963 = vmatprep.subr.mxu0 0.0
  %964 = vmatpush2.msra.mxu0 0.0
  %965 = vmatprep.subr.mxu0 0.0
  %966 = vmatpush2.msra.mxu0 0.0
  %967 = vmatprep.subr.mxu0 0.0
  %968 = vmatpush2.msra.mxu0 0.0
  %969 = vmatprep.subr.mxu0 0.0
  %970 = vmatpush2.msra.mxu0 0.0
  %971 = vmatprep.subr.mxu0 0.0
  %972 = vmatpush2.msra.mxu0 0.0
  %973 = vmatprep.subr.mxu0 0.0
  %974 = vmatpush2.msra.mxu0 0.0
  %975 = vmatprep.subr.mxu0 0.0
  %976 = vmatpush2.msra.mxu0 0.0
  %977 = vmatprep.subr.mxu0 0.0
  %978 = vmatpush2.msra.mxu0 0.0
  %979 = vmatprep.subr.mxu0 0.0
  %980 = vmatpush2.msra.mxu0 0.0
  %981 = vmatprep.subr.mxu0 0.0
  %982 = vmatpush2.msra.mxu0 0.0
  %983 = vmatprep.mubr.f32.mxu0 0.0
  %984 = vmatmul.mubr.f32.gmra.mxu0 %v775
  %v985 = vpop.f32.mrf.mxu0
  %v986 = vadd.f32 %v701, %v985
  %v987 = vpop.f32.mrf.mxu0
  %v988 = vadd.f32 %v703, %v987
  %989 = vdwg.mxu0
  %990 = vmatprep.subr.mxu0 0.0
  %991 = vmatpush1.msra.mxu0 0.0
  %992 = vmatprep.subr.mxu0 0.0
  %993 = vmatpush1.msra.mxu0 0.0
  %994 = vmatprep.subr.mxu0 0.0
  %995 = vmatpush1.msra.mxu0 0.0
  %996 = vmatprep.subr.mxu0 0.0
  %997 = vmatpush1.msra.mxu0 0.0
  %998 = vmatprep.subr.mxu0 0.0
  %999 = vmatpush1.msra.mxu0 0.0
  %1000 = vmatprep.subr.mxu0 0.0
  %1001 = vmatpush1.msra.mxu0 0.0
  %1002 = vmatprep.subr.mxu0 0.0
  %1003 = vmatpush1.msra.mxu0 0.0
  %1004 = vmatprep.subr.mxu0 0.0
  %1005 = vmatpush1.msra.mxu0 0.0
  %1006 = vmatprep.subr.mxu0 0.0
  %1007 = vmatpush1.msra.mxu0 0.0
  %1008 = vmatprep.subr.mxu0 0.0
  %1009 = vmatpush1.msra.mxu0 0.0
  %1010 = vmatprep.subr.mxu0 0.0
  %1011 = vmatpush1.msra.mxu0 0.0
  %1012 = vmatprep.subr.mxu0 0.0
  %1013 = vmatpush1.msra.mxu0 0.0
  %1014 = vmatprep.subr.mxu0 0.0
  %1015 = vmatpush1.msra.mxu0 0.0
  %1016 = vmatprep.subr.mxu0 0.0
  %1017 = vmatpush1.msra.mxu0 %v389
  %1018 = vmatprep.subr.mxu0 0.0
  %1019 = vmatpush1.msra.mxu0 %v361
  %1020 = vmatprep.subr.mxu0 0.0
  %1021 = vmatpush1.msra.mxu0 %v337
  %1022 = vmatprep.subr.mxu0 0.0
  %1023 = vmatpush2.msra.mxu0 0.0
  %1024 = vmatprep.subr.mxu0 0.0
  %1025 = vmatpush2.msra.mxu0 0.0
  %1026 = vmatprep.subr.mxu0 0.0
  %1027 = vmatpush2.msra.mxu0 0.0
  %1028 = vmatprep.subr.mxu0 0.0
  %1029 = vmatpush2.msra.mxu0 0.0
  %1030 = vmatprep.subr.mxu0 0.0
  %1031 = vmatpush2.msra.mxu0 0.0
  %1032 = vmatprep.subr.mxu0 0.0
  %1033 = vmatpush2.msra.mxu0 0.0
  %1034 = vmatprep.subr.mxu0 0.0
  %1035 = vmatpush2.msra.mxu0 0.0
  %1036 = vmatprep.subr.mxu0 0.0
  %1037 = vmatpush2.msra.mxu0 0.0
  %1038 = vmatprep.subr.mxu0 0.0
  %1039 = vmatpush2.msra.mxu0 0.0
  %1040 = vmatprep.subr.mxu0 0.0
  %1041 = vmatpush2.msra.mxu0 0.0
  %1042 = vmatprep.subr.mxu0 0.0
  %1043 = vmatpush2.msra.mxu0 0.0
  %1044 = vmatprep.subr.mxu0 0.0
  %1045 = vmatpush2.msra.mxu0 0.0
  %1046 = vmatprep.subr.mxu0 0.0
  %1047 = vmatpush2.msra.mxu0 0.0
  %1048 = vmatprep.subr.mxu0 0.0
  %1049 = vmatpush2.msra.mxu0 0.0
  %1050 = vmatprep.subr.mxu0 0.0
  %1051 = vmatpush2.msra.mxu0 0.0
  %1052 = vmatprep.subr.mxu0 0.0
  %1053 = vmatpush2.msra.mxu0 0.0
  %1054 = vmatprep.mubr.f32.mxu0 0.0
  %1055 = vmatmul.mubr.f32.gmra.mxu0 %v775
  %v1056 = vpop.f32.mrf.mxu0
  %v1057 = vadd.f32 %v772, %v1056
  %v1058 = vpop.f32.mrf.mxu0
  %1059 = vdwg.mxu0
  %1060 = vrot.lane.b32.xlu0 %v340, 80
  %v1061 = vpop.permute.xlu0 %1060
  %1062 = vrot.lane.b32.xlu0 %v124, 88
  %v1063 = vpop.permute.xlu0 %1062
  %1064 = vrot.lane.b32.xlu0 %v126, 88
  %v1065 = vpop.permute.xlu0 %1064
  %1066 = vrot.lane.b32.xlu0 %v195, 88
  %v1067 = vpop.permute.xlu0 %1066
  %1068 = vrot.lane.b32.xlu0 %v197, 88
  %v1069 = vpop.permute.xlu0 %1068
  %1070 = vrot.lane.b32.xlu0 %v266, 88
  %v1071 = vpop.permute.xlu0 %1070
  %1072 = vrot.lane.b32.xlu0 %v268, 88
  %v1073 = vpop.permute.xlu0 %1072
  %1074 = vrot.lane.b32.xlu0 %v337, 88
  %v1075 = vpop.permute.xlu0 %1074
  %1076 = vrot.lane.b32.xlu0 %v363, 88
  %v1077 = vpop.permute.xlu0 %1076
  %1078 = vrot.lane.b32.xlu0 %v364, 88
  %v1079 = vpop.permute.xlu0 %1078
  %1080 = vrot.lane.b32.xlu0 %v365, 88
  %v1081 = vpop.permute.xlu0 %1080
  %1082 = vrot.lane.b32.xlu0 %v366, 88
  %v1083 = vpop.permute.xlu0 %1082
  %1084 = vrot.lane.b32.xlu0 %v367, 88
  %v1085 = vpop.permute.xlu0 %1084
  %1086 = vrot.lane.b32.xlu0 %v368, 88
  %v1087 = vpop.permute.xlu0 %1086
  %1088 = vrot.lane.b32.xlu0 %v361, 88
  %v1089 = vpop.permute.xlu0 %1088
  %1090 = vrot.lane.b32.xlu0 %v391, 88
  %v1091 = vpop.permute.xlu0 %1090
  %1092 = vrot.lane.b32.xlu0 %v392, 88
  %v1093 = vpop.permute.xlu0 %1092
  %1094 = vrot.lane.b32.xlu0 %v393, 88
  %v1095 = vpop.permute.xlu0 %1094
  %1096 = vrot.lane.b32.xlu0 %v394, 88
  %v1097 = vpop.permute.xlu0 %1096
  %1098 = vrot.lane.b32.xlu0 %v395, 88
  %v1099 = vpop.permute.xlu0 %1098
  %1100 = vrot.lane.b32.xlu0 %v396, 88
  %v1101 = vpop.permute.xlu0 %1100
  %1102 = vrot.lane.b32.xlu0 %v389, 88
  %v1103 = vpop.permute.xlu0 %1102
  %vm1104 = vcmask 719872
  %v1105 = vsel %vm1104, %v1063, %v1065
  %v1106 = vsel %vm1104, %v1065, %v1067
  %v1107 = vsel %vm1104, %v1067, %v1069
  %v1108 = vsel %vm1104, %v1069, %v1071
  %v1109 = vsel %vm1104, %v1071, %v1073
  %v1110 = vsel %vm1104, %v1073, %v1075
  %v1111 = vsel %vm1104, %v1077, %v1079
  %v1112 = vsel %vm1104, %v1079, %v1081
  %v1113 = vsel %vm1104, %v1081, %v1083
  %v1114 = vsel %vm1104, %v1083, %v1085
  %v1115 = vsel %vm1104, %v1085, %v1087
  %v1116 = vsel %vm1104, %v1087, %v1089
  %v1117 = vsel %vm1104, %v1091, %v1093
  %v1118 = vsel %vm1104, %v1093, %v1095
  %v1119 = vsel %vm1104, %v1095, %v1097
  %v1120 = vsel %vm1104, %v1097, %v1099
  %v1121 = vsel %vm1104, %v1099, %v1101
  %v1122 = vsel %vm1104, %v1101, %v1103
  %v1144 = vsel %vm489, %v1061, 0
  %1146 = vmatprep.subr.mxu0 0.0
  %1147 = vmatpush1.msra.mxu0 0.0
  %1148 = vmatprep.subr.mxu0 0.0
  %1149 = vmatpush1.msra.mxu0 0.0
  %1150 = vmatprep.subr.mxu0 0.0
  %1151 = vmatpush1.msra.mxu0 0.0
  %1152 = vmatprep.subr.mxu0 0.0
  %1153 = vmatpush1.msra.mxu0 0.0
  %1154 = vmatprep.subr.mxu0 0.0
  %1155 = vmatpush1.msra.mxu0 0.0
  %1156 = vmatprep.subr.mxu0 0.0
  %1157 = vmatpush1.msra.mxu0 0.0
  %1158 = vmatprep.subr.mxu0 0.0
  %1159 = vmatpush1.msra.mxu0 0.0
  %1160 = vmatprep.subr.mxu0 0.0
  %1161 = vmatpush1.msra.mxu0 0.0
  %1162 = vmatprep.subr.mxu0 0.0
  %1163 = vmatpush1.msra.mxu0 0.0
  %1164 = vmatprep.subr.mxu0 0.0
  %1165 = vmatpush1.msra.mxu0 0.0
  %1166 = vmatprep.subr.mxu0 0.0
  %1167 = vmatpush1.msra.mxu0 0.0
  %1168 = vmatprep.subr.mxu0 0.0
  %1169 = vmatpush1.msra.mxu0 0.0
  %1170 = vmatprep.subr.mxu0 0.0
  %1171 = vmatpush1.msra.mxu0 0.0
  %1172 = vmatprep.subr.mxu0 %v1118
  %1173 = vmatpush1.msra.mxu0 %v1117
  %1174 = vmatprep.subr.mxu0 %v1112
  %1175 = vmatpush1.msra.mxu0 %v1111
  %1176 = vmatprep.subr.mxu0 %v1106
  %1177 = vmatpush1.msra.mxu0 %v1105
  %1178 = vmatprep.subr.mxu0 0.0
  %1179 = vmatpush2.msra.mxu0 0.0
  %1180 = vmatprep.subr.mxu0 0.0
  %1181 = vmatpush2.msra.mxu0 0.0
  %1182 = vmatprep.subr.mxu0 0.0
  %1183 = vmatpush2.msra.mxu0 0.0
  %1184 = vmatprep.subr.mxu0 0.0
  %1185 = vmatpush2.msra.mxu0 0.0
  %1186 = vmatprep.subr.mxu0 0.0
  %1187 = vmatpush2.msra.mxu0 0.0
  %1188 = vmatprep.subr.mxu0 0.0
  %1189 = vmatpush2.msra.mxu0 0.0
  %1190 = vmatprep.subr.mxu0 0.0
  %1191 = vmatpush2.msra.mxu0 0.0
  %1192 = vmatprep.subr.mxu0 0.0
  %1193 = vmatpush2.msra.mxu0 0.0
  %1194 = vmatprep.subr.mxu0 0.0
  %1195 = vmatpush2.msra.mxu0 0.0
  %1196 = vmatprep.subr.mxu0 0.0
  %1197 = vmatpush2.msra.mxu0 0.0
  %1198 = vmatprep.subr.mxu0 0.0
  %1199 = vmatpush2.msra.mxu0 0.0
  %1200 = vmatprep.subr.mxu0 0.0
  %1201 = vmatpush2.msra.mxu0 0.0
  %1202 = vmatprep.subr.mxu0 0.0
  %1203 = vmatpush2.msra.mxu0 0.0
  %1204 = vmatprep.subr.mxu0 0.0
  %1205 = vmatpush2.msra.mxu0 0.0
  %1206 = vmatprep.subr.mxu0 0.0
  %1207 = vmatpush2.msra.mxu0 0.0
  %1208 = vmatprep.subr.mxu0 0.0
  %1209 = vmatpush2.msra.mxu0 0.0
  %1210 = vmatprep.mubr.f32.mxu0 0.0
  %1211 = vmatmul.mubr.f32.gmra.mxu0 %v1144
  %v1212 = vpop.f32.mrf.mxu0
  %v1213 = vadd.f32 0.0, %v1212
  %v1214 = vpop.f32.mrf.mxu0
  %v1215 = vadd.f32 0.0, %v1214
  %1216 = vdwg.mxu0
  %1217 = vmatprep.subr.mxu0 0.0
  %1218 = vmatpush1.msra.mxu0 0.0
  %1219 = vmatprep.subr.mxu0 0.0
  %1220 = vmatpush1.msra.mxu0 0.0
  %1221 = vmatprep.subr.mxu0 0.0
  %1222 = vmatpush1.msra.mxu0 0.0
  %1223 = vmatprep.subr.mxu0 0.0
  %1224 = vmatpush1.msra.mxu0 0.0
  %1225 = vmatprep.subr.mxu0 0.0
  %1226 = vmatpush1.msra.mxu0 0.0
  %1227 = vmatprep.subr.mxu0 0.0
  %1228 = vmatpush1.msra.mxu0 0.0
  %1229 = vmatprep.subr.mxu0 0.0
  %1230 = vmatpush1.msra.mxu0 0.0
  %1231 = vmatprep.subr.mxu0 0.0
  %1232 = vmatpush1.msra.mxu0 0.0
  %1233 = vmatprep.subr.mxu0 0.0
  %1234 = vmatpush1.msra.mxu0 0.0
  %1235 = vmatprep.subr.mxu0 0.0
  %1236 = vmatpush1.msra.mxu0 0.0
  %1237 = vmatprep.subr.mxu0 0.0
  %1238 = vmatpush1.msra.mxu0 0.0
  %1239 = vmatprep.subr.mxu0 0.0
  %1240 = vmatpush1.msra.mxu0 0.0
  %1241 = vmatprep.subr.mxu0 0.0
  %1242 = vmatpush1.msra.mxu0 0.0
  %1243 = vmatprep.subr.mxu0 %v1120
  %1244 = vmatpush1.msra.mxu0 %v1119
  %1245 = vmatprep.subr.mxu0 %v1114
  %1246 = vmatpush1.msra.mxu0 %v1113
  %1247 = vmatprep.subr.mxu0 %v1108
  %1248 = vmatpush1.msra.mxu0 %v1107
  %1249 = vmatprep.subr.mxu0 0.0
  %1250 = vmatpush2.msra.mxu0 0.0
  %1251 = vmatprep.subr.mxu0 0.0
  %1252 = vmatpush2.msra.mxu0 0.0
  %1253 = vmatprep.subr.mxu0 0.0
  %1254 = vmatpush2.msra.mxu0 0.0
  %1255 = vmatprep.subr.mxu0 0.0
  %1256 = vmatpush2.msra.mxu0 0.0
  %1257 = vmatprep.subr.mxu0 0.0
  %1258 = vmatpush2.msra.mxu0 0.0
  %1259 = vmatprep.subr.mxu0 0.0
  %1260 = vmatpush2.msra.mxu0 0.0
  %1261 = vmatprep.subr.mxu0 0.0
  %1262 = vmatpush2.msra.mxu0 0.0
  %1263 = vmatprep.subr.mxu0 0.0
  %1264 = vmatpush2.msra.mxu0 0.0
  %1265 = vmatprep.subr.mxu0 0.0
  %1266 = vmatpush2.msra.mxu0 0.0
  %1267 = vmatprep.subr.mxu0 0.0
  %1268 = vmatpush2.msra.mxu0 0.0
  %1269 = vmatprep.subr.mxu0 0.0
  %1270 = vmatpush2.msra.mxu0 0.0
  %1271 = vmatprep.subr.mxu0 0.0
  %1272 = vmatpush2.msra.mxu0 0.0
  %1273 = vmatprep.subr.mxu0 0.0
  %1274 = vmatpush2.msra.mxu0 0.0
  %1275 = vmatprep.subr.mxu0 0.0
  %1276 = vmatpush2.msra.mxu0 0.0
  %1277 = vmatprep.subr.mxu0 0.0
  %1278 = vmatpush2.msra.mxu0 0.0
  %1279 = vmatprep.subr.mxu0 0.0
  %1280 = vmatpush2.msra.mxu0 0.0
  %1281 = vmatprep.mubr.f32.mxu0 0.0
  %1282 = vmatmul.mubr.f32.gmra.mxu0 %v1144
  %v1283 = vpop.f32.mrf.mxu0
  %v1284 = vadd.f32 0.0, %v1283
  %v1285 = vpop.f32.mrf.mxu0
  %v1286 = vadd.f32 0.0, %v1285
  %1287 = vdwg.mxu0
  %1288 = vmatprep.subr.mxu0 0.0
  %1289 = vmatpush1.msra.mxu0 0.0
  %1290 = vmatprep.subr.mxu0 0.0
  %1291 = vmatpush1.msra.mxu0 0.0
  %1292 = vmatprep.subr.mxu0 0.0
  %1293 = vmatpush1.msra.mxu0 0.0
  %1294 = vmatprep.subr.mxu0 0.0
  %1295 = vmatpush1.msra.mxu0 0.0
  %1296 = vmatprep.subr.mxu0 0.0
  %1297 = vmatpush1.msra.mxu0 0.0
  %1298 = vmatprep.subr.mxu0 0.0
  %1299 = vmatpush1.msra.mxu0 0.0
  %1300 = vmatprep.subr.mxu0 0.0
  %1301 = vmatpush1.msra.mxu0 0.0
  %1302 = vmatprep.subr.mxu0 0.0
  %1303 = vmatpush1.msra.mxu0 0.0
  %1304 = vmatprep.subr.mxu0 0.0
  %1305 = vmatpush1.msra.mxu0 0.0
  %1306 = vmatprep.subr.mxu0 0.0
  %1307 = vmatpush1.msra.mxu0 0.0
  %1308 = vmatprep.subr.mxu0 0.0
  %1309 = vmatpush1.msra.mxu0 0.0
  %1310 = vmatprep.subr.mxu0 0.0
  %1311 = vmatpush1.msra.mxu0 0.0
  %1312 = vmatprep.subr.mxu0 0.0
  %1313 = vmatpush1.msra.mxu0 0.0
  %1314 = vmatprep.subr.mxu0 %v1122
  %1315 = vmatpush1.msra.mxu0 %v1121
  %1316 = vmatprep.subr.mxu0 %v1116
  %1317 = vmatpush1.msra.mxu0 %v1115
  %1318 = vmatprep.subr.mxu0 %v1110
  %1319 = vmatpush1.msra.mxu0 %v1109
  %1320 = vmatprep.subr.mxu0 0.0
  %1321 = vmatpush2.msra.mxu0 0.0
  %1322 = vmatprep.subr.mxu0 0.0
  %1323 = vmatpush2.msra.mxu0 0.0
  %1324 = vmatprep.subr.mxu0 0.0
  %1325 = vmatpush2.msra.mxu0 0.0
  %1326 = vmatprep.subr.mxu0 0.0
  %1327 = vmatpush2.msra.mxu0 0.0
  %1328 = vmatprep.subr.mxu0 0.0
  %1329 = vmatpush2.msra.mxu0 0.0
  %1330 = vmatprep.subr.mxu0 0.0
  %1331 = vmatpush2.msra.mxu0 0.0
  %1332 = vmatprep.subr.mxu0 0.0
  %1333 = vmatpush2.msra.mxu0 0.0
  %1334 = vmatprep.subr.mxu0 0.0
  %1335 = vmatpush2.msra.mxu0 0.0
  %1336 = vmatprep.subr.mxu0 0.0
  %1337 = vmatpush2.msra.mxu0 0.0
  %1338 = vmatprep.subr.mxu0 0.0
  %1339 = vmatpush2.msra.mxu0 0.0
  %1340 = vmatprep.subr.mxu0 0.0
  %1341 = vmatpush2.msra.mxu0 0.0
  %1342 = vmatprep.subr.mxu0 0.0
  %1343 = vmatpush2.msra.mxu0 0.0
  %1344 = vmatprep.subr.mxu0 0.0
  %1345 = vmatpush2.msra.mxu0 0.0
  %1346 = vmatprep.subr.mxu0 0.0
  %1347 = vmatpush2.msra.mxu0 0.0
  %1348 = vmatprep.subr.mxu0 0.0
  %1349 = vmatpush2.msra.mxu0 0.0
  %1350 = vmatprep.subr.mxu0 0.0
  %1351 = vmatpush2.msra.mxu0 0.0
  %1352 = vmatprep.mubr.f32.mxu0 0.0
  %1353 = vmatmul.mubr.f32.gmra.mxu0 %v1144
  %v1354 = vpop.f32.mrf.mxu0
  %v1355 = vadd.f32 0.0, %v1354
  %v1356 = vpop.f32.mrf.mxu0
  %v1357 = vadd.f32 0.0, %v1356
  %1358 = vdwg.mxu0
  %1359 = vmatprep.subr.mxu0 0.0
  %1360 = vmatpush1.msra.mxu0 0.0
  %1361 = vmatprep.subr.mxu0 0.0
  %1362 = vmatpush1.msra.mxu0 0.0
  %1363 = vmatprep.subr.mxu0 0.0
  %1364 = vmatpush1.msra.mxu0 0.0
  %1365 = vmatprep.subr.mxu0 0.0
  %1366 = vmatpush1.msra.mxu0 0.0
  %1367 = vmatprep.subr.mxu0 0.0
  %1368 = vmatpush1.msra.mxu0 0.0
  %1369 = vmatprep.subr.mxu0 0.0
  %1370 = vmatpush1.msra.mxu0 0.0
  %1371 = vmatprep.subr.mxu0 0.0
  %1372 = vmatpush1.msra.mxu0 0.0
  %1373 = vmatprep.subr.mxu0 0.0
  %1374 = vmatpush1.msra.mxu0 0.0
  %1375 = vmatprep.subr.mxu0 0.0
  %1376 = vmatpush1.msra.mxu0 0.0
  %1377 = vmatprep.subr.mxu0 0.0
  %1378 = vmatpush1.msra.mxu0 0.0
  %1379 = vmatprep.subr.mxu0 0.0
  %1380 = vmatpush1.msra.mxu0 0.0
  %1381 = vmatprep.subr.mxu0 0.0
  %1382 = vmatpush1.msra.mxu0 0.0
  %1383 = vmatprep.subr.mxu0 0.0
  %1384 = vmatpush1.msra.mxu0 0.0
  %1385 = vmatprep.subr.mxu0 0.0
  %1386 = vmatpush1.msra.mxu0 %v1103
  %1387 = vmatprep.subr.mxu0 0.0
  %1388 = vmatpush1.msra.mxu0 %v1089
  %1389 = vmatprep.subr.mxu0 0.0
  %1390 = vmatpush1.msra.mxu0 %v1075
  %1391 = vmatprep.subr.mxu0 0.0
  %1392 = vmatpush2.msra.mxu0 0.0
  %1393 = vmatprep.subr.mxu0 0.0
  %1394 = vmatpush2.msra.mxu0 0.0
  %1395 = vmatprep.subr.mxu0 0.0
  %1396 = vmatpush2.msra.mxu0 0.0
  %1397 = vmatprep.subr.mxu0 0.0
  %1398 = vmatpush2.msra.mxu0 0.0
  %1399 = vmatprep.subr.mxu0 0.0
  %1400 = vmatpush2.msra.mxu0 0.0
  %1401 = vmatprep.subr.mxu0 0.0
  %1402 = vmatpush2.msra.mxu0 0.0
  %1403 = vmatprep.subr.mxu0 0.0
  %1404 = vmatpush2.msra.mxu0 0.0
  %1405 = vmatprep.subr.mxu0 0.0
  %1406 = vmatpush2.msra.mxu0 0.0
  %1407 = vmatprep.subr.mxu0 0.0
  %1408 = vmatpush2.msra.mxu0 0.0
  %1409 = vmatprep.subr.mxu0 0.0
  %1410 = vmatpush2.msra.mxu0 0.0
  %1411 = vmatprep.subr.mxu0 0.0
  %1412 = vmatpush2.msra.mxu0 0.0
  %1413 = vmatprep.subr.mxu0 0.0
  %1414 = vmatpush2.msra.mxu0 0.0
  %1415 = vmatprep.subr.mxu0 0.0
  %1416 = vmatpush2.msra.mxu0 0.0
  %1417 = vmatprep.subr.mxu0 0.0
  %1418 = vmatpush2.msra.mxu0 0.0
  %1419 = vmatprep.subr.mxu0 0.0
  %1420 = vmatpush2.msra.mxu0 0.0
  %1421 = vmatprep.subr.mxu0 0.0
  %1422 = vmatpush2.msra.mxu0 0.0
  %1423 = vmatprep.mubr.f32.mxu0 0.0
  %1424 = vmatmul.mubr.f32.gmra.mxu0 %v1144
  %v1425 = vpop.f32.mrf.mxu0
  %v1426 = vadd.f32 0.0, %v1425
  %v1427 = vpop.f32.mrf.mxu0
  %1428 = vdwg.mxu0
  %v1429 = vadd.f32 %v844, %v1213
  %v1430 = vadd.f32 %v846, %v1215
  %v1431 = vadd.f32 %v915, %v1284
  %v1432 = vadd.f32 %v917, %v1286
  %v1433 = vadd.f32 %v986, %v1355
  %v1434 = vadd.f32 %v988, %v1357
  %v1435 = vadd.f32 %v1057, %v1426
  %1436 = vset.pattern.permute.xlu0 72
  %1437 = vperm.xlu0 %1436, %v340
  %v1438 = vpop.permute.xlu0 %1437
  %v1440 = vadd.f32 %v1429, %v1438
  %v1441 = vadd.f32 %v1430, %v1438
  %v1442 = vadd.f32 %v1431, %v1438
  %v1443 = vadd.f32 %v1432, %v1438
  %v1444 = vadd.f32 %v1433, %v1438
  %v1445 = vadd.f32 %v1434, %v1438
  %v1446 = vadd.f32 %v1435, %v1438
  %v1447 = vmul.f32 %v1440, 0.01
  %v1448 = vmul.f32 %v1441, 0.01
  %v1449 = vmul.f32 %v1442, 0.01
  %v1450 = vmul.f32 %v1443, 0.01
  %v1451 = vmul.f32 %v1444, 0.01
  %v1452 = vmul.f32 %v1445, 0.01
  %v1453 = vmul.f32 %v1446, 0.01
  %v1454 = vmax.f32 %v1440, %v1447
  %v1455 = vmax.f32 %v1441, %v1448
  %v1456 = vmax.f32 %v1442, %v1449
  %v1457 = vmax.f32 %v1443, %v1450
  %v1458 = vmax.f32 %v1444, %v1451
  %v1459 = vmax.f32 %v1445, %v1452
  %v1460 = vmax.f32 %v1446, %v1453
  %v1461 = vld [vmem:[%s4] sm:$0xff]
  %v1462 = vld [vmem:[%s4 + $0x8] sm:$0xff]
  %v1463 = vld [vmem:[%s4 + $0x10] sm:$0xff]
  %v1464 = vld [vmem:[%s4 + $0x18] sm:$0xff]
  %v1465 = vld [vmem:[%s4 + $0x20] sm:$0xff]
  %v1466 = vld [vmem:[%s4 + $0x28] sm:$0xff]
  %v1467 = vld [vmem:[%s4 + $0x30] sm:$0xff]
  %v1468 = vld [vmem:[%s4 + $0x38] sm:$0xff]
  %v1469 = vld [vmem:[%s4 + $0x40] sm:$0xff]
  %v1470 = vld [vmem:[%s4 + $0x48] sm:$0xff]
  %v1471 = vld [vmem:[%s4 + $0x50] sm:$0xff]
  %v1472 = vld [vmem:[%s4 + $0x58] sm:$0xff]
  %v1473 = vld [vmem:[%s4 + $0x60] sm:$0xff]
  %v1474 = vld [vmem:[%s4 + $0x68] sm:$0xff]
  %v1475 = vld [vmem:[%s4 + $0x70] sm:$0xff]
  %v1476 = vld [vmem:[%s4 + $0x78] sm:$0xff]
  %v1477 = vld [vmem:[%s4 + $0x80] sm:$0xff]
  %v1478 = vld [vmem:[%s4 + $0x88] sm:$0xff]
  %v1479 = vld [vmem:[%s4 + $0x90] sm:$0xff]
  %v1480 = vld [vmem:[%s4 + $0x98] sm:$0xff]
  %v1481 = vld [vmem:[%s4 + $0xa0] sm:$0xff]
  %v1482 = vld [vmem:[%s4 + $0xa8] sm:$0xff]
  %v1483 = vld [vmem:[%s4 + $0xb0] sm:$0xff]
  %v1484 = vld [vmem:[%s4 + $0xb8] sm:$0xff]
  %v1485 = vld [vmem:[%s4 + $0xc0] sm:$0xff]
  %v1486 = vld [vmem:[%s4 + $0xc8] sm:$0xff]
  %v1487 = vld [vmem:[%s4 + $0xd0] sm:$0xff]
  %v1488 = vld [vmem:[%s4 + $0xd8] sm:$0xff]
  %v1489 = vld [vmem:[%s4 + $0xe0] sm:$0xff]
  %v1490 = vld [vmem:[%s4 + $0xe8] sm:$0xff]
  %v1491 = vld [vmem:[%s4 + $0xf0] sm:$0xff]
  %v1492 = vld [vmem:[%s4 + $0xf8] sm:$0xff]
  %v1493 = vld [vmem:[%s4 + $0x100] sm:$0xff]
  %v1494 = vld [vmem:[%s4 + $0x108] sm:$0xff]
  %v1495 = vld [vmem:[%s4 + $0x110] sm:$0xff]
  %v1496 = vld [vmem:[%s4 + $0x118] sm:$0xff]
  %v1497 = vld [vmem:[%s4 + $0x120] sm:$0xff]
  %v1498 = vld [vmem:[%s4 + $0x128] sm:$0xff]
  %v1499 = vld [vmem:[%s4 + $0x130] sm:$0xff]
  %v1500 = vld [vmem:[%s4 + $0x138] sm:$0xff]
  %v1501 = vld [vmem:[%s4 + $0x140] sm:$0xff]
  %v1502 = vld [vmem:[%s4 + $0x148] sm:$0xff]
  %v1503 = vld [vmem:[%s4 + $0x150] sm:$0xff]
  %v1504 = vld [vmem:[%s4 + $0x158] sm:$0xff]
  %v1505 = vld [vmem:[%s4 + $0x160] sm:$0xff]
  %v1506 = vld [vmem:[%s4 + $0x168] sm:$0xff]
  %v1507 = vld [vmem:[%s4 + $0x170] sm:$0xff]
  %v1508 = vld [vmem:[%s4 + $0x178] sm:$0xff]
  %v1509 = vld [vmem:[%s4 + $0x180] sm:$0xff]
  %v1510 = vld [vmem:[%s4 + $0x188] sm:$0xff]
  %v1511 = vunpack.c.l.bf16 %v1461
  %v1512 = vunpack.c.h.bf16 %v1461
  %v1513 = vunpack.c.l.bf16 %v1462
  %v1514 = vunpack.c.h.bf16 %v1462
  %v1515 = vunpack.c.l.bf16 %v1463
  %v1516 = vunpack.c.h.bf16 %v1463
  %v1517 = vunpack.c.l.bf16 %v1464
  %v1518 = vunpack.c.h.bf16 %v1464
  %v1519 = vunpack.c.l.bf16 %v1465
  %v1520 = vunpack.c.h.bf16 %v1465
  %v1521 = vunpack.c.l.bf16 %v1466
  %v1522 = vunpack.c.h.bf16 %v1466
  %v1523 = vunpack.c.l.bf16 %v1467
  %v1524 = vunpack.c.h.bf16 %v1467
  %v1525 = vunpack.c.l.bf16 %v1468
  %v1526 = vunpack.c.h.bf16 %v1468
  %v1527 = vunpack.c.l.bf16 %v1469
  %v1528 = vunpack.c.h.bf16 %v1469
  %v1529 = vunpack.c.l.bf16 %v1470
  %v1530 = vunpack.c.h.bf16 %v1470
  %v1531 = vunpack.c.l.bf16 %v1471
  %v1532 = vunpack.c.h.bf16 %v1471
  %v1533 = vunpack.c.l.bf16 %v1472
  %v1534 = vunpack.c.h.bf16 %v1472
  %v1535 = vunpack.c.l.bf16 %v1473
  %v1536 = vunpack.c.h.bf16 %v1473
  %v1537 = vunpack.c.l.bf16 %v1474
  %v1538 = vunpack.c.h.bf16 %v1474
  %v1539 = vunpack.c.l.bf16 %v1475
  %v1540 = vunpack.c.h.bf16 %v1475
  %v1541 = vunpack.c.l.bf16 %v1476
  %v1542 = vunpack.c.h.bf16 %v1476
  %v1543 = vunpack.c.l.bf16 %v1477
  %v1544 = vunpack.c.h.bf16 %v1477
  %v1545 = vunpack.c.l.bf16 %v1478
  %v1546 = vunpack.c.h.bf16 %v1478
  %v1547 = vunpack.c.l.bf16 %v1479
  %v1548 = vunpack.c.h.bf16 %v1479
  %v1549 = vunpack.c.l.bf16 %v1480
  %v1550 = vunpack.c.h.bf16 %v1480
  %v1551 = vunpack.c.l.bf16 %v1481
  %v1552 = vunpack.c.h.bf16 %v1481
  %v1553 = vunpack.c.l.bf16 %v1482
  %v1554 = vunpack.c.h.bf16 %v1482
  %v1555 = vunpack.c.l.bf16 %v1483
  %v1556 = vunpack.c.h.bf16 %v1483
  %v1557 = vunpack.c.l.bf16 %v1484
  %v1558 = vunpack.c.h.bf16 %v1484
  %v1559 = vunpack.c.l.bf16 %v1485
  %v1560 = vunpack.c.h.bf16 %v1485
  %v1561 = vunpack.c.l.bf16 %v1486
  %v1562 = vunpack.c.h.bf16 %v1486
  %v1563 = vunpack.c.l.bf16 %v1487
  %v1564 = vunpack.c.h.bf16 %v1487
  %v1565 = vunpack.c.l.bf16 %v1488
  %v1566 = vunpack.c.h.bf16 %v1488
  %v1567 = vunpack.c.l.bf16 %v1489
  %v1568 = vunpack.c.h.bf16 %v1489
  %v1569 = vunpack.c.l.bf16 %v1490
  %v1570 = vunpack.c.h.bf16 %v1490
  %v1571 = vunpack.c.l.bf16 %v1491
  %v1572 = vunpack.c.h.bf16 %v1491
  %v1573 = vunpack.c.l.bf16 %v1492
  %v1574 = vunpack.c.h.bf16 %v1492
  %v1575 = vunpack.c.l.bf16 %v1493
  %v1576 = vunpack.c.h.bf16 %v1493
  %v1577 = vunpack.c.l.bf16 %v1494
  %v1578 = vunpack.c.h.bf16 %v1494
  %v1579 = vunpack.c.l.bf16 %v1495
  %v1580 = vunpack.c.h.bf16 %v1495
  %v1581 = vunpack.c.l.bf16 %v1496
  %v1582 = vunpack.c.h.bf16 %v1496
  %v1583 = vunpack.c.l.bf16 %v1497
  %v1584 = vunpack.c.h.bf16 %v1497
  %v1585 = vunpack.c.l.bf16 %v1498
  %v1586 = vunpack.c.h.bf16 %v1498
  %v1587 = vunpack.c.l.bf16 %v1499
  %v1588 = vunpack.c.h.bf16 %v1499
  %v1589 = vunpack.c.l.bf16 %v1500
  %v1590 = vunpack.c.h.bf16 %v1500
  %v1591 = vunpack.c.l.bf16 %v1501
  %v1592 = vunpack.c.h.bf16 %v1501
  %v1593 = vunpack.c.l.bf16 %v1502
  %v1594 = vunpack.c.h.bf16 %v1502
  %v1595 = vunpack.c.l.bf16 %v1503
  %v1596 = vunpack.c.h.bf16 %v1503
  %v1597 = vunpack.c.l.bf16 %v1504
  %v1598 = vunpack.c.h.bf16 %v1504
  %v1599 = vunpack.c.l.bf16 %v1505
  %v1600 = vunpack.c.h.bf16 %v1505
  %v1601 = vunpack.c.l.bf16 %v1506
  %v1602 = vunpack.c.h.bf16 %v1506
  %v1603 = vunpack.c.l.bf16 %v1507
  %v1604 = vunpack.c.h.bf16 %v1507
  %v1605 = vunpack.c.l.bf16 %v1508
  %v1606 = vunpack.c.h.bf16 %v1508
  %v1607 = vunpack.c.l.bf16 %v1509
  %v1608 = vunpack.c.h.bf16 %v1509
  %v1609 = vunpack.c.l.bf16 %v1510
  %v1610 = vunpack.c.h.bf16 %v1510
  %vm1611 = vcmask 130048
  %v1613 = vsel %vm1611, %v1457, 0
  %1615 = vmatprep.subr.mxu0 %v1542
  %1616 = vmatpush1.msra.mxu0 %v1541
  %1617 = vmatprep.subr.mxu0 %v1540
  %1618 = vmatpush1.msra.mxu0 %v1539
  %1619 = vmatprep.subr.mxu0 %v1538
  %1620 = vmatpush1.msra.mxu0 %v1537
  %1621 = vmatprep.subr.mxu0 %v1536
  %1622 = vmatpush1.msra.mxu0 %v1535
  %1623 = vmatprep.subr.mxu0 %v1534
  %1624 = vmatpush1.msra.mxu0 %v1533
  %1625 = vmatprep.subr.mxu0 %v1532
  %1626 = vmatpush1.msra.mxu0 %v1531
  %1627 = vmatprep.subr.mxu0 %v1530
  %1628 = vmatpush1.msra.mxu0 %v1529
  %1629 = vmatprep.subr.mxu0 %v1528
  %1630 = vmatpush1.msra.mxu0 %v1527
  %1631 = vmatprep.subr.mxu0 %v1526
  %1632 = vmatpush1.msra.mxu0 %v1525
  %1633 = vmatprep.subr.mxu0 %v1524
  %1634 = vmatpush1.msra.mxu0 %v1523
  %1635 = vmatprep.subr.mxu0 %v1522
  %1636 = vmatpush1.msra.mxu0 %v1521
  %1637 = vmatprep.subr.mxu0 %v1520
  %1638 = vmatpush1.msra.mxu0 %v1519
  %1639 = vmatprep.subr.mxu0 %v1518
  %1640 = vmatpush1.msra.mxu0 %v1517
  %1641 = vmatprep.subr.mxu0 %v1516
  %1642 = vmatpush1.msra.mxu0 %v1515
  %1643 = vmatprep.subr.mxu0 %v1514
  %1644 = vmatpush1.msra.mxu0 %v1513
  %1645 = vmatprep.subr.mxu0 %v1512
  %1646 = vmatpush1.msra.mxu0 %v1511
  %1647 = vmatprep.subr.mxu0 %v1574
  %1648 = vmatpush2.msra.mxu0 %v1573
  %1649 = vmatprep.subr.mxu0 %v1572
  %1650 = vmatpush2.msra.mxu0 %v1571
  %1651 = vmatprep.subr.mxu0 %v1570
  %1652 = vmatpush2.msra.mxu0 %v1569
  %1653 = vmatprep.subr.mxu0 %v1568
  %1654 = vmatpush2.msra.mxu0 %v1567
  %1655 = vmatprep.subr.mxu0 %v1566
  %1656 = vmatpush2.msra.mxu0 %v1565
  %1657 = vmatprep.subr.mxu0 %v1564
  %1658 = vmatpush2.msra.mxu0 %v1563
  %1659 = vmatprep.subr.mxu0 %v1562
  %1660 = vmatpush2.msra.mxu0 %v1561
  %1661 = vmatprep.subr.mxu0 %v1560
  %1662 = vmatpush2.msra.mxu0 %v1559
  %1663 = vmatprep.subr.mxu0 %v1558
  %1664 = vmatpush2.msra.mxu0 %v1557
  %1665 = vmatprep.subr.mxu0 %v1556
  %1666 = vmatpush2.msra.mxu0 %v1555
  %1667 = vmatprep.subr.mxu0 %v1554
  %1668 = vmatpush2.msra.mxu0 %v1553
  %1669 = vmatprep.subr.mxu0 %v1552
  %1670 = vmatpush2.msra.mxu0 %v1551
  %1671 = vmatprep.subr.mxu0 %v1550
  %1672 = vmatpush2.msra.mxu0 %v1549
  %1673 = vmatprep.subr.mxu0 %v1548
  %1674 = vmatpush2.msra.mxu0 %v1547
  %1675 = vmatprep.subr.mxu0 %v1546
  %1676 = vmatpush2.msra.mxu0 %v1545
  %1677 = vmatprep.subr.mxu0 %v1544
  %1678 = vmatpush2.msra.mxu0 %v1543
  %1679 = vmatprep.mubr.f32.mxu0 %v1455
  %1680 = vmatmul.mubr.f32.gmra.mxu0 %v1454
  %v1681 = vpop.f32.mrf.mxu0
  %v1682 = vadd.f32 0.0, %v1681
  %v1683 = vpop.f32.mrf.mxu0
  %v1684 = vadd.f32 0.0, %v1683
  %1685 = vdwg.mxu0
  %1686 = vmatprep.subr.mxu0 %v1606
  %1687 = vmatpush1.msra.mxu0 %v1605
  %1688 = vmatprep.subr.mxu0 %v1604
  %1689 = vmatpush1.msra.mxu0 %v1603
  %1690 = vmatprep.subr.mxu0 %v1602
  %1691 = vmatpush1.msra.mxu0 %v1601
  %1692 = vmatprep.subr.mxu0 %v1600
  %1693 = vmatpush1.msra.mxu0 %v1599
  %1694 = vmatprep.subr.mxu0 %v1598
  %1695 = vmatpush1.msra.mxu0 %v1597
  %1696 = vmatprep.subr.mxu0 %v1596
  %1697 = vmatpush1.msra.mxu0 %v1595
  %1698 = vmatprep.subr.mxu0 %v1594
  %1699 = vmatpush1.msra.mxu0 %v1593
  %1700 = vmatprep.subr.mxu0 %v1592
  %1701 = vmatpush1.msra.mxu0 %v1591
  %1702 = vmatprep.subr.mxu0 %v1590
  %1703 = vmatpush1.msra.mxu0 %v1589
  %1704 = vmatprep.subr.mxu0 %v1588
  %1705 = vmatpush1.msra.mxu0 %v1587
  %1706 = vmatprep.subr.mxu0 %v1586
  %1707 = vmatpush1.msra.mxu0 %v1585
  %1708 = vmatprep.subr.mxu0 %v1584
  %1709 = vmatpush1.msra.mxu0 %v1583
  %1710 = vmatprep.subr.mxu0 %v1582
  %1711 = vmatpush1.msra.mxu0 %v1581
  %1712 = vmatprep.subr.mxu0 %v1580
  %1713 = vmatpush1.msra.mxu0 %v1579
  %1714 = vmatprep.subr.mxu0 %v1578
  %1715 = vmatpush1.msra.mxu0 %v1577
  %1716 = vmatprep.subr.mxu0 %v1576
  %1717 = vmatpush1.msra.mxu0 %v1575
  %1718 = vmatprep.subr.mxu0 0.0
  %1719 = vmatpush2.msra.mxu0 0.0
  %1720 = vmatprep.subr.mxu0 0.0
  %1721 = vmatpush2.msra.mxu0 0.0
  %1722 = vmatprep.subr.mxu0 0.0
  %1723 = vmatpush2.msra.mxu0 0.0
  %1724 = vmatprep.subr.mxu0 0.0
  %1725 = vmatpush2.msra.mxu0 0.0
  %1726 = vmatprep.subr.mxu0 0.0
  %1727 = vmatpush2.msra.mxu0 0.0
  %1728 = vmatprep.subr.mxu0 0.0
  %1729 = vmatpush2.msra.mxu0 0.0
  %1730 = vmatprep.subr.mxu0 0.0
  %1731 = vmatpush2.msra.mxu0 0.0
  %1732 = vmatprep.subr.mxu0 0.0
  %1733 = vmatpush2.msra.mxu0 0.0
  %1734 = vmatprep.subr.mxu0 0.0
  %1735 = vmatpush2.msra.mxu0 0.0
  %1736 = vmatprep.subr.mxu0 0.0
  %1737 = vmatpush2.msra.mxu0 0.0
  %1738 = vmatprep.subr.mxu0 0.0
  %1739 = vmatpush2.msra.mxu0 0.0
  %1740 = vmatprep.subr.mxu0 0.0
  %1741 = vmatpush2.msra.mxu0 0.0
  %1742 = vmatprep.subr.mxu0 0.0
  %1743 = vmatpush2.msra.mxu0 0.0
  %1744 = vmatprep.subr.mxu0 0.0
  %1745 = vmatpush2.msra.mxu0 0.0
  %1746 = vmatprep.subr.mxu0 %v1610
  %1747 = vmatpush2.msra.mxu0 %v1609
  %1748 = vmatprep.subr.mxu0 %v1608
  %1749 = vmatpush2.msra.mxu0 %v1607
  %1750 = vmatprep.mubr.f32.mxu0 %v1613
  %1751 = vmatmul.mubr.f32.gmra.mxu0 %v1456
  %v1752 = vpop.f32.mrf.mxu0
  %v1753 = vadd.f32 %v1682, %v1752
  %v1754 = vpop.f32.mrf.mxu0
  %v1755 = vadd.f32 %v1684, %v1754
  %1756 = vdwg.mxu0
  %1760 = vrot.lane.b32.xlu0 %v1457, 70
  %v1761 = vpop.permute.xlu0 %1760
  %1762 = vrot.lane.b32.xlu0 %v1458, 70
  %v1763 = vpop.permute.xlu0 %1762
  %1764 = vrot.lane.b32.xlu0 %v1459, 70
  %v1765 = vpop.permute.xlu0 %1764
  %1766 = vrot.lane.b32.xlu0 %v1460, 70
  %v1767 = vpop.permute.xlu0 %1766
  %vm1768 = vcmask 572416
  %v1769 = vsel %vm1768, %v1761, %v1763
  %v1770 = vsel %vm1768, %v1763, %v1765
  %v1771 = vsel %vm1768, %v1765, %v1767
  %v1775 = vsel %vm1611, %v1767, 0
  %1777 = vmatprep.subr.mxu0 %v1542
  %1778 = vmatpush1.msra.mxu0 %v1541
  %1779 = vmatprep.subr.mxu0 %v1540
  %1780 = vmatpush1.msra.mxu0 %v1539
  %1781 = vmatprep.subr.mxu0 %v1538
  %1782 = vmatpush1.msra.mxu0 %v1537
  %1783 = vmatprep.subr.mxu0 %v1536
  %1784 = vmatpush1.msra.mxu0 %v1535
  %1785 = vmatprep.subr.mxu0 %v1534
  %1786 = vmatpush1.msra.mxu0 %v1533
  %1787 = vmatprep.subr.mxu0 %v1532
  %1788 = vmatpush1.msra.mxu0 %v1531
  %1789 = vmatprep.subr.mxu0 %v1530
  %1790 = vmatpush1.msra.mxu0 %v1529
  %1791 = vmatprep.subr.mxu0 %v1528
  %1792 = vmatpush1.msra.mxu0 %v1527
  %1793 = vmatprep.subr.mxu0 %v1526
  %1794 = vmatpush1.msra.mxu0 %v1525
  %1795 = vmatprep.subr.mxu0 %v1524
  %1796 = vmatpush1.msra.mxu0 %v1523
  %1797 = vmatprep.subr.mxu0 %v1522
  %1798 = vmatpush1.msra.mxu0 %v1521
  %1799 = vmatprep.subr.mxu0 %v1520
  %1800 = vmatpush1.msra.mxu0 %v1519
  %1801 = vmatprep.subr.mxu0 %v1518
  %1802 = vmatpush1.msra.mxu0 %v1517
  %1803 = vmatprep.subr.mxu0 %v1516
  %1804 = vmatpush1.msra.mxu0 %v1515
  %1805 = vmatprep.subr.mxu0 %v1514
  %1806 = vmatpush1.msra.mxu0 %v1513
  %1807 = vmatprep.subr.mxu0 %v1512
  %1808 = vmatpush1.msra.mxu0 %v1511
  %1809 = vmatprep.subr.mxu0 %v1574
  %1810 = vmatpush2.msra.mxu0 %v1573
  %1811 = vmatprep.subr.mxu0 %v1572
  %1812 = vmatpush2.msra.mxu0 %v1571
  %1813 = vmatprep.subr.mxu0 %v1570
  %1814 = vmatpush2.msra.mxu0 %v1569
  %1815 = vmatprep.subr.mxu0 %v1568
  %1816 = vmatpush2.msra.mxu0 %v1567
  %1817 = vmatprep.subr.mxu0 %v1566
  %1818 = vmatpush2.msra.mxu0 %v1565
  %1819 = vmatprep.subr.mxu0 %v1564
  %1820 = vmatpush2.msra.mxu0 %v1563
  %1821 = vmatprep.subr.mxu0 %v1562
  %1822 = vmatpush2.msra.mxu0 %v1561
  %1823 = vmatprep.subr.mxu0 %v1560
  %1824 = vmatpush2.msra.mxu0 %v1559
  %1825 = vmatprep.subr.mxu0 %v1558
  %1826 = vmatpush2.msra.mxu0 %v1557
  %1827 = vmatprep.subr.mxu0 %v1556
  %1828 = vmatpush2.msra.mxu0 %v1555
  %1829 = vmatprep.subr.mxu0 %v1554
  %1830 = vmatpush2.msra.mxu0 %v1553
  %1831 = vmatprep.subr.mxu0 %v1552
  %1832 = vmatpush2.msra.mxu0 %v1551
  %1833 = vmatprep.subr.mxu0 %v1550
  %1834 = vmatpush2.msra.mxu0 %v1549
  %1835 = vmatprep.subr.mxu0 %v1548
  %1836 = vmatpush2.msra.mxu0 %v1547
  %1837 = vmatprep.subr.mxu0 %v1546
  %1838 = vmatpush2.msra.mxu0 %v1545
  %1839 = vmatprep.subr.mxu0 %v1544
  %1840 = vmatpush2.msra.mxu0 %v1543
  %1841 = vmatprep.mubr.f32.mxu0 %v1770
  %1842 = vmatmul.mubr.f32.gmra.mxu0 %v1769
  %v1843 = vpop.f32.mrf.mxu0
  %v1844 = vadd.f32 0.0, %v1843
  %v1845 = vpop.f32.mrf.mxu0
  %v1846 = vadd.f32 0.0, %v1845
  %1847 = vdwg.mxu0
  %1848 = vmatprep.subr.mxu0 %v1606
  %1849 = vmatpush1.msra.mxu0 %v1605
  %1850 = vmatprep.subr.mxu0 %v1604
  %1851 = vmatpush1.msra.mxu0 %v1603
  %1852 = vmatprep.subr.mxu0 %v1602
  %1853 = vmatpush1.msra.mxu0 %v1601
  %1854 = vmatprep.subr.mxu0 %v1600
  %1855 = vmatpush1.msra.mxu0 %v1599
  %1856 = vmatprep.subr.mxu0 %v1598
  %1857 = vmatpush1.msra.mxu0 %v1597
  %1858 = vmatprep.subr.mxu0 %v1596
  %1859 = vmatpush1.msra.mxu0 %v1595
  %1860 = vmatprep.subr.mxu0 %v1594
  %1861 = vmatpush1.msra.mxu0 %v1593
  %1862 = vmatprep.subr.mxu0 %v1592
  %1863 = vmatpush1.msra.mxu0 %v1591
  %1864 = vmatprep.subr.mxu0 %v1590
  %1865 = vmatpush1.msra.mxu0 %v1589
  %1866 = vmatprep.subr.mxu0 %v1588
  %1867 = vmatpush1.msra.mxu0 %v1587
  %1868 = vmatprep.subr.mxu0 %v1586
  %1869 = vmatpush1.msra.mxu0 %v1585
  %1870 = vmatprep.subr.mxu0 %v1584
  %1871 = vmatpush1.msra.mxu0 %v1583
  %1872 = vmatprep.subr.mxu0 %v1582
  %1873 = vmatpush1.msra.mxu0 %v1581
  %1874 = vmatprep.subr.mxu0 %v1580
  %1875 = vmatpush1.msra.mxu0 %v1579
  %1876 = vmatprep.subr.mxu0 %v1578
  %1877 = vmatpush1.msra.mxu0 %v1577
  %1878 = vmatprep.subr.mxu0 %v1576
  %1879 = vmatpush1.msra.mxu0 %v1575
  %1880 = vmatprep.subr.mxu0 0.0
  %1881 = vmatpush2.msra.mxu0 0.0
  %1882 = vmatprep.subr.mxu0 0.0
  %1883 = vmatpush2.msra.mxu0 0.0
  %1884 = vmatprep.subr.mxu0 0.0
  %1885 = vmatpush2.msra.mxu0 0.0
  %1886 = vmatprep.subr.mxu0 0.0
  %1887 = vmatpush2.msra.mxu0 0.0
  %1888 = vmatprep.subr.mxu0 0.0
  %1889 = vmatpush2.msra.mxu0 0.0
  %1890 = vmatprep.subr.mxu0 0.0
  %1891 = vmatpush2.msra.mxu0 0.0
  %1892 = vmatprep.subr.mxu0 0.0
  %1893 = vmatpush2.msra.mxu0 0.0
  %1894 = vmatprep.subr.mxu0 0.0
  %1895 = vmatpush2.msra.mxu0 0.0
  %1896 = vmatprep.subr.mxu0 0.0
  %1897 = vmatpush2.msra.mxu0 0.0
  %1898 = vmatprep.subr.mxu0 0.0
  %1899 = vmatpush2.msra.mxu0 0.0
  %1900 = vmatprep.subr.mxu0 0.0
  %1901 = vmatpush2.msra.mxu0 0.0
  %1902 = vmatprep.subr.mxu0 0.0
  %1903 = vmatpush2.msra.mxu0 0.0
  %1904 = vmatprep.subr.mxu0 0.0
  %1905 = vmatpush2.msra.mxu0 0.0
  %1906 = vmatprep.subr.mxu0 0.0
  %1907 = vmatpush2.msra.mxu0 0.0
  %1908 = vmatprep.subr.mxu0 %v1610
  %1909 = vmatpush2.msra.mxu0 %v1609
  %1910 = vmatprep.subr.mxu0 %v1608
  %1911 = vmatpush2.msra.mxu0 %v1607
  %1912 = vmatprep.mubr.f32.mxu0 %v1775
  %1913 = vmatmul.mubr.f32.gmra.mxu0 %v1771
  %v1914 = vpop.f32.mrf.mxu0
  %v1915 = vadd.f32 %v1844, %v1914
  %v1916 = vpop.f32.mrf.mxu0
  %v1917 = vadd.f32 %v1846, %v1916
  %1918 = vdwg.mxu0
  %1921 = vrot.lane.b32.xlu0 %v1915, 17
  %v1922 = vpop.permute.xlu0 %1921
  %1923 = vrot.lane.b32.xlu0 %v1917, 17
  %v1924 = vpop.permute.xlu0 %1923
  %vm1925 = vcmask 138240
  %v1926 = vsel %vm1925, %v1922, %v1924
  %v1929 = vsel %vm1925, %v1755, %v1922
  %v1930 = vld [vmem:[%s5] sm:$0xff]
  %1933 = vrot.lane.b32.xlu0 %v1753, 127
  %v1934 = vpop.permute.xlu0 %1933
  %1935 = vrot.lane.b32.xlu0 %v1929, 127
  %v1936 = vpop.permute.xlu0 %1935
  %1937 = vrot.lane.b32.xlu0 %v1926, 127
  %v1938 = vpop.permute.xlu0 %1937
  %v1939 = vsel %vm362, %v1934, %v1936
  %v1940 = vsel %vm362, %v1936, %v1938
  %1944 = vrot.lane.b32.xlu0 %v1753, 126
  %v1945 = vpop.permute.xlu0 %1944
  %1946 = vrot.lane.b32.xlu0 %v1929, 126
  %v1947 = vpop.permute.xlu0 %1946
  %1948 = vrot.lane.b32.xlu0 %v1926, 126
  %v1949 = vpop.permute.xlu0 %1948
  %v1950 = vsel %vm390, %v1945, %v1947
  %v1951 = vsel %vm390, %v1947, %v1949
  %1956 = vrot.lane.b32.xlu0 %v1930, 104
  %v1957 = vpop.permute.xlu0 %1956
  %1958 = vrot.lane.b32.xlu0 %v1753, 117
  %v1959 = vpop.permute.xlu0 %1958
  %1960 = vrot.lane.b32.xlu0 %v1929, 117
  %v1961 = vpop.permute.xlu0 %1960
  %1962 = vrot.lane.b32.xlu0 %v1926, 117
  %v1963 = vpop.permute.xlu0 %1962
  %1964 = vrot.lane.b32.xlu0 %v1939, 117
  %v1965 = vpop.permute.xlu0 %1964
  %1966 = vrot.lane.b32.xlu0 %v1940, 117
  %v1967 = vpop.permute.xlu0 %1966
  %1968 = vrot.lane.b32.xlu0 %v1938, 117
  %v1969 = vpop.permute.xlu0 %1968
  %1970 = vrot.lane.b32.xlu0 %v1950, 117
  %v1971 = vpop.permute.xlu0 %1970
  %1972 = vrot.lane.b32.xlu0 %v1951, 117
  %v1973 = vpop.permute.xlu0 %1972
  %1974 = vrot.lane.b32.xlu0 %v1949, 117
  %v1975 = vpop.permute.xlu0 %1974
  %vm1976 = vcmask 957440
  %v1977 = vsel %vm1976, %v1959, %v1961
  %v1978 = vsel %vm1976, %v1961, %v1963
  %v1979 = vsel %vm1976, %v1965, %v1967
  %v1980 = vsel %vm1976, %v1967, %v1969
  %v1981 = vsel %vm1976, %v1971, %v1973
  %v1982 = vsel %vm1976, %v1973, %v1975
  %v1992 = vsel %vm489, %v1957, 0
  %1994 = vmatprep.subr.mxu0 0.0
  %1995 = vmatpush1.msra.mxu0 0.0
  %1996 = vmatprep.subr.mxu0 0.0
  %1997 = vmatpush1.msra.mxu0 0.0
  %1998 = vmatprep.subr.mxu0 0.0
  %1999 = vmatpush1.msra.mxu0 0.0
  %2000 = vmatprep.subr.mxu0 0.0
  %2001 = vmatpush1.msra.mxu0 0.0
  %2002 = vmatprep.subr.mxu0 0.0
  %2003 = vmatpush1.msra.mxu0 0.0
  %2004 = vmatprep.subr.mxu0 0.0
  %2005 = vmatpush1.msra.mxu0 0.0
  %2006 = vmatprep.subr.mxu0 0.0
  %2007 = vmatpush1.msra.mxu0 0.0
  %2008 = vmatprep.subr.mxu0 0.0
  %2009 = vmatpush1.msra.mxu0 0.0
  %2010 = vmatprep.subr.mxu0 0.0
  %2011 = vmatpush1.msra.mxu0 0.0
  %2012 = vmatprep.subr.mxu0 0.0
  %2013 = vmatpush1.msra.mxu0 0.0
  %2014 = vmatprep.subr.mxu0 0.0
  %2015 = vmatpush1.msra.mxu0 0.0
  %2016 = vmatprep.subr.mxu0 0.0
  %2017 = vmatpush1.msra.mxu0 0.0
  %2018 = vmatprep.subr.mxu0 0.0
  %2019 = vmatpush1.msra.mxu0 0.0
  %2020 = vmatprep.subr.mxu0 %v1982
  %2021 = vmatpush1.msra.mxu0 %v1981
  %2022 = vmatprep.subr.mxu0 %v1980
  %2023 = vmatpush1.msra.mxu0 %v1979
  %2024 = vmatprep.subr.mxu0 %v1978
  %2025 = vmatpush1.msra.mxu0 %v1977
  %2026 = vmatprep.subr.mxu0 0.0
  %2027 = vmatpush2.msra.mxu0 0.0
  %2028 = vmatprep.subr.mxu0 0.0
  %2029 = vmatpush2.msra.mxu0 0.0
  %2030 = vmatprep.subr.mxu0 0.0
  %2031 = vmatpush2.msra.mxu0 0.0
  %2032 = vmatprep.subr.mxu0 0.0
  %2033 = vmatpush2.msra.mxu0 0.0
  %2034 = vmatprep.subr.mxu0 0.0
  %2035 = vmatpush2.msra.mxu0 0.0
  %2036 = vmatprep.subr.mxu0 0.0
  %2037 = vmatpush2.msra.mxu0 0.0
  %2038 = vmatprep.subr.mxu0 0.0
  %2039 = vmatpush2.msra.mxu0 0.0
  %2040 = vmatprep.subr.mxu0 0.0
  %2041 = vmatpush2.msra.mxu0 0.0
  %2042 = vmatprep.subr.mxu0 0.0
  %2043 = vmatpush2.msra.mxu0 0.0
  %2044 = vmatprep.subr.mxu0 0.0
  %2045 = vmatpush2.msra.mxu0 0.0
  %2046 = vmatprep.subr.mxu0 0.0
  %2047 = vmatpush2.msra.mxu0 0.0
  %2048 = vmatprep.subr.mxu0 0.0
  %2049 = vmatpush2.msra.mxu0 0.0
  %2050 = vmatprep.subr.mxu0 0.0
  %2051 = vmatpush2.msra.mxu0 0.0
  %2052 = vmatprep.subr.mxu0 0.0
  %2053 = vmatpush2.msra.mxu0 0.0
  %2054 = vmatprep.subr.mxu0 0.0
  %2055 = vmatpush2.msra.mxu0 0.0
  %2056 = vmatprep.subr.mxu0 0.0
  %2057 = vmatpush2.msra.mxu0 0.0
  %2058 = vmatprep.mubr.f32.mxu0 0.0
  %2059 = vmatmul.mubr.f32.gmra.mxu0 %v1992
  %v2060 = vpop.f32.mrf.mxu0
  %v2061 = vadd.f32 0.0, %v2060
  %v2062 = vpop.f32.mrf.mxu0
  %v2063 = vadd.f32 0.0, %v2062
  %2064 = vdwg.mxu0
  %2065 = vmatprep.subr.mxu0 0.0
  %2066 = vmatpush1.msra.mxu0 0.0
  %2067 = vmatprep.subr.mxu0 0.0
  %2068 = vmatpush1.msra.mxu0 0.0
  %2069 = vmatprep.subr.mxu0 0.0
  %2070 = vmatpush1.msra.mxu0 0.0
  %2071 = vmatprep.subr.mxu0 0.0
  %2072 = vmatpush1.msra.mxu0 0.0
  %2073 = vmatprep.subr.mxu0 0.0
  %2074 = vmatpush1.msra.mxu0 0.0
  %2075 = vmatprep.subr.mxu0 0.0
  %2076 = vmatpush1.msra.mxu0 0.0
  %2077 = vmatprep.subr.mxu0 0.0
  %2078 = vmatpush1.msra.mxu0 0.0
  %2079 = vmatprep.subr.mxu0 0.0
  %2080 = vmatpush1.msra.mxu0 0.0
  %2081 = vmatprep.subr.mxu0 0.0
  %2082 = vmatpush1.msra.mxu0 0.0
  %2083 = vmatprep.subr.mxu0 0.0
  %2084 = vmatpush1.msra.mxu0 0.0
  %2085 = vmatprep.subr.mxu0 0.0
  %2086 = vmatpush1.msra.mxu0 0.0
  %2087 = vmatprep.subr.mxu0 0.0
  %2088 = vmatpush1.msra.mxu0 0.0
  %2089 = vmatprep.subr.mxu0 0.0
  %2090 = vmatpush1.msra.mxu0 0.0
  %2091 = vmatprep.subr.mxu0 0.0
  %2092 = vmatpush1.msra.mxu0 %v1975
  %2093 = vmatprep.subr.mxu0 0.0
  %2094 = vmatpush1.msra.mxu0 %v1969
  %2095 = vmatprep.subr.mxu0 0.0
  %2096 = vmatpush1.msra.mxu0 %v1963
  %2097 = vmatprep.subr.mxu0 0.0
  %2098 = vmatpush2.msra.mxu0 0.0
  %2099 = vmatprep.subr.mxu0 0.0
  %2100 = vmatpush2.msra.mxu0 0.0
  %2101 = vmatprep.subr.mxu0 0.0
  %2102 = vmatpush2.msra.mxu0 0.0
  %2103 = vmatprep.subr.mxu0 0.0
  %2104 = vmatpush2.msra.mxu0 0.0
  %2105 = vmatprep.subr.mxu0 0.0
  %2106 = vmatpush2.msra.mxu0 0.0
  %2107 = vmatprep.subr.mxu0 0.0
  %2108 = vmatpush2.msra.mxu0 0.0
  %2109 = vmatprep.subr.mxu0 0.0
  %2110 = vmatpush2.msra.mxu0 0.0
  %2111 = vmatprep.subr.mxu0 0.0
  %2112 = vmatpush2.msra.mxu0 0.0
  %2113 = vmatprep.subr.mxu0 0.0
  %2114 = vmatpush2.msra.mxu0 0.0
  %2115 = vmatprep.subr.mxu0 0.0
  %2116 = vmatpush2.msra.mxu0 0.0
  %2117 = vmatprep.subr.mxu0 0.0
  %2118 = vmatpush2.msra.mxu0 0.0
  %2119 = vmatprep.subr.mxu0 0.0
  %2120 = vmatpush2.msra.mxu0 0.0
  %2121 = vmatprep.subr.mxu0 0.0
  %2122 = vmatpush2.msra.mxu0 0.0
  %2123 = vmatprep.subr.mxu0 0.0
  %2124 = vmatpush2.msra.mxu0 0.0
  %2125 = vmatprep.subr.mxu0 0.0
  %2126 = vmatpush2.msra.mxu0 0.0
  %2127 = vmatprep.subr.mxu0 0.0
  %2128 = vmatpush2.msra.mxu0 0.0
  %2129 = vmatprep.mubr.f32.mxu0 0.0
  %2130 = vmatmul.mubr.f32.gmra.mxu0 %v1992
  %v2131 = vpop.f32.mrf.mxu0
  %v2132 = vadd.f32 0.0, %v2131
  %v2133 = vpop.f32.mrf.mxu0
  %2134 = vdwg.mxu0
  %v2135 = vsel %vm489, %v1930, 0
  %2137 = vmatprep.subr.mxu0 0.0
  %2138 = vmatpush1.msra.mxu0 0.0
  %2139 = vmatprep.subr.mxu0 0.0
  %2140 = vmatpush1.msra.mxu0 0.0
  %2141 = vmatprep.subr.mxu0 0.0
  %2142 = vmatpush1.msra.mxu0 0.0
  %2143 = vmatprep.subr.mxu0 0.0
  %2144 = vmatpush1.msra.mxu0 0.0
  %2145 = vmatprep.subr.mxu0 0.0
  %2146 = vmatpush1.msra.mxu0 0.0
  %2147 = vmatprep.subr.mxu0 0.0
  %2148 = vmatpush1.msra.mxu0 0.0
  %2149 = vmatprep.subr.mxu0 0.0
  %2150 = vmatpush1.msra.mxu0 0.0
  %2151 = vmatprep.subr.mxu0 0.0
  %2152 = vmatpush1.msra.mxu0 0.0
  %2153 = vmatprep.subr.mxu0 0.0
  %2154 = vmatpush1.msra.mxu0 0.0
  %2155 = vmatprep.subr.mxu0 0.0
  %2156 = vmatpush1.msra.mxu0 0.0
  %2157 = vmatprep.subr.mxu0 0.0
  %2158 = vmatpush1.msra.mxu0 0.0
  %2159 = vmatprep.subr.mxu0 0.0
  %2160 = vmatpush1.msra.mxu0 0.0
  %2161 = vmatprep.subr.mxu0 0.0
  %2162 = vmatpush1.msra.mxu0 0.0
  %2163 = vmatprep.subr.mxu0 %v1951
  %2164 = vmatpush1.msra.mxu0 %v1950
  %2165 = vmatprep.subr.mxu0 %v1940
  %2166 = vmatpush1.msra.mxu0 %v1939
  %2167 = vmatprep.subr.mxu0 %v1929
  %2168 = vmatpush1.msra.mxu0 %v1753
  %2169 = vmatprep.subr.mxu0 0.0
  %2170 = vmatpush2.msra.mxu0 0.0
  %2171 = vmatprep.subr.mxu0 0.0
  %2172 = vmatpush2.msra.mxu0 0.0
  %2173 = vmatprep.subr.mxu0 0.0
  %2174 = vmatpush2.msra.mxu0 0.0
  %2175 = vmatprep.subr.mxu0 0.0
  %2176 = vmatpush2.msra.mxu0 0.0
  %2177 = vmatprep.subr.mxu0 0.0
  %2178 = vmatpush2.msra.mxu0 0.0
  %2179 = vmatprep.subr.mxu0 0.0
  %2180 = vmatpush2.msra.mxu0 0.0
  %2181 = vmatprep.subr.mxu0 0.0
  %2182 = vmatpush2.msra.mxu0 0.0
  %2183 = vmatprep.subr.mxu0 0.0
  %2184 = vmatpush2.msra.mxu0 0.0
  %2185 = vmatprep.subr.mxu0 0.0
  %2186 = vmatpush2.msra.mxu0 0.0
  %2187 = vmatprep.subr.mxu0 0.0
  %2188 = vmatpush2.msra.mxu0 0.0
  %2189 = vmatprep.subr.mxu0 0.0
  %2190 = vmatpush2.msra.mxu0 0.0
  %2191 = vmatprep.subr.mxu0 0.0
  %2192 = vmatpush2.msra.mxu0 0.0
  %2193 = vmatprep.subr.mxu0 0.0
  %2194 = vmatpush2.msra.mxu0 0.0
  %2195 = vmatprep.subr.mxu0 0.0
  %2196 = vmatpush2.msra.mxu0 0.0
  %2197 = vmatprep.subr.mxu0 0.0
  %2198 = vmatpush2.msra.mxu0 0.0
  %2199 = vmatprep.subr.mxu0 0.0
  %2200 = vmatpush2.msra.mxu0 0.0
  %2201 = vmatprep.mubr.f32.mxu0 0.0
  %2202 = vmatmul.mubr.f32.gmra.mxu0 %v2135
  %v2203 = vpop.f32.mrf.mxu0
  %v2204 = vadd.f32 %v2061, %v2203
  %v2205 = vpop.f32.mrf.mxu0
  %v2206 = vadd.f32 %v2063, %v2205
  %2207 = vdwg.mxu0
  %2208 = vmatprep.subr.mxu0 0.0
  %2209 = vmatpush1.msra.mxu0 0.0
  %2210 = vmatprep.subr.mxu0 0.0
  %2211 = vmatpush1.msra.mxu0 0.0
  %2212 = vmatprep.subr.mxu0 0.0
  %2213 = vmatpush1.msra.mxu0 0.0
  %2214 = vmatprep.subr.mxu0 0.0
  %2215 = vmatpush1.msra.mxu0 0.0
  %2216 = vmatprep.subr.mxu0 0.0
  %2217 = vmatpush1.msra.mxu0 0.0
  %2218 = vmatprep.subr.mxu0 0.0
  %2219 = vmatpush1.msra.mxu0 0.0
  %2220 = vmatprep.subr.mxu0 0.0
  %2221 = vmatpush1.msra.mxu0 0.0
  %2222 = vmatprep.subr.mxu0 0.0
  %2223 = vmatpush1.msra.mxu0 0.0
  %2224 = vmatprep.subr.mxu0 0.0
  %2225 = vmatpush1.msra.mxu0 0.0
  %2226 = vmatprep.subr.mxu0 0.0
  %2227 = vmatpush1.msra.mxu0 0.0
  %2228 = vmatprep.subr.mxu0 0.0
  %2229 = vmatpush1.msra.mxu0 0.0
  %2230 = vmatprep.subr.mxu0 0.0
  %2231 = vmatpush1.msra.mxu0 0.0
  %2232 = vmatprep.subr.mxu0 0.0
  %2233 = vmatpush1.msra.mxu0 0.0
  %2234 = vmatprep.subr.mxu0 0.0
  %2235 = vmatpush1.msra.mxu0 %v1949
  %2236 = vmatprep.subr.mxu0 0.0
  %2237 = vmatpush1.msra.mxu0 %v1938
  %2238 = vmatprep.subr.mxu0 0.0
  %2239 = vmatpush1.msra.mxu0 %v1926
  %2240 = vmatprep.subr.mxu0 0.0
  %2241 = vmatpush2.msra.mxu0 0.0
  %2242 = vmatprep.subr.mxu0 0.0
  %2243 = vmatpush2.msra.mxu0 0.0
  %2244 = vmatprep.subr.mxu0 0.0
  %2245 = vmatpush2.msra.mxu0 0.0
  %2246 = vmatprep.subr.mxu0 0.0
  %2247 = vmatpush2.msra.mxu0 0.0
  %2248 = vmatprep.subr.mxu0 0.0
  %2249 = vmatpush2.msra.mxu0 0.0
  %2250 = vmatprep.subr.mxu0 0.0
  %2251 = vmatpush2.msra.mxu0 0.0
  %2252 = vmatprep.subr.mxu0 0.0
  %2253 = vmatpush2.msra.mxu0 0.0
  %2254 = vmatprep.subr.mxu0 0.0
  %2255 = vmatpush2.msra.mxu0 0.0
  %2256 = vmatprep.subr.mxu0 0.0
  %2257 = vmatpush2.msra.mxu0 0.0
  %2258 = vmatprep.subr.mxu0 0.0
  %2259 = vmatpush2.msra.mxu0 0.0
  %2260 = vmatprep.subr.mxu0 0.0
  %2261 = vmatpush2.msra.mxu0 0.0
  %2262 = vmatprep.subr.mxu0 0.0
  %2263 = vmatpush2.msra.mxu0 0.0
  %2264 = vmatprep.subr.mxu0 0.0
  %2265 = vmatpush2.msra.mxu0 0.0
  %2266 = vmatprep.subr.mxu0 0.0
  %2267 = vmatpush2.msra.mxu0 0.0
  %2268 = vmatprep.subr.mxu0 0.0
  %2269 = vmatpush2.msra.mxu0 0.0
  %2270 = vmatprep.subr.mxu0 0.0
  %2271 = vmatpush2.msra.mxu0 0.0
  %2272 = vmatprep.mubr.f32.mxu0 0.0
  %2273 = vmatmul.mubr.f32.gmra.mxu0 %v2135
  %v2274 = vpop.f32.mrf.mxu0
  %v2275 = vadd.f32 %v2132, %v2274
  %v2276 = vpop.f32.mrf.mxu0
  %2277 = vdwg.mxu0
  %2278 = vrot.lane.b32.xlu0 %v1930, 80
  %v2279 = vpop.permute.xlu0 %2278
  %2280 = vrot.lane.b32.xlu0 %v1753, 106
  %v2281 = vpop.permute.xlu0 %2280
  %2282 = vrot.lane.b32.xlu0 %v1929, 106
  %v2283 = vpop.permute.xlu0 %2282
  %2284 = vrot.lane.b32.xlu0 %v1926, 106
  %v2285 = vpop.permute.xlu0 %2284
  %2286 = vrot.lane.b32.xlu0 %v1939, 106
  %v2287 = vpop.permute.xlu0 %2286
  %2288 = vrot.lane.b32.xlu0 %v1940, 106
  %v2289 = vpop.permute.xlu0 %2288
  %2290 = vrot.lane.b32.xlu0 %v1938, 106
  %v2291 = vpop.permute.xlu0 %2290
  %2292 = vrot.lane.b32.xlu0 %v1950, 106
  %v2293 = vpop.permute.xlu0 %2292
  %2294 = vrot.lane.b32.xlu0 %v1951, 106
  %v2295 = vpop.permute.xlu0 %2294
  %2296 = vrot.lane.b32.xlu0 %v1949, 106
  %v2297 = vpop.permute.xlu0 %2296
  %vm2298 = vcmask 867328
  %v2299 = vsel %vm2298, %v2281, %v2283
  %v2300 = vsel %vm2298, %v2283, %v2285
  %v2301 = vsel %vm2298, %v2287, %v2289
  %v2302 = vsel %vm2298, %v2289, %v2291
  %v2303 = vsel %vm2298, %v2293, %v2295
  %v2304 = vsel %vm2298, %v2295, %v2297
  %v2314 = vsel %vm489, %v2279, 0
  %2316 = vmatprep.subr.mxu0 0.0
  %2317 = vmatpush1.msra.mxu0 0.0
  %2318 = vmatprep.subr.mxu0 0.0
  %2319 = vmatpush1.msra.mxu0 0.0
  %2320 = vmatprep.subr.mxu0 0.0
  %2321 = vmatpush1.msra.mxu0 0.0
  %2322 = vmatprep.subr.mxu0 0.0
  %2323 = vmatpush1.msra.mxu0 0.0
  %2324 = vmatprep.subr.mxu0 0.0
  %2325 = vmatpush1.msra.mxu0 0.0
  %2326 = vmatprep.subr.mxu0 0.0
  %2327 = vmatpush1.msra.mxu0 0.0
  %2328 = vmatprep.subr.mxu0 0.0
  %2329 = vmatpush1.msra.mxu0 0.0
  %2330 = vmatprep.subr.mxu0 0.0
  %2331 = vmatpush1.msra.mxu0 0.0
  %2332 = vmatprep.subr.mxu0 0.0
  %2333 = vmatpush1.msra.mxu0 0.0
  %2334 = vmatprep.subr.mxu0 0.0
  %2335 = vmatpush1.msra.mxu0 0.0
  %2336 = vmatprep.subr.mxu0 0.0
  %2337 = vmatpush1.msra.mxu0 0.0
  %2338 = vmatprep.subr.mxu0 0.0
  %2339 = vmatpush1.msra.mxu0 0.0
  %2340 = vmatprep.subr.mxu0 0.0
  %2341 = vmatpush1.msra.mxu0 0.0
  %2342 = vmatprep.subr.mxu0 %v2304
  %2343 = vmatpush1.msra.mxu0 %v2303
  %2344 = vmatprep.subr.mxu0 %v2302
  %2345 = vmatpush1.msra.mxu0 %v2301
  %2346 = vmatprep.subr.mxu0 %v2300
  %2347 = vmatpush1.msra.mxu0 %v2299
  %2348 = vmatprep.subr.mxu0 0.0
  %2349 = vmatpush2.msra.mxu0 0.0
  %2350 = vmatprep.subr.mxu0 0.0
  %2351 = vmatpush2.msra.mxu0 0.0
  %2352 = vmatprep.subr.mxu0 0.0
  %2353 = vmatpush2.msra.mxu0 0.0
  %2354 = vmatprep.subr.mxu0 0.0
  %2355 = vmatpush2.msra.mxu0 0.0
  %2356 = vmatprep.subr.mxu0 0.0
  %2357 = vmatpush2.msra.mxu0 0.0
  %2358 = vmatprep.subr.mxu0 0.0
  %2359 = vmatpush2.msra.mxu0 0.0
  %2360 = vmatprep.subr.mxu0 0.0
  %2361 = vmatpush2.msra.mxu0 0.0
  %2362 = vmatprep.subr.mxu0 0.0
  %2363 = vmatpush2.msra.mxu0 0.0
  %2364 = vmatprep.subr.mxu0 0.0
  %2365 = vmatpush2.msra.mxu0 0.0
  %2366 = vmatprep.subr.mxu0 0.0
  %2367 = vmatpush2.msra.mxu0 0.0
  %2368 = vmatprep.subr.mxu0 0.0
  %2369 = vmatpush2.msra.mxu0 0.0
  %2370 = vmatprep.subr.mxu0 0.0
  %2371 = vmatpush2.msra.mxu0 0.0
  %2372 = vmatprep.subr.mxu0 0.0
  %2373 = vmatpush2.msra.mxu0 0.0
  %2374 = vmatprep.subr.mxu0 0.0
  %2375 = vmatpush2.msra.mxu0 0.0
  %2376 = vmatprep.subr.mxu0 0.0
  %2377 = vmatpush2.msra.mxu0 0.0
  %2378 = vmatprep.subr.mxu0 0.0
  %2379 = vmatpush2.msra.mxu0 0.0
  %2380 = vmatprep.mubr.f32.mxu0 0.0
  %2381 = vmatmul.mubr.f32.gmra.mxu0 %v2314
  %v2382 = vpop.f32.mrf.mxu0
  %v2383 = vadd.f32 0.0, %v2382
  %v2384 = vpop.f32.mrf.mxu0
  %v2385 = vadd.f32 0.0, %v2384
  %2386 = vdwg.mxu0
  %2387 = vmatprep.subr.mxu0 0.0
  %2388 = vmatpush1.msra.mxu0 0.0
  %2389 = vmatprep.subr.mxu0 0.0
  %2390 = vmatpush1.msra.mxu0 0.0
  %2391 = vmatprep.subr.mxu0 0.0
  %2392 = vmatpush1.msra.mxu0 0.0
  %2393 = vmatprep.subr.mxu0 0.0
  %2394 = vmatpush1.msra.mxu0 0.0
  %2395 = vmatprep.subr.mxu0 0.0
  %2396 = vmatpush1.msra.mxu0 0.0
  %2397 = vmatprep.subr.mxu0 0.0
  %2398 = vmatpush1.msra.mxu0 0.0
  %2399 = vmatprep.subr.mxu0 0.0
  %2400 = vmatpush1.msra.mxu0 0.0
  %2401 = vmatprep.subr.mxu0 0.0
  %2402 = vmatpush1.msra.mxu0 0.0
  %2403 = vmatprep.subr.mxu0 0.0
  %2404 = vmatpush1.msra.mxu0 0.0
  %2405 = vmatprep.subr.mxu0 0.0
  %2406 = vmatpush1.msra.mxu0 0.0
  %2407 = vmatprep.subr.mxu0 0.0
  %2408 = vmatpush1.msra.mxu0 0.0
  %2409 = vmatprep.subr.mxu0 0.0
  %2410 = vmatpush1.msra.mxu0 0.0
  %2411 = vmatprep.subr.mxu0 0.0
  %2412 = vmatpush1.msra.mxu0 0.0
  %2413 = vmatprep.subr.mxu0 0.0
  %2414 = vmatpush1.msra.mxu0 %v2297
  %2415 = vmatprep.subr.mxu0 0.0
  %2416 = vmatpush1.msra.mxu0 %v2291
  %2417 = vmatprep.subr.mxu0 0.0
  %2418 = vmatpush1.msra.mxu0 %v2285
  %2419 = vmatprep.subr.mxu0 0.0
  %2420 = vmatpush2.msra.mxu0 0.0
  %2421 = vmatprep.subr.mxu0 0.0
  %2422 = vmatpush2.msra.mxu0 0.0
  %2423 = vmatprep.subr.mxu0 0.0
  %2424 = vmatpush2.msra.mxu0 0.0
  %2425 = vmatprep.subr.mxu0 0.0
  %2426 = vmatpush2.msra.mxu0 0.0
  %2427 = vmatprep.subr.mxu0 0.0
  %2428 = vmatpush2.msra.mxu0 0.0
  %2429 = vmatprep.subr.mxu0 0.0
  %2430 = vmatpush2.msra.mxu0 0.0
  %2431 = vmatprep.subr.mxu0 0.0
  %2432 = vmatpush2.msra.mxu0 0.0
  %2433 = vmatprep.subr.mxu0 0.0
  %2434 = vmatpush2.msra.mxu0 0.0
  %2435 = vmatprep.subr.mxu0 0.0
  %2436 = vmatpush2.msra.mxu0 0.0
  %2437 = vmatprep.subr.mxu0 0.0
  %2438 = vmatpush2.msra.mxu0 0.0
  %2439 = vmatprep.subr.mxu0 0.0
  %2440 = vmatpush2.msra.mxu0 0.0
  %2441 = vmatprep.subr.mxu0 0.0
  %2442 = vmatpush2.msra.mxu0 0.0
  %2443 = vmatprep.subr.mxu0 0.0
  %2444 = vmatpush2.msra.mxu0 0.0
  %2445 = vmatprep.subr.mxu0 0.0
  %2446 = vmatpush2.msra.mxu0 0.0
  %2447 = vmatprep.subr.mxu0 0.0
  %2448 = vmatpush2.msra.mxu0 0.0
  %2449 = vmatprep.subr.mxu0 0.0
  %2450 = vmatpush2.msra.mxu0 0.0
  %2451 = vmatprep.mubr.f32.mxu0 0.0
  %2452 = vmatmul.mubr.f32.gmra.mxu0 %v2314
  %v2453 = vpop.f32.mrf.mxu0
  %v2454 = vadd.f32 0.0, %v2453
  %v2455 = vpop.f32.mrf.mxu0
  %2456 = vdwg.mxu0
  %v2457 = vadd.f32 %v2204, %v2383
  %v2458 = vadd.f32 %v2206, %v2385
  %v2459 = vadd.f32 %v2275, %v2454
  %2460 = vset.pattern.permute.xlu0 72
  %2461 = vperm.xlu0 %2460, %v1930
  %v2462 = vpop.permute.xlu0 %2461
  %v2464 = vadd.f32 %v2457, %v2462
  %v2465 = vadd.f32 %v2458, %v2462
  %v2466 = vadd.f32 %v2459, %v2462
  %v2467 = vmul.f32 %v2464, 0.01
  %v2468 = vmul.f32 %v2465, 0.01
  %v2469 = vmul.f32 %v2466, 0.01
  %v2470 = vmax.f32 %v2464, %v2467
  %v2471 = vmax.f32 %v2465, %v2468
  %v2472 = vmax.f32 %v2466, %v2469
  %v2473 = vld [vmem:[%s6] sm:$0xf]
  %v2474 = vld [vmem:[%s6 + $0x4] sm:$0xf]
  %v2475 = vld [vmem:[%s6 + $0x8] sm:$0xf]
  %v2476 = vld [vmem:[%s6 + $0xc] sm:$0xf]
  %v2477 = vld [vmem:[%s6 + $0x10] sm:$0xf]
  %v2478 = vld [vmem:[%s6 + $0x14] sm:$0xf]
  %v2479 = vld [vmem:[%s6 + $0x18] sm:$0xf]
  %v2480 = vld [vmem:[%s6 + $0x1c] sm:$0xf]
  %v2481 = vld [vmem:[%s6 + $0x20] sm:$0xf]
  %v2482 = vld [vmem:[%s6 + $0x24] sm:$0xf]
  %v2483 = vld [vmem:[%s6 + $0x28] sm:$0xf]
  %v2484 = vld [vmem:[%s6 + $0x2c] sm:$0xf]
  %v2485 = vld [vmem:[%s6 + $0x30] sm:$0xf]
  %v2486 = vld [vmem:[%s6 + $0x34] sm:$0xf]
  %v2487 = vld [vmem:[%s6 + $0x38] sm:$0xf]
  %v2488 = vld [vmem:[%s6 + $0x3c] sm:$0x1]
  %v2489 = vunpack.c.l.bf16 %v2473
  %v2490 = vunpack.c.l.bf16 %v2474
  %v2491 = vunpack.c.l.bf16 %v2475
  %v2492 = vunpack.c.l.bf16 %v2476
  %v2493 = vunpack.c.l.bf16 %v2477
  %v2494 = vunpack.c.l.bf16 %v2478
  %v2495 = vunpack.c.l.bf16 %v2479
  %v2496 = vunpack.c.l.bf16 %v2480
  %v2497 = vunpack.c.l.bf16 %v2481
  %v2498 = vunpack.c.l.bf16 %v2482
  %v2499 = vunpack.c.l.bf16 %v2483
  %v2500 = vunpack.c.l.bf16 %v2484
  %v2501 = vunpack.c.l.bf16 %v2485
  %v2502 = vunpack.c.l.bf16 %v2486
  %v2503 = vunpack.c.l.bf16 %v2487
  %v2504 = vunpack.c.l.bf16 %v2488
  %vm2505 = vcmask 990208
  %v2507 = vsel %vm2505, %v2470, 0
  %vm2509 = vcmask 1040384
  %v2511 = vsel %vm2509, %v2504, 0
  %2513 = vmatprep.subr.mxu0 0.0
  %2514 = vmatpush1.msra.mxu0 %v2511
  %2515 = vmatprep.subr.mxu0 0.0
  %2516 = vmatpush1.msra.mxu0 %v2503
  %2517 = vmatprep.subr.mxu0 0.0
  %2518 = vmatpush1.msra.mxu0 %v2502
  %2519 = vmatprep.subr.mxu0 0.0
  %2520 = vmatpush1.msra.mxu0 %v2501
  %2521 = vmatprep.subr.mxu0 0.0
  %2522 = vmatpush1.msra.mxu0 %v2500
  %2523 = vmatprep.subr.mxu0 0.0
  %2524 = vmatpush1.msra.mxu0 %v2499
  %2525 = vmatprep.subr.mxu0 0.0
  %2526 = vmatpush1.msra.mxu0 %v2498
  %2527 = vmatprep.subr.mxu0 0.0
  %2528 = vmatpush1.msra.mxu0 %v2497
  %2529 = vmatprep.subr.mxu0 0.0
  %2530 = vmatpush1.msra.mxu0 %v2496
  %2531 = vmatprep.subr.mxu0 0.0
  %2532 = vmatpush1.msra.mxu0 %v2495
  %2533 = vmatprep.subr.mxu0 0.0
  %2534 = vmatpush1.msra.mxu0 %v2494
  %2535 = vmatprep.subr.mxu0 0.0
  %2536 = vmatpush1.msra.mxu0 %v2493
  %2537 = vmatprep.subr.mxu0 0.0
  %2538 = vmatpush1.msra.mxu0 %v2492
  %2539 = vmatprep.subr.mxu0 0.0
  %2540 = vmatpush1.msra.mxu0 %v2491
  %2541 = vmatprep.subr.mxu0 0.0
  %2542 = vmatpush1.msra.mxu0 %v2490
  %2543 = vmatprep.subr.mxu0 0.0
  %2544 = vmatpush1.msra.mxu0 %v2489
  %2545 = vmatprep.subr.mxu0 0.0
  %2546 = vmatpush2.msra.mxu0 0.0
  %2547 = vmatprep.subr.mxu0 0.0
  %2548 = vmatpush2.msra.mxu0 0.0
  %2549 = vmatprep.subr.mxu0 0.0
  %2550 = vmatpush2.msra.mxu0 0.0
  %2551 = vmatprep.subr.mxu0 0.0
  %2552 = vmatpush2.msra.mxu0 0.0
  %2553 = vmatprep.subr.mxu0 0.0
  %2554 = vmatpush2.msra.mxu0 0.0
  %2555 = vmatprep.subr.mxu0 0.0
  %2556 = vmatpush2.msra.mxu0 0.0
  %2557 = vmatprep.subr.mxu0 0.0
  %2558 = vmatpush2.msra.mxu0 0.0
  %2559 = vmatprep.subr.mxu0 0.0
  %2560 = vmatpush2.msra.mxu0 0.0
  %2561 = vmatprep.subr.mxu0 0.0
  %2562 = vmatpush2.msra.mxu0 0.0
  %2563 = vmatprep.subr.mxu0 0.0
  %2564 = vmatpush2.msra.mxu0 0.0
  %2565 = vmatprep.subr.mxu0 0.0
  %2566 = vmatpush2.msra.mxu0 0.0
  %2567 = vmatprep.subr.mxu0 0.0
  %2568 = vmatpush2.msra.mxu0 0.0
  %2569 = vmatprep.subr.mxu0 0.0
  %2570 = vmatpush2.msra.mxu0 0.0
  %2571 = vmatprep.subr.mxu0 0.0
  %2572 = vmatpush2.msra.mxu0 0.0
  %2573 = vmatprep.subr.mxu0 0.0
  %2574 = vmatpush2.msra.mxu0 0.0
  %2575 = vmatprep.subr.mxu0 0.0
  %2576 = vmatpush2.msra.mxu0 0.0
  %2577 = vmatprep.mubr.f32.mxu0 0.0
  %2578 = vmatmul.mubr.f32.gmra.mxu0 %v2507
  %v2579 = vpop.f32.mrf.mxu0
  %v2580 = vadd.f32 0.0, %v2579
  %v2581 = vpop.f32.mrf.mxu0
  %2582 = vdwg.mxu0
  %2585 = vrot.lane.b32.xlu0 %v2471, 111
  %v2586 = vpop.permute.xlu0 %2585
  %2587 = vrot.lane.b32.xlu0 %v2472, 111
  %v2588 = vpop.permute.xlu0 %2587
  %vm2589 = vcmask 908288
  %v2590 = vsel %vm2589, %v2586, %v2588
  %v2591 = vsel %vm2505, %v2590, 0
  %2593 = vmatprep.subr.mxu0 0.0
  %2594 = vmatpush1.msra.mxu0 %v2511
  %2595 = vmatprep.subr.mxu0 0.0
  %2596 = vmatpush1.msra.mxu0 %v2503
  %2597 = vmatprep.subr.mxu0 0.0
  %2598 = vmatpush1.msra.mxu0 %v2502
  %2599 = vmatprep.subr.mxu0 0.0
  %2600 = vmatpush1.msra.mxu0 %v2501
  %2601 = vmatprep.subr.mxu0 0.0
  %2602 = vmatpush1.msra.mxu0 %v2500
  %2603 = vmatprep.subr.mxu0 0.0
  %2604 = vmatpush1.msra.mxu0 %v2499
  %2605 = vmatprep.subr.mxu0 0.0
  %2606 = vmatpush1.msra.mxu0 %v2498
  %2607 = vmatprep.subr.mxu0 0.0
  %2608 = vmatpush1.msra.mxu0 %v2497
  %2609 = vmatprep.subr.mxu0 0.0
  %2610 = vmatpush1.msra.mxu0 %v2496
  %2611 = vmatprep.subr.mxu0 0.0
  %2612 = vmatpush1.msra.mxu0 %v2495
  %2613 = vmatprep.subr.mxu0 0.0
  %2614 = vmatpush1.msra.mxu0 %v2494
  %2615 = vmatprep.subr.mxu0 0.0
  %2616 = vmatpush1.msra.mxu0 %v2493
  %2617 = vmatprep.subr.mxu0 0.0
  %2618 = vmatpush1.msra.mxu0 %v2492
  %2619 = vmatprep.subr.mxu0 0.0
  %2620 = vmatpush1.msra.mxu0 %v2491
  %2621 = vmatprep.subr.mxu0 0.0
  %2622 = vmatpush1.msra.mxu0 %v2490
  %2623 = vmatprep.subr.mxu0 0.0
  %2624 = vmatpush1.msra.mxu0 %v2489
  %2625 = vmatprep.subr.mxu0 0.0
  %2626 = vmatpush2.msra.mxu0 0.0
  %2627 = vmatprep.subr.mxu0 0.0
  %2628 = vmatpush2.msra.mxu0 0.0
  %2629 = vmatprep.subr.mxu0 0.0
  %2630 = vmatpush2.msra.mxu0 0.0
  %2631 = vmatprep.subr.mxu0 0.0
  %2632 = vmatpush2.msra.mxu0 0.0
  %2633 = vmatprep.subr.mxu0 0.0
  %2634 = vmatpush2.msra.mxu0 0.0
  %2635 = vmatprep.subr.mxu0 0.0
  %2636 = vmatpush2.msra.mxu0 0.0
  %2637 = vmatprep.subr.mxu0 0.0
  %2638 = vmatpush2.msra.mxu0 0.0
  %2639 = vmatprep.subr.mxu0 0.0
  %2640 = vmatpush2.msra.mxu0 0.0
  %2641 = vmatprep.subr.mxu0 0.0
  %2642 = vmatpush2.msra.mxu0 0.0
  %2643 = vmatprep.subr.mxu0 0.0
  %2644 = vmatpush2.msra.mxu0 0.0
  %2645 = vmatprep.subr.mxu0 0.0
  %2646 = vmatpush2.msra.mxu0 0.0
  %2647 = vmatprep.subr.mxu0 0.0
  %2648 = vmatpush2.msra.mxu0 0.0
  %2649 = vmatprep.subr.mxu0 0.0
  %2650 = vmatpush2.msra.mxu0 0.0
  %2651 = vmatprep.subr.mxu0 0.0
  %2652 = vmatpush2.msra.mxu0 0.0
  %2653 = vmatprep.subr.mxu0 0.0
  %2654 = vmatpush2.msra.mxu0 0.0
  %2655 = vmatprep.subr.mxu0 0.0
  %2656 = vmatpush2.msra.mxu0 0.0
  %2657 = vmatprep.mubr.f32.mxu0 0.0
  %2658 = vmatmul.mubr.f32.gmra.mxu0 %v2591
  %v2659 = vpop.f32.mrf.mxu0
  %v2660 = vadd.f32 0.0, %v2659
  %v2661 = vpop.f32.mrf.mxu0
  %2662 = vdwg.mxu0
  %2664 = vrot.lane.b32.xlu0 %v2660, 50
  %v2665 = vpop.permute.xlu0 %2664
  %vm2667 = vcmask 408576
  %v2668 = vsel %vm2667, %v2580, %v2665
  %v2669 = vld [vmem:[%s7] sm:$0xff]
  %v2670 = vld [vmem:[%s7 + $0x8] sm:$0xff]
  %2672 = vrot.lane.b32.xlu0 %v2668, 127
  %v2673 = vpop.permute.xlu0 %2672
  %2675 = vrot.lane.b32.xlu0 %v2668, 126
  %v2676 = vpop.permute.xlu0 %2675
  %2680 = vrot.lane.b32.xlu0 %v2669, 104
  %v2681 = vpop.permute.xlu0 %2680
  %2682 = vrot.lane.b32.xlu0 %v2670, 104
  %v2683 = vpop.permute.xlu0 %2682
  %2684 = vrot.lane.b32.xlu0 %v2668, 122
  %v2685 = vpop.permute.xlu0 %2684
  %2686 = vrot.lane.b32.xlu0 %v2673, 122
  %v2687 = vpop.permute.xlu0 %2686
  %2688 = vrot.lane.b32.xlu0 %v2676, 122
  %v2689 = vpop.permute.xlu0 %2688
  %v2693 = vsel %vm489, %v2681, 0
  %v2695 = vsel %vm489, %v2683, 0
  %2697 = vmatprep.subr.mxu0 0.0
  %2698 = vmatpush1.msra.mxu0 0.0
  %2699 = vmatprep.subr.mxu0 0.0
  %2700 = vmatpush1.msra.mxu0 0.0
  %2701 = vmatprep.subr.mxu0 0.0
  %2702 = vmatpush1.msra.mxu0 0.0
  %2703 = vmatprep.subr.mxu0 0.0
  %2704 = vmatpush1.msra.mxu0 0.0
  %2705 = vmatprep.subr.mxu0 0.0
  %2706 = vmatpush1.msra.mxu0 0.0
  %2707 = vmatprep.subr.mxu0 0.0
  %2708 = vmatpush1.msra.mxu0 0.0
  %2709 = vmatprep.subr.mxu0 0.0
  %2710 = vmatpush1.msra.mxu0 0.0
  %2711 = vmatprep.subr.mxu0 0.0
  %2712 = vmatpush1.msra.mxu0 0.0
  %2713 = vmatprep.subr.mxu0 0.0
  %2714 = vmatpush1.msra.mxu0 0.0
  %2715 = vmatprep.subr.mxu0 0.0
  %2716 = vmatpush1.msra.mxu0 0.0
  %2717 = vmatprep.subr.mxu0 0.0
  %2718 = vmatpush1.msra.mxu0 0.0
  %2719 = vmatprep.subr.mxu0 0.0
  %2720 = vmatpush1.msra.mxu0 0.0
  %2721 = vmatprep.subr.mxu0 0.0
  %2722 = vmatpush1.msra.mxu0 0.0
  %2723 = vmatprep.subr.mxu0 0.0
  %2724 = vmatpush1.msra.mxu0 %v2689
  %2725 = vmatprep.subr.mxu0 0.0
  %2726 = vmatpush1.msra.mxu0 %v2687
  %2727 = vmatprep.subr.mxu0 0.0
  %2728 = vmatpush1.msra.mxu0 %v2685
  %2729 = vmatprep.subr.mxu0 0.0
  %2730 = vmatpush2.msra.mxu0 0.0
  %2731 = vmatprep.subr.mxu0 0.0
  %2732 = vmatpush2.msra.mxu0 0.0
  %2733 = vmatprep.subr.mxu0 0.0
  %2734 = vmatpush2.msra.mxu0 0.0
  %2735 = vmatprep.subr.mxu0 0.0
  %2736 = vmatpush2.msra.mxu0 0.0
  %2737 = vmatprep.subr.mxu0 0.0
  %2738 = vmatpush2.msra.mxu0 0.0
  %2739 = vmatprep.subr.mxu0 0.0
  %2740 = vmatpush2.msra.mxu0 0.0
  %2741 = vmatprep.subr.mxu0 0.0
  %2742 = vmatpush2.msra.mxu0 0.0
  %2743 = vmatprep.subr.mxu0 0.0
  %2744 = vmatpush2.msra.mxu0 0.0
  %2745 = vmatprep.subr.mxu0 0.0
  %2746 = vmatpush2.msra.mxu0 0.0
  %2747 = vmatprep.subr.mxu0 0.0
  %2748 = vmatpush2.msra.mxu0 0.0
  %2749 = vmatprep.subr.mxu0 0.0
  %2750 = vmatpush2.msra.mxu0 0.0
  %2751 = vmatprep.subr.mxu0 0.0
  %2752 = vmatpush2.msra.mxu0 0.0
  %2753 = vmatprep.subr.mxu0 0.0
  %2754 = vmatpush2.msra.mxu0 0.0
  %2755 = vmatprep.subr.mxu0 0.0
  %2756 = vmatpush2.msra.mxu0 0.0
  %2757 = vmatprep.subr.mxu0 0.0
  %2758 = vmatpush2.msra.mxu0 0.0
  %2759 = vmatprep.subr.mxu0 0.0
  %2760 = vmatpush2.msra.mxu0 0.0
  %2761 = vmatprep.mubr.f32.mxu0 0.0
  %2762 = vmatmul.mubr.f32.gmra.mxu0 %v2693
  %v2763 = vpop.f32.mrf.mxu0
  %v2764 = vadd.f32 0.0, %v2763
  %v2765 = vpop.f32.mrf.mxu0
  %2766 = vmatprep.mubr.f32.mxu0 0.0
  %2767 = vmatmul.mubr.f32.gmra.mxu0 %v2695
  %v2768 = vpop.f32.mrf.mxu0
  %v2769 = vadd.f32 0.0, %v2768
  %v2770 = vpop.f32.mrf.mxu0
  %2771 = vdwg.mxu0
  %v2772 = vsel %vm489, %v2669, 0
  %v2774 = vsel %vm489, %v2670, 0
  %2776 = vmatprep.subr.mxu0 0.0
  %2777 = vmatpush1.msra.mxu0 0.0
  %2778 = vmatprep.subr.mxu0 0.0
  %2779 = vmatpush1.msra.mxu0 0.0
  %2780 = vmatprep.subr.mxu0 0.0
  %2781 = vmatpush1.msra.mxu0 0.0
  %2782 = vmatprep.subr.mxu0 0.0
  %2783 = vmatpush1.msra.mxu0 0.0
  %2784 = vmatprep.subr.mxu0 0.0
  %2785 = vmatpush1.msra.mxu0 0.0
  %2786 = vmatprep.subr.mxu0 0.0
  %2787 = vmatpush1.msra.mxu0 0.0
  %2788 = vmatprep.subr.mxu0 0.0
  %2789 = vmatpush1.msra.mxu0 0.0
  %2790 = vmatprep.subr.mxu0 0.0
  %2791 = vmatpush1.msra.mxu0 0.0
  %2792 = vmatprep.subr.mxu0 0.0
  %2793 = vmatpush1.msra.mxu0 0.0
  %2794 = vmatprep.subr.mxu0 0.0
  %2795 = vmatpush1.msra.mxu0 0.0
  %2796 = vmatprep.subr.mxu0 0.0
  %2797 = vmatpush1.msra.mxu0 0.0
  %2798 = vmatprep.subr.mxu0 0.0
  %2799 = vmatpush1.msra.mxu0 0.0
  %2800 = vmatprep.subr.mxu0 0.0
  %2801 = vmatpush1.msra.mxu0 0.0
  %2802 = vmatprep.subr.mxu0 0.0
  %2803 = vmatpush1.msra.mxu0 %v2676
  %2804 = vmatprep.subr.mxu0 0.0
  %2805 = vmatpush1.msra.mxu0 %v2673
  %2806 = vmatprep.subr.mxu0 0.0
  %2807 = vmatpush1.msra.mxu0 %v2668
  %2808 = vmatprep.subr.mxu0 0.0
  %2809 = vmatpush2.msra.mxu0 0.0
  %2810 = vmatprep.subr.mxu0 0.0
  %2811 = vmatpush2.msra.mxu0 0.0
  %2812 = vmatprep.subr.mxu0 0.0
  %2813 = vmatpush2.msra.mxu0 0.0
  %2814 = vmatprep.subr.mxu0 0.0
  %2815 = vmatpush2.msra.mxu0 0.0
  %2816 = vmatprep.subr.mxu0 0.0
  %2817 = vmatpush2.msra.mxu0 0.0
  %2818 = vmatprep.subr.mxu0 0.0
  %2819 = vmatpush2.msra.mxu0 0.0
  %2820 = vmatprep.subr.mxu0 0.0
  %2821 = vmatpush2.msra.mxu0 0.0
  %2822 = vmatprep.subr.mxu0 0.0
  %2823 = vmatpush2.msra.mxu0 0.0
  %2824 = vmatprep.subr.mxu0 0.0
  %2825 = vmatpush2.msra.mxu0 0.0
  %2826 = vmatprep.subr.mxu0 0.0
  %2827 = vmatpush2.msra.mxu0 0.0
  %2828 = vmatprep.subr.mxu0 0.0
  %2829 = vmatpush2.msra.mxu0 0.0
  %2830 = vmatprep.subr.mxu0 0.0
  %2831 = vmatpush2.msra.mxu0 0.0
  %2832 = vmatprep.subr.mxu0 0.0
  %2833 = vmatpush2.msra.mxu0 0.0
  %2834 = vmatprep.subr.mxu0 0.0
  %2835 = vmatpush2.msra.mxu0 0.0
  %2836 = vmatprep.subr.mxu0 0.0
  %2837 = vmatpush2.msra.mxu0 0.0
  %2838 = vmatprep.subr.mxu0 0.0
  %2839 = vmatpush2.msra.mxu0 0.0
  %2840 = vmatprep.mubr.f32.mxu0 0.0
  %2841 = vmatmul.mubr.f32.gmra.mxu0 %v2772
  %v2842 = vpop.f32.mrf.mxu0
  %v2843 = vadd.f32 %v2764, %v2842
  %v2844 = vpop.f32.mrf.mxu0
  %2845 = vmatprep.mubr.f32.mxu0 0.0
  %2846 = vmatmul.mubr.f32.gmra.mxu0 %v2774
  %v2847 = vpop.f32.mrf.mxu0
  %v2848 = vadd.f32 %v2769, %v2847
  %v2849 = vpop.f32.mrf.mxu0
  %2850 = vdwg.mxu0
  %2851 = vrot.lane.b32.xlu0 %v2669, 80
  %v2852 = vpop.permute.xlu0 %2851
  %2853 = vrot.lane.b32.xlu0 %v2670, 80
  %v2854 = vpop.permute.xlu0 %2853
  %2855 = vrot.lane.b32.xlu0 %v2668, 116
  %v2856 = vpop.permute.xlu0 %2855
  %2857 = vrot.lane.b32.xlu0 %v2673, 116
  %v2858 = vpop.permute.xlu0 %2857
  %2859 = vrot.lane.b32.xlu0 %v2676, 116
  %v2860 = vpop.permute.xlu0 %2859
  %v2864 = vsel %vm489, %v2852, 0
  %v2866 = vsel %vm489, %v2854, 0
  %2868 = vmatprep.subr.mxu0 0.0
  %2869 = vmatpush1.msra.mxu0 0.0
  %2870 = vmatprep.subr.mxu0 0.0
  %2871 = vmatpush1.msra.mxu0 0.0
  %2872 = vmatprep.subr.mxu0 0.0
  %2873 = vmatpush1.msra.mxu0 0.0
  %2874 = vmatprep.subr.mxu0 0.0
  %2875 = vmatpush1.msra.mxu0 0.0
  %2876 = vmatprep.subr.mxu0 0.0
  %2877 = vmatpush1.msra.mxu0 0.0
  %2878 = vmatprep.subr.mxu0 0.0
  %2879 = vmatpush1.msra.mxu0 0.0
  %2880 = vmatprep.subr.mxu0 0.0
  %2881 = vmatpush1.msra.mxu0 0.0
  %2882 = vmatprep.subr.mxu0 0.0
  %2883 = vmatpush1.msra.mxu0 0.0
  %2884 = vmatprep.subr.mxu0 0.0
  %2885 = vmatpush1.msra.mxu0 0.0
  %2886 = vmatprep.subr.mxu0 0.0
  %2887 = vmatpush1.msra.mxu0 0.0
  %2888 = vmatprep.subr.mxu0 0.0
  %2889 = vmatpush1.msra.mxu0 0.0
  %2890 = vmatprep.subr.mxu0 0.0
  %2891 = vmatpush1.msra.mxu0 0.0
  %2892 = vmatprep.subr.mxu0 0.0
  %2893 = vmatpush1.msra.mxu0 0.0
  %2894 = vmatprep.subr.mxu0 0.0
  %2895 = vmatpush1.msra.mxu0 %v2860
  %2896 = vmatprep.subr.mxu0 0.0
  %2897 = vmatpush1.msra.mxu0 %v2858
  %2898 = vmatprep.subr.mxu0 0.0
  %2899 = vmatpush1.msra.mxu0 %v2856
  %2900 = vmatprep.subr.mxu0 0.0
  %2901 = vmatpush2.msra.mxu0 0.0
  %2902 = vmatprep.subr.mxu0 0.0
  %2903 = vmatpush2.msra.mxu0 0.0
  %2904 = vmatprep.subr.mxu0 0.0
  %2905 = vmatpush2.msra.mxu0 0.0
  %2906 = vmatprep.subr.mxu0 0.0
  %2907 = vmatpush2.msra.mxu0 0.0
  %2908 = vmatprep.subr.mxu0 0.0
  %2909 = vmatpush2.msra.mxu0 0.0
  %2910 = vmatprep.subr.mxu0 0.0
  %2911 = vmatpush2.msra.mxu0 0.0
  %2912 = vmatprep.subr.mxu0 0.0
  %2913 = vmatpush2.msra.mxu0 0.0
  %2914 = vmatprep.subr.mxu0 0.0
  %2915 = vmatpush2.msra.mxu0 0.0
  %2916 = vmatprep.subr.mxu0 0.0
  %2917 = vmatpush2.msra.mxu0 0.0
  %2918 = vmatprep.subr.mxu0 0.0
  %2919 = vmatpush2.msra.mxu0 0.0
  %2920 = vmatprep.subr.mxu0 0.0
  %2921 = vmatpush2.msra.mxu0 0.0
  %2922 = vmatprep.subr.mxu0 0.0
  %2923 = vmatpush2.msra.mxu0 0.0
  %2924 = vmatprep.subr.mxu0 0.0
  %2925 = vmatpush2.msra.mxu0 0.0
  %2926 = vmatprep.subr.mxu0 0.0
  %2927 = vmatpush2.msra.mxu0 0.0
  %2928 = vmatprep.subr.mxu0 0.0
  %2929 = vmatpush2.msra.mxu0 0.0
  %2930 = vmatprep.subr.mxu0 0.0
  %2931 = vmatpush2.msra.mxu0 0.0
  %2932 = vmatprep.mubr.f32.mxu0 0.0
  %2933 = vmatmul.mubr.f32.gmra.mxu0 %v2864
  %v2934 = vpop.f32.mrf.mxu0
  %v2935 = vadd.f32 0.0, %v2934
  %v2936 = vpop.f32.mrf.mxu0
  %2937 = vmatprep.mubr.f32.mxu0 0.0
  %2938 = vmatmul.mubr.f32.gmra.mxu0 %v2866
  %v2939 = vpop.f32.mrf.mxu0
  %v2940 = vadd.f32 0.0, %v2939
  %v2941 = vpop.f32.mrf.mxu0
  %2942 = vdwg.mxu0
  %v2943 = vadd.f32 %v2843, %v2935
  %v2944 = vadd.f32 %v2848, %v2940
  %2945 = vset.pattern.permute.xlu0 72
  %2946 = vperm.xlu0 %2945, %v2669
  %v2947 = vpop.permute.xlu0 %2946
  %2949 = vset.pattern.permute.xlu0 72
  %2950 = vperm.xlu0 %2949, %v2670
  %v2951 = vpop.permute.xlu0 %2950
  %v2953 = vadd.f32 %v2943, %v2947
  %v2954 = vadd.f32 %v2944, %v2951
  %v2955 = vmul.f32 %v2953, 0.01
  %v2956 = vmul.f32 %v2954, 0.01
  %v2957 = vmax.f32 %v2953, %v2955
  %v2958 = vmax.f32 %v2954, %v2956
  %v2959 = vld [vmem:[%s8] sm:$0xf]
  %v2960 = vld [vmem:[%s8 + $0x4] sm:$0xf]
  %v2961 = vld [vmem:[%s8 + $0x8] sm:$0xf]
  %v2962 = vld [vmem:[%s8 + $0xc] sm:$0xf]
  %v2963 = vld [vmem:[%s8 + $0x10] sm:$0x3]
  %v2964 = vunpack.c.l.bf16 %v2959
  %v2965 = vunpack.c.l.bf16 %v2960
  %v2966 = vunpack.c.l.bf16 %v2961
  %v2967 = vunpack.c.l.bf16 %v2962
  %v2968 = vunpack.c.l.bf16 %v2963
  %vm2969 = vcmask 293888
  %v2971 = vsel %vm2969, %v2957, 0
  %v2974 = vsel %vm2969, %v2958, 0
  %vm2976 = vcmask 1043456
  %v2978 = vsel %vm2976, %v2968, 0
  %2980 = vmatprep.subr.mxu0 0.0
  %2981 = vmatpush1.msra.mxu0 0.0
  %2982 = vmatprep.subr.mxu0 0.0
  %2983 = vmatpush1.msra.mxu0 0.0
  %2984 = vmatprep.subr.mxu0 0.0
  %2985 = vmatpush1.msra.mxu0 0.0
  %2986 = vmatprep.subr.mxu0 0.0
  %2987 = vmatpush1.msra.mxu0 0.0
  %2988 = vmatprep.subr.mxu0 0.0
  %2989 = vmatpush1.msra.mxu0 0.0
  %2990 = vmatprep.subr.mxu0 0.0
  %2991 = vmatpush1.msra.mxu0 0.0
  %2992 = vmatprep.subr.mxu0 0.0
  %2993 = vmatpush1.msra.mxu0 0.0
  %2994 = vmatprep.subr.mxu0 0.0
  %2995 = vmatpush1.msra.mxu0 0.0
  %2996 = vmatprep.subr.mxu0 0.0
  %2997 = vmatpush1.msra.mxu0 0.0
  %2998 = vmatprep.subr.mxu0 0.0
  %2999 = vmatpush1.msra.mxu0 0.0
  %3000 = vmatprep.subr.mxu0 0.0
  %3001 = vmatpush1.msra.mxu0 0.0
  %3002 = vmatprep.subr.mxu0 0.0
  %3003 = vmatpush1.msra.mxu0 %v2978
  %3004 = vmatprep.subr.mxu0 0.0
  %3005 = vmatpush1.msra.mxu0 %v2967
  %3006 = vmatprep.subr.mxu0 0.0
  %3007 = vmatpush1.msra.mxu0 %v2966
  %3008 = vmatprep.subr.mxu0 0.0
  %3009 = vmatpush1.msra.mxu0 %v2965
  %3010 = vmatprep.subr.mxu0 0.0
  %3011 = vmatpush1.msra.mxu0 %v2964
  %3012 = vmatprep.subr.mxu0 0.0
  %3013 = vmatpush2.msra.mxu0 0.0
  %3014 = vmatprep.subr.mxu0 0.0
  %3015 = vmatpush2.msra.mxu0 0.0
  %3016 = vmatprep.subr.mxu0 0.0
  %3017 = vmatpush2.msra.mxu0 0.0
  %3018 = vmatprep.subr.mxu0 0.0
  %3019 = vmatpush2.msra.mxu0 0.0
  %3020 = vmatprep.subr.mxu0 0.0
  %3021 = vmatpush2.msra.mxu0 0.0
  %3022 = vmatprep.subr.mxu0 0.0
  %3023 = vmatpush2.msra.mxu0 0.0
  %3024 = vmatprep.subr.mxu0 0.0
  %3025 = vmatpush2.msra.mxu0 0.0
  %3026 = vmatprep.subr.mxu0 0.0
  %3027 = vmatpush2.msra.mxu0 0.0
  %3028 = vmatprep.subr.mxu0 0.0
  %3029 = vmatpush2.msra.mxu0 0.0
  %3030 = vmatprep.subr.mxu0 0.0
  %3031 = vmatpush2.msra.mxu0 0.0
  %3032 = vmatprep.subr.mxu0 0.0
  %3033 = vmatpush2.msra.mxu0 0.0
  %3034 = vmatprep.subr.mxu0 0.0
  %3035 = vmatpush2.msra.mxu0 0.0
  %3036 = vmatprep.subr.mxu0 0.0
  %3037 = vmatpush2.msra.mxu0 0.0
  %3038 = vmatprep.subr.mxu0 0.0
  %3039 = vmatpush2.msra.mxu0 0.0
  %3040 = vmatprep.subr.mxu0 0.0
  %3041 = vmatpush2.msra.mxu0 0.0
  %3042 = vmatprep.subr.mxu0 0.0
  %3043 = vmatpush2.msra.mxu0 0.0
  %3044 = vmatprep.mubr.f32.mxu0 0.0
  %3045 = vmatmul.mubr.f32.gmra.mxu0 %v2971
  %v3046 = vpop.f32.mrf.mxu0
  %v3047 = vadd.f32 0.0, %v3046
  %v3048 = vpop.f32.mrf.mxu0
  %3049 = vmatprep.mubr.f32.mxu0 0.0
  %3050 = vmatmul.mubr.f32.gmra.mxu0 %v2974
  %v3051 = vpop.f32.mrf.mxu0
  %v3052 = vadd.f32 0.0, %v3051
  %v3053 = vpop.f32.mrf.mxu0
  %3054 = vdwg.mxu0
  %3055 = vrot.lane.b32.xlu0 %v2957, 78
  %v3056 = vpop.permute.xlu0 %3055
  %3057 = vrot.lane.b32.xlu0 %v2958, 78
  %v3058 = vpop.permute.xlu0 %3057
  %v3059 = vsel %vm2969, %v3056, 0
  %v3061 = vsel %vm2969, %v3058, 0
  %3063 = vmatprep.subr.mxu0 0.0
  %3064 = vmatpush1.msra.mxu0 0.0
  %3065 = vmatprep.subr.mxu0 0.0
  %3066 = vmatpush1.msra.mxu0 0.0
  %3067 = vmatprep.subr.mxu0 0.0
  %3068 = vmatpush1.msra.mxu0 0.0
  %3069 = vmatprep.subr.mxu0 0.0
  %3070 = vmatpush1.msra.mxu0 0.0
  %3071 = vmatprep.subr.mxu0 0.0
  %3072 = vmatpush1.msra.mxu0 0.0
  %3073 = vmatprep.subr.mxu0 0.0
  %3074 = vmatpush1.msra.mxu0 0.0
  %3075 = vmatprep.subr.mxu0 0.0
  %3076 = vmatpush1.msra.mxu0 0.0
  %3077 = vmatprep.subr.mxu0 0.0
  %3078 = vmatpush1.msra.mxu0 0.0
  %3079 = vmatprep.subr.mxu0 0.0
  %3080 = vmatpush1.msra.mxu0 0.0
  %3081 = vmatprep.subr.mxu0 0.0
  %3082 = vmatpush1.msra.mxu0 0.0
  %3083 = vmatprep.subr.mxu0 0.0
  %3084 = vmatpush1.msra.mxu0 0.0
  %3085 = vmatprep.subr.mxu0 0.0
  %3086 = vmatpush1.msra.mxu0 %v2978
  %3087 = vmatprep.subr.mxu0 0.0
  %3088 = vmatpush1.msra.mxu0 %v2967
  %3089 = vmatprep.subr.mxu0 0.0
  %3090 = vmatpush1.msra.mxu0 %v2966
  %3091 = vmatprep.subr.mxu0 0.0
  %3092 = vmatpush1.msra.mxu0 %v2965
  %3093 = vmatprep.subr.mxu0 0.0
  %3094 = vmatpush1.msra.mxu0 %v2964
  %3095 = vmatprep.subr.mxu0 0.0
  %3096 = vmatpush2.msra.mxu0 0.0
  %3097 = vmatprep.subr.mxu0 0.0
  %3098 = vmatpush2.msra.mxu0 0.0
  %3099 = vmatprep.subr.mxu0 0.0
  %3100 = vmatpush2.msra.mxu0 0.0
  %3101 = vmatprep.subr.mxu0 0.0
  %3102 = vmatpush2.msra.mxu0 0.0
  %3103 = vmatprep.subr.mxu0 0.0
  %3104 = vmatpush2.msra.mxu0 0.0
  %3105 = vmatprep.subr.mxu0 0.0
  %3106 = vmatpush2.msra.mxu0 0.0
  %3107 = vmatprep.subr.mxu0 0.0
  %3108 = vmatpush2.msra.mxu0 0.0
  %3109 = vmatprep.subr.mxu0 0.0
  %3110 = vmatpush2.msra.mxu0 0.0
  %3111 = vmatprep.subr.mxu0 0.0
  %3112 = vmatpush2.msra.mxu0 0.0
  %3113 = vmatprep.subr.mxu0 0.0
  %3114 = vmatpush2.msra.mxu0 0.0
  %3115 = vmatprep.subr.mxu0 0.0
  %3116 = vmatpush2.msra.mxu0 0.0
  %3117 = vmatprep.subr.mxu0 0.0
  %3118 = vmatpush2.msra.mxu0 0.0
  %3119 = vmatprep.subr.mxu0 0.0
  %3120 = vmatpush2.msra.mxu0 0.0
  %3121 = vmatprep.subr.mxu0 0.0
  %3122 = vmatpush2.msra.mxu0 0.0
  %3123 = vmatprep.subr.mxu0 0.0
  %3124 = vmatpush2.msra.mxu0 0.0
  %3125 = vmatprep.subr.mxu0 0.0
  %3126 = vmatpush2.msra.mxu0 0.0
  %3127 = vmatprep.mubr.f32.mxu0 0.0
  %3128 = vmatmul.mubr.f32.gmra.mxu0 %v3059
  %v3129 = vpop.f32.mrf.mxu0
  %v3130 = vadd.f32 0.0, %v3129
  %v3131 = vpop.f32.mrf.mxu0
  %3132 = vmatprep.mubr.f32.mxu0 0.0
  %3133 = vmatmul.mubr.f32.gmra.mxu0 %v3061
  %v3134 = vpop.f32.mrf.mxu0
  %v3135 = vadd.f32 0.0, %v3134
  %v3136 = vpop.f32.mrf.mxu0
  %3137 = vdwg.mxu0
  %3140 = vrot.lane.b32.xlu0 %v3130, 50
  %v3141 = vpop.permute.xlu0 %3140
  %3142 = vrot.lane.b32.xlu0 %v3135, 50
  %v3143 = vpop.permute.xlu0 %3142
  %v3146 = vsel %vm2667, %v3047, %v3141
  %v3147 = vsel %vm2667, %v3052, %v3143
  %v3148 = vld [vmem:[%s9] sm:$0xff]
  %v3149 = vld [vmem:[%s9 + $0x8] sm:$0xff]
  %3152 = vrot.lane.b32.xlu0 %v3146, 127
  %v3153 = vpop.permute.xlu0 %3152
  %3154 = vrot.lane.b32.xlu0 %v3147, 127
  %v3155 = vpop.permute.xlu0 %3154
  %3158 = vrot.lane.b32.xlu0 %v3146, 126
  %v3159 = vpop.permute.xlu0 %3158
  %3160 = vrot.lane.b32.xlu0 %v3147, 126
  %v3161 = vpop.permute.xlu0 %3160
  %3165 = vrot.lane.b32.xlu0 %v3148, 80
  %v3166 = vpop.permute.xlu0 %3165
  %3167 = vrot.lane.b32.xlu0 %v3146, 122
  %v3168 = vpop.permute.xlu0 %3167
  %3169 = vrot.lane.b32.xlu0 %v3147, 122
  %v3170 = vpop.permute.xlu0 %3169
  %3171 = vrot.lane.b32.xlu0 %v3153, 122
  %v3172 = vpop.permute.xlu0 %3171
  %3173 = vrot.lane.b32.xlu0 %v3155, 122
  %v3174 = vpop.permute.xlu0 %3173
  %3175 = vrot.lane.b32.xlu0 %v3159, 122
  %v3176 = vpop.permute.xlu0 %3175
  %3177 = vrot.lane.b32.xlu0 %v3161, 122
  %v3178 = vpop.permute.xlu0 %3177
  %vm3185 = vcmask 392192
  %v3186 = vsel %vm3185, %v3166, 0
  %3188 = vmatprep.subr.mxu0 0.0
  %3189 = vmatpush1.msra.mxu0 0.0
  %3190 = vmatprep.subr.mxu0 0.0
  %3191 = vmatpush1.msra.mxu0 0.0
  %3192 = vmatprep.subr.mxu0 0.0
  %3193 = vmatpush1.msra.mxu0 0.0
  %3194 = vmatprep.subr.mxu0 0.0
  %3195 = vmatpush1.msra.mxu0 0.0
  %3196 = vmatprep.subr.mxu0 0.0
  %3197 = vmatpush1.msra.mxu0 0.0
  %3198 = vmatprep.subr.mxu0 0.0
  %3199 = vmatpush1.msra.mxu0 0.0
  %3200 = vmatprep.subr.mxu0 0.0
  %3201 = vmatpush1.msra.mxu0 0.0
  %3202 = vmatprep.subr.mxu0 0.0
  %3203 = vmatpush1.msra.mxu0 0.0
  %3204 = vmatprep.subr.mxu0 0.0
  %3205 = vmatpush1.msra.mxu0 0.0
  %3206 = vmatprep.subr.mxu0 0.0
  %3207 = vmatpush1.msra.mxu0 0.0
  %3208 = vmatprep.subr.mxu0 0.0
  %3209 = vmatpush1.msra.mxu0 %v3178
  %3210 = vmatprep.subr.mxu0 0.0
  %3211 = vmatpush1.msra.mxu0 %v3176
  %3212 = vmatprep.subr.mxu0 0.0
  %3213 = vmatpush1.msra.mxu0 %v3174
  %3214 = vmatprep.subr.mxu0 0.0
  %3215 = vmatpush1.msra.mxu0 %v3172
  %3216 = vmatprep.subr.mxu0 0.0
  %3217 = vmatpush1.msra.mxu0 %v3170
  %3218 = vmatprep.subr.mxu0 0.0
  %3219 = vmatpush1.msra.mxu0 %v3168
  %3220 = vmatprep.subr.mxu0 0.0
  %3221 = vmatpush2.msra.mxu0 0.0
  %3222 = vmatprep.subr.mxu0 0.0
  %3223 = vmatpush2.msra.mxu0 0.0
  %3224 = vmatprep.subr.mxu0 0.0
  %3225 = vmatpush2.msra.mxu0 0.0
  %3226 = vmatprep.subr.mxu0 0.0
  %3227 = vmatpush2.msra.mxu0 0.0
  %3228 = vmatprep.subr.mxu0 0.0
  %3229 = vmatpush2.msra.mxu0 0.0
  %3230 = vmatprep.subr.mxu0 0.0
  %3231 = vmatpush2.msra.mxu0 0.0
  %3232 = vmatprep.subr.mxu0 0.0
  %3233 = vmatpush2.msra.mxu0 0.0
  %3234 = vmatprep.subr.mxu0 0.0
  %3235 = vmatpush2.msra.mxu0 0.0
  %3236 = vmatprep.subr.mxu0 0.0
  %3237 = vmatpush2.msra.mxu0 0.0
  %3238 = vmatprep.subr.mxu0 0.0
  %3239 = vmatpush2.msra.mxu0 0.0
  %3240 = vmatprep.subr.mxu0 0.0
  %3241 = vmatpush2.msra.mxu0 0.0
  %3242 = vmatprep.subr.mxu0 0.0
  %3243 = vmatpush2.msra.mxu0 0.0
  %3244 = vmatprep.subr.mxu0 0.0
  %3245 = vmatpush2.msra.mxu0 0.0
  %3246 = vmatprep.subr.mxu0 0.0
  %3247 = vmatpush2.msra.mxu0 0.0
  %3248 = vmatprep.subr.mxu0 0.0
  %3249 = vmatpush2.msra.mxu0 0.0
  %3250 = vmatprep.subr.mxu0 0.0
  %3251 = vmatpush2.msra.mxu0 0.0
  %3252 = vmatprep.mubr.f32.mxu0 0.0
  %3253 = vmatmul.mubr.f32.gmra.mxu0 %v3186
  %v3254 = vpop.f32.mrf.mxu0
  %v3255 = vadd.f32 0.0, %v3254
  %v3256 = vpop.f32.mrf.mxu0
  %3257 = vdwg.mxu0
  %v3258 = vsel %vm3185, %v3148, 0
  %3260 = vmatprep.subr.mxu0 0.0
  %3261 = vmatpush1.msra.mxu0 0.0
  %3262 = vmatprep.subr.mxu0 0.0
  %3263 = vmatpush1.msra.mxu0 0.0
  %3264 = vmatprep.subr.mxu0 0.0
  %3265 = vmatpush1.msra.mxu0 0.0
  %3266 = vmatprep.subr.mxu0 0.0
  %3267 = vmatpush1.msra.mxu0 0.0
  %3268 = vmatprep.subr.mxu0 0.0
  %3269 = vmatpush1.msra.mxu0 0.0
  %3270 = vmatprep.subr.mxu0 0.0
  %3271 = vmatpush1.msra.mxu0 0.0
  %3272 = vmatprep.subr.mxu0 0.0
  %3273 = vmatpush1.msra.mxu0 0.0
  %3274 = vmatprep.subr.mxu0 0.0
  %3275 = vmatpush1.msra.mxu0 0.0
  %3276 = vmatprep.subr.mxu0 0.0
  %3277 = vmatpush1.msra.mxu0 0.0
  %3278 = vmatprep.subr.mxu0 0.0
  %3279 = vmatpush1.msra.mxu0 0.0
  %3280 = vmatprep.subr.mxu0 0.0
  %3281 = vmatpush1.msra.mxu0 %v3161
  %3282 = vmatprep.subr.mxu0 0.0
  %3283 = vmatpush1.msra.mxu0 %v3159
  %3284 = vmatprep.subr.mxu0 0.0
  %3285 = vmatpush1.msra.mxu0 %v3155
  %3286 = vmatprep.subr.mxu0 0.0
  %3287 = vmatpush1.msra.mxu0 %v3153
  %3288 = vmatprep.subr.mxu0 0.0
  %3289 = vmatpush1.msra.mxu0 %v3147
  %3290 = vmatprep.subr.mxu0 0.0
  %3291 = vmatpush1.msra.mxu0 %v3146
  %3292 = vmatprep.subr.mxu0 0.0
  %3293 = vmatpush2.msra.mxu0 0.0
  %3294 = vmatprep.subr.mxu0 0.0
  %3295 = vmatpush2.msra.mxu0 0.0
  %3296 = vmatprep.subr.mxu0 0.0
  %3297 = vmatpush2.msra.mxu0 0.0
  %3298 = vmatprep.subr.mxu0 0.0
  %3299 = vmatpush2.msra.mxu0 0.0
  %3300 = vmatprep.subr.mxu0 0.0
  %3301 = vmatpush2.msra.mxu0 0.0
  %3302 = vmatprep.subr.mxu0 0.0
  %3303 = vmatpush2.msra.mxu0 0.0
  %3304 = vmatprep.subr.mxu0 0.0
  %3305 = vmatpush2.msra.mxu0 0.0
  %3306 = vmatprep.subr.mxu0 0.0
  %3307 = vmatpush2.msra.mxu0 0.0
  %3308 = vmatprep.subr.mxu0 0.0
  %3309 = vmatpush2.msra.mxu0 0.0
  %3310 = vmatprep.subr.mxu0 0.0
  %3311 = vmatpush2.msra.mxu0 0.0
  %3312 = vmatprep.subr.mxu0 0.0
  %3313 = vmatpush2.msra.mxu0 0.0
  %3314 = vmatprep.subr.mxu0 0.0
  %3315 = vmatpush2.msra.mxu0 0.0
  %3316 = vmatprep.subr.mxu0 0.0
  %3317 = vmatpush2.msra.mxu0 0.0
  %3318 = vmatprep.subr.mxu0 0.0
  %3319 = vmatpush2.msra.mxu0 0.0
  %3320 = vmatprep.subr.mxu0 0.0
  %3321 = vmatpush2.msra.mxu0 0.0
  %3322 = vmatprep.subr.mxu0 0.0
  %3323 = vmatpush2.msra.mxu0 0.0
  %3324 = vmatprep.mubr.f32.mxu0 0.0
  %3325 = vmatmul.mubr.f32.gmra.mxu0 %v3258
  %v3326 = vpop.f32.mrf.mxu0
  %v3327 = vadd.f32 %v3255, %v3326
  %v3328 = vpop.f32.mrf.mxu0
  %3329 = vdwg.mxu0
  %3331 = vrot.lane.b32.xlu0 %v3148, 32
  %v3332 = vpop.permute.xlu0 %3331
  %3333 = vrot.lane.b32.xlu0 %v3149, 32
  %v3334 = vpop.permute.xlu0 %3333
  %vm3335 = vcmask 261120
  %v3336 = vsel %vm3335, %v3332, %v3334
  %3337 = vrot.lane.b32.xlu0 %v3146, 116
  %v3338 = vpop.permute.xlu0 %3337
  %3339 = vrot.lane.b32.xlu0 %v3147, 116
  %v3340 = vpop.permute.xlu0 %3339
  %3341 = vrot.lane.b32.xlu0 %v3153, 116
  %v3342 = vpop.permute.xlu0 %3341
  %3343 = vrot.lane.b32.xlu0 %v3155, 116
  %v3344 = vpop.permute.xlu0 %3343
  %3345 = vrot.lane.b32.xlu0 %v3159, 116
  %v3346 = vpop.permute.xlu0 %3345
  %3347 = vrot.lane.b32.xlu0 %v3161, 116
  %v3348 = vpop.permute.xlu0 %3347
  %v3355 = vsel %vm3185, %v3336, 0
  %3357 = vmatprep.subr.mxu0 0.0
  %3358 = vmatpush1.msra.mxu0 0.0
  %3359 = vmatprep.subr.mxu0 0.0
  %3360 = vmatpush1.msra.mxu0 0.0
  %3361 = vmatprep.subr.mxu0 0.0
  %3362 = vmatpush1.msra.mxu0 0.0
  %3363 = vmatprep.subr.mxu0 0.0
  %3364 = vmatpush1.msra.mxu0 0.0
  %3365 = vmatprep.subr.mxu0 0.0
  %3366 = vmatpush1.msra.mxu0 0.0
  %3367 = vmatprep.subr.mxu0 0.0
  %3368 = vmatpush1.msra.mxu0 0.0
  %3369 = vmatprep.subr.mxu0 0.0
  %3370 = vmatpush1.msra.mxu0 0.0
  %3371 = vmatprep.subr.mxu0 0.0
  %3372 = vmatpush1.msra.mxu0 0.0
  %3373 = vmatprep.subr.mxu0 0.0
  %3374 = vmatpush1.msra.mxu0 0.0
  %3375 = vmatprep.subr.mxu0 0.0
  %3376 = vmatpush1.msra.mxu0 0.0
  %3377 = vmatprep.subr.mxu0 0.0
  %3378 = vmatpush1.msra.mxu0 %v3348
  %3379 = vmatprep.subr.mxu0 0.0
  %3380 = vmatpush1.msra.mxu0 %v3346
  %3381 = vmatprep.subr.mxu0 0.0
  %3382 = vmatpush1.msra.mxu0 %v3344
  %3383 = vmatprep.subr.mxu0 0.0
  %3384 = vmatpush1.msra.mxu0 %v3342
  %3385 = vmatprep.subr.mxu0 0.0
  %3386 = vmatpush1.msra.mxu0 %v3340
  %3387 = vmatprep.subr.mxu0 0.0
  %3388 = vmatpush1.msra.mxu0 %v3338
  %3389 = vmatprep.subr.mxu0 0.0
  %3390 = vmatpush2.msra.mxu0 0.0
  %3391 = vmatprep.subr.mxu0 0.0
  %3392 = vmatpush2.msra.mxu0 0.0
  %3393 = vmatprep.subr.mxu0 0.0
  %3394 = vmatpush2.msra.mxu0 0.0
  %3395 = vmatprep.subr.mxu0 0.0
  %3396 = vmatpush2.msra.mxu0 0.0
  %3397 = vmatprep.subr.mxu0 0.0
  %3398 = vmatpush2.msra.mxu0 0.0
  %3399 = vmatprep.subr.mxu0 0.0
  %3400 = vmatpush2.msra.mxu0 0.0
  %3401 = vmatprep.subr.mxu0 0.0
  %3402 = vmatpush2.msra.mxu0 0.0
  %3403 = vmatprep.subr.mxu0 0.0
  %3404 = vmatpush2.msra.mxu0 0.0
  %3405 = vmatprep.subr.mxu0 0.0
  %3406 = vmatpush2.msra.mxu0 0.0
  %3407 = vmatprep.subr.mxu0 0.0
  %3408 = vmatpush2.msra.mxu0 0.0
  %3409 = vmatprep.subr.mxu0 0.0
  %3410 = vmatpush2.msra.mxu0 0.0
  %3411 = vmatprep.subr.mxu0 0.0
  %3412 = vmatpush2.msra.mxu0 0.0
  %3413 = vmatprep.subr.mxu0 0.0
  %3414 = vmatpush2.msra.mxu0 0.0
  %3415 = vmatprep.subr.mxu0 0.0
  %3416 = vmatpush2.msra.mxu0 0.0
  %3417 = vmatprep.subr.mxu0 0.0
  %3418 = vmatpush2.msra.mxu0 0.0
  %3419 = vmatprep.subr.mxu0 0.0
  %3420 = vmatpush2.msra.mxu0 0.0
  %3421 = vmatprep.mubr.f32.mxu0 0.0
  %3422 = vmatmul.mubr.f32.gmra.mxu0 %v3355
  %v3423 = vpop.f32.mrf.mxu0
  %v3424 = vadd.f32 0.0, %v3423
  %v3425 = vpop.f32.mrf.mxu0
  %3426 = vdwg.mxu0
  %v3427 = vadd.f32 %v3327, %v3424
  %3428 = vset.pattern.permute.xlu0 16
  %3429 = vperm.xlu0 %3428, %v3149
  %v3430 = vpop.permute.xlu0 %3429
  %v3432 = vadd.f32 %v3427, %v3430
  %v3433 = vld [vmem:[%s10] sm:$0xf]
  %v3434 = vld [vmem:[%s10 + $0x4] sm:$0xf]
  %v3435 = vld [vmem:[%s10 + $0x8] sm:$0xf]
  %v3436 = vld [vmem:[%s10 + $0xc] sm:$0xf]
  %v3437 = vld [vmem:[%s10 + $0x10] sm:$0xf]
  %v3438 = vld [vmem:[%s10 + $0x14] sm:$0xf]
  %v3439 = vld [vmem:[%s10 + $0x18] sm:$0xf]
  %v3440 = vld [vmem:[%s10 + $0x1c] sm:$0xf]
  %v3441 = vld [vmem:[%s10 + $0x20] sm:$0xf]
  %v3442 = vld [vmem:[%s10 + $0x24] sm:$0xf]
  %v3443 = vld [vmem:[%s10 + $0x28] sm:$0x7]
  %v3444 = vunpack.c.l.bf16 %v3433
  %v3445 = vunpack.c.l.bf16 %v3434
  %v3446 = vunpack.c.l.bf16 %v3435
  %v3447 = vunpack.c.l.bf16 %v3436
  %v3448 = vunpack.c.l.bf16 %v3437
  %v3449 = vunpack.c.l.bf16 %v3438
  %v3450 = vunpack.c.l.bf16 %v3439
  %v3451 = vunpack.c.l.bf16 %v3440
  %v3452 = vunpack.c.l.bf16 %v3441
  %v3453 = vunpack.c.l.bf16 %v3442
  %v3454 = vunpack.c.l.bf16 %v3443
  %vm3455 = vcmask 703488
  %v3457 = vsel %vm3455, %v3432, 0
  %vm3459 = vcmask 1045504
  %v3461 = vsel %vm3459, %v3454, 0
  %3463 = vmatprep.subr.mxu0 0.0
  %3464 = vmatpush1.msra.mxu0 0.0
  %3465 = vmatprep.subr.mxu0 0.0
  %3466 = vmatpush1.msra.mxu0 0.0
  %3467 = vmatprep.subr.mxu0 0.0
  %3468 = vmatpush1.msra.mxu0 0.0
  %3469 = vmatprep.subr.mxu0 0.0
  %3470 = vmatpush1.msra.mxu0 0.0
  %3471 = vmatprep.subr.mxu0 0.0
  %3472 = vmatpush1.msra.mxu0 0.0
  %3473 = vmatprep.subr.mxu0 0.0
  %3474 = vmatpush1.msra.mxu0 %v3461
  %3475 = vmatprep.subr.mxu0 0.0
  %3476 = vmatpush1.msra.mxu0 %v3453
  %3477 = vmatprep.subr.mxu0 0.0
  %3478 = vmatpush1.msra.mxu0 %v3452
  %3479 = vmatprep.subr.mxu0 0.0
  %3480 = vmatpush1.msra.mxu0 %v3451
  %3481 = vmatprep.subr.mxu0 0.0
  %3482 = vmatpush1.msra.mxu0 %v3450
  %3483 = vmatprep.subr.mxu0 0.0
  %3484 = vmatpush1.msra.mxu0 %v3449
  %3485 = vmatprep.subr.mxu0 0.0
  %3486 = vmatpush1.msra.mxu0 %v3448
  %3487 = vmatprep.subr.mxu0 0.0
  %3488 = vmatpush1.msra.mxu0 %v3447
  %3489 = vmatprep.subr.mxu0 0.0
  %3490 = vmatpush1.msra.mxu0 %v3446
  %3491 = vmatprep.subr.mxu0 0.0
  %3492 = vmatpush1.msra.mxu0 %v3445
  %3493 = vmatprep.subr.mxu0 0.0
  %3494 = vmatpush1.msra.mxu0 %v3444
  %3495 = vmatprep.subr.mxu0 0.0
  %3496 = vmatpush2.msra.mxu0 0.0
  %3497 = vmatprep.subr.mxu0 0.0
  %3498 = vmatpush2.msra.mxu0 0.0
  %3499 = vmatprep.subr.mxu0 0.0
  %3500 = vmatpush2.msra.mxu0 0.0
  %3501 = vmatprep.subr.mxu0 0.0
  %3502 = vmatpush2.msra.mxu0 0.0
  %3503 = vmatprep.subr.mxu0 0.0
  %3504 = vmatpush2.msra.mxu0 0.0
  %3505 = vmatprep.subr.mxu0 0.0
  %3506 = vmatpush2.msra.mxu0 0.0
  %3507 = vmatprep.subr.mxu0 0.0
  %3508 = vmatpush2.msra.mxu0 0.0
  %3509 = vmatprep.subr.mxu0 0.0
  %3510 = vmatpush2.msra.mxu0 0.0
  %3511 = vmatprep.subr.mxu0 0.0
  %3512 = vmatpush2.msra.mxu0 0.0
  %3513 = vmatprep.subr.mxu0 0.0
  %3514 = vmatpush2.msra.mxu0 0.0
  %3515 = vmatprep.subr.mxu0 0.0
  %3516 = vmatpush2.msra.mxu0 0.0
  %3517 = vmatprep.subr.mxu0 0.0
  %3518 = vmatpush2.msra.mxu0 0.0
  %3519 = vmatprep.subr.mxu0 0.0
  %3520 = vmatpush2.msra.mxu0 0.0
  %3521 = vmatprep.subr.mxu0 0.0
  %3522 = vmatpush2.msra.mxu0 0.0
  %3523 = vmatprep.subr.mxu0 0.0
  %3524 = vmatpush2.msra.mxu0 0.0
  %3525 = vmatprep.subr.mxu0 0.0
  %3526 = vmatpush2.msra.mxu0 0.0
  %3527 = vmatprep.mubr.f32.mxu0 0.0
  %3528 = vmatmul.mubr.f32.gmra.mxu0 %v3457
  %v3529 = vpop.f32.mrf.mxu0
  %v3530 = vadd.f32 0.0, %v3529
  %v3531 = vpop.f32.mrf.mxu0
  %3532 = vdwg.mxu0
  %v3533 = vrot.slane %v3530, 4
  %v3534 = vadd.f32 %v3530, %v3533
  %v3535 = vrot.slane %v3534, 2
  %v3536 = vadd.f32 %v3534, %v3535
  %v3537 = vrot.slane %v3536, 1
  %v3538 = vadd.f32 %v3536, %v3537
  %v3539 = vmul.f32 %v3538, 0.03125
  %3540 = vst [vmem:[%s11] sm:$0x1] %v3539
  // Predicated region
  $region46: #{_lambda_.1} parent=0 // pred_check
    _
  $region47: #{_lambda_.1} parent=0 // pred_check_branch
    %3542 = sbr.rel (0) target = $region49
  $region48: #{_lambda_.1} parent=0 // pred_region
    _
  $region49: #{_lambda_.1} parent=0 // pred_fallthru
    _
  // Predicated region
  $region50: #{_lambda_.1} parent=0 // pred_check
    _
  $region51: #{_lambda_.1} parent=0 // pred_check_branch
    %3544 = sbr.rel (0) target = $region53
  $region52: #{_lambda_.1} parent=0 // pred_region
    _
  $region53: #{_lambda_.1} parent=0 // pred_fallthru
    _

</llo_original>
